<compile_context>
chip_gen: v5e
topology: v5e:2x2
jax: 0.10.0
libtpu: 0.0.40
codegen_flags: <defaults>
</compile_context>

<pallas_src>
import functools

import numpy as np
import jax
import jax.numpy as jnp
from jax.experimental import pallas as pl
from jax.experimental.pallas import tpu as pltpu


# ----------------------------- helpers ------------------------------

def _full_spec(shape):
    """Full-array block, constant block index (single-step grid)."""
    n = len(shape)
    return pl.BlockSpec(shape, lambda i, _n=n: (0,) * _n)


def _bilinear_matrix(in_size, out_size):
    """Row-stochastic interpolation matrix matching F.interpolate(align_corners=False)."""
    A = np.zeros((out_size, in_size), np.float32)
    scale = in_size / out_size
    for i in range(out_size):
        src = (i + 0.5) * scale - 0.5
        src = max(src, 0.0)
        i0 = min(int(np.floor(src)), in_size - 1)
        i1 = min(i0 + 1, in_size - 1)
        w1 = src - i0
        A[i, i0] += 1.0 - w1
        A[i, i1] += w1
    return jnp.asarray(A)


def bilinear_resize(img, Hn, Wn):
    """F.interpolate(..., mode='bilinear', align_corners=False) as two small matmuls (XLA)."""
    C, H, W = img.shape
    A_h = _bilinear_matrix(H, Hn)              # (Hn, H)
    A_w = _bilinear_matrix(W, Wn)              # (Wn, W)
    t = jnp.einsum('hH,cHW->chW', A_h, img)
    return jnp.einsum('chW,wW->chw', t, A_w)   # (C, Hn, Wn)


# ----------------------- fused ViT Pallas kernel -----------------------
# Token layout (attention is permutation-equivariant, ordering is free):
#   rows [0, P)          : patch tokens (+ pos[1:] + patch bias)
#   row  P               : cls token    (+ pos[0])
#   rows [P+1, P+1+R)    : register tokens
#   rows [P+1+R, Np)     : zero padding (masked out of attention as keys)

def _make_vit_kernel(num_heads, depth):
    def kernel(patches_ref, pw_ref, posp_ref, tail_ref, kbias_ref,
               ln1g, ln1b, qkvw, qkvb, projw, projb, ls1,
               ln2g, ln2b, fc1w, fc1b, fc2w, fc2b, ls2,
               ng, nb, o_ref, attn_scr):
        Np, D = o_ref.shape
        dh = D // num_heads
        scale = dh ** -0.5

        # ---- patch embed + token assembly (fused; previously a separate pallas_call) ----
        emb = jnp.dot(patches_ref[...], pw_ref[...],
                      preferred_element_type=jnp.float32) + posp_ref[...]      # (P, D)
        x = jnp.concatenate([emb, tail_ref[...]], axis=0)                      # (Np, D)

        kbias = kbias_ref[...]          # (1, Np) additive mask, depth-invariant (hoisted)

        def ln(v, g, b):
            mu = jnp.mean(v, axis=-1, keepdims=True)
            var = jnp.mean((v - mu) ** 2, axis=-1, keepdims=True)
            return (v - mu) * jax.lax.rsqrt(var + 1e-6) * g + b

        # ---- transformer blocks, statically unrolled over depth ----
        # TODO(synk): stream weights with grid=(depth,) for the real depth=12 config.
        for d in range(depth):
            # ---------------- attention branch ----------------
            y = ln(x, ln1g[d], ln1b[d])
            qkv = jnp.dot(y.astype(jnp.bfloat16), qkvw[d],
                          preferred_element_type=jnp.float32) + qkvb[d]        # (Np, 3D)
            qkv_bf = qkv.astype(jnp.bfloat16)                                   # cast once

            for h in range(num_heads):                    # static head split, no transposes
                q = qkv_bf[:, h * dh:(h + 1) * dh]
                k = qkv_bf[:, D + h * dh:D + (h + 1) * dh]
                v = qkv_bf[:, 2 * D + h * dh:2 * D + (h + 1) * dh]
                s = jax.lax.dot_general(q, k, (((1,), (1,)), ((), ())),
                                        preferred_element_type=jnp.float32)     # (Np, Np)
                s = s * scale + kbias
                m = jnp.max(s, axis=-1, keepdims=True)
                p = jnp.exp(s - m)
                p = p * pl.reciprocal(jnp.sum(p, axis=-1, keepdims=True), approx=True)
                attn_scr[:, h * dh:(h + 1) * dh] = jnp.dot(
                    p.astype(jnp.bfloat16), v, preferred_element_type=jnp.float32)

            # single proj matmul with full D-deep contraction over all heads
            attn = jnp.dot(attn_scr[...].astype(jnp.bfloat16), projw[d],
                           preferred_element_type=jnp.float32) + projb[d]
            x = x + ls1[d] * attn                          # LayerScale residual

            # ---------------- MLP branch ----------------
            y = ln(x, ln2g[d], ln2b[d])
            hdn = jnp.dot(y.astype(jnp.bfloat16), fc1w[d],
                          preferred_element_type=jnp.float32) + fc1b[d]
            # TODO(synk): PyTorch nn.GELU default is exact erf-GELU; tanh approximation
            # kept for guaranteed Mosaic lowering.
            hdn = jax.nn.gelu(hdn, approximate=True)
            mlp = jnp.dot(hdn.astype(jnp.bfloat16), fc2w[d],
                          preferred_element_type=jnp.float32) + fc2b[d]
            x = x + ls2[d] * mlp

        # final LayerNorm; single full-tile store
        o_ref[...] = ln(x, ng[...], nb[...])
    return kernel


def vit_forward(patches, posp_b, tail, kbias, params, *, num_heads):
    P, Kp = patches.shape
    depth, D, _ = params["qkv_w"].shape
    Hd = params["fc1_w"].shape[-1]
    Np = P + tail.shape[0]

    shapes = [
        (P, Kp), (Kp, D), (P, D), (Np - P, D), (1, Np),
        (depth, 1, D), (depth, 1, D),                      # ln1 g, b
        (depth, D, 3 * D), (depth, 1, 3 * D),              # qkv w, b
        (depth, D, D), (depth, 1, D),                      # proj w, b
        (depth, 1, D),                                     # ls1
        (depth, 1, D), (depth, 1, D),                      # ln2 g, b
        (depth, D, Hd), (depth, 1, Hd),                    # fc1 w, b
        (depth, Hd, D), (depth, 1, D),                     # fc2 w, b
        (depth, 1, D),                                     # ls2
        (1, D), (1, D),                                    # final norm g, b
    ]
    return pl.pallas_call(
        _make_vit_kernel(num_heads, depth),
        out_shape=jax.ShapeDtypeStruct((Np, D), jnp.float32),
        grid=(1,),
        in_specs=[_full_spec(s) for s in shapes],
        out_specs=_full_spec((Np, D)),
        scratch_shapes=[pltpu.VMEM((Np, D), jnp.float32)],
        compiler_params=pltpu.CompilerParams(dimension_semantics=("arbitrary",)),
    )(patches, params["patch_w"], posp_b, tail, kbias,
      params["ln1_g"], params["ln1_b"],
      params["qkv_w"], params["qkv_b"],
      params["proj_w"], params["proj_b"], params["ls1"],
      params["ln2_g"], params["ln2_b"],
      params["fc1_w"], params["fc1_b"],
      params["fc2_w"], params["fc2_b"], params["ls2"],
      params["norm_g"], params["norm_b"])


# ------------------------------- params / glue ------------------------------

def init_params(key, *, in_chans, patch, embed_dim, depth, mlp_ratio,
                num_reg, num_patches, k_pad):
    hidden = embed_dim * mlp_ratio
    k_real = in_chans * patch * patch
    keys = iter(jax.random.split(key, 16))

    def w(shape, dtype=jnp.bfloat16):
        return (jax.random.normal(next(keys), shape, jnp.float32) * 0.02).astype(dtype)

    patch_w = jax.random.normal(next(keys), (k_real, embed_dim), jnp.float32) * 0.02
    patch_w = jnp.pad(patch_w, ((0, k_pad - k_real), (0, 0))).astype(jnp.bfloat16)

    return {
        "patch_w": patch_w,                                              # (Kp, D) bf16
        "patch_b": jnp.zeros((1, embed_dim), jnp.float32),
        "cls": w((1, embed_dim), jnp.float32),
        "reg": w((num_reg, embed_dim), jnp.float32),
        "pos": w((1 + num_patches, embed_dim), jnp.float32),
        "norm_g": jnp.ones((1, embed_dim), jnp.float32),
        "norm_b": jnp.zeros((1, embed_dim), jnp.float32),
        # stacked per-block weights (leading depth axis; unrolled in-kernel at this size)
        "ln1_g": jnp.ones((depth, 1, embed_dim), jnp.float32),
        "ln1_b": jnp.zeros((depth, 1, embed_dim), jnp.float32),
        "qkv_w": w((depth, embed_dim, 3 * embed_dim)),
        "qkv_b": jnp.zeros((depth, 1, 3 * embed_dim), jnp.float32),
        "proj_w": w((depth, embed_dim, embed_dim)),
        "proj_b": jnp.zeros((depth, 1, embed_dim), jnp.float32),
        "ls1": jnp.ones((depth, 1, embed_dim), jnp.float32),             # LayerScale
        "ln2_g": jnp.ones((depth, 1, embed_dim), jnp.float32),
        "ln2_b": jnp.zeros((depth, 1, embed_dim), jnp.float32),
        "fc1_w": w((depth, embed_dim, hidden)),
        "fc1_b": jnp.zeros((depth, 1, hidden), jnp.float32),
        "fc2_w": w((depth, hidden, embed_dim)),
        "fc2_b": jnp.zeros((depth, 1, embed_dim), jnp.float32),
        "ls2": jnp.ones((depth, 1, embed_dim), jnp.float32),
    }


def dino_feature_extractor(params, gt_image, *, feature_size, patch, num_heads, num_reg):
    C, H, W = gt_image.shape
    fh = fw = feature_size
    Hn, Wn = fh * patch, fw * patch
    P = fh * fw
    n_real = P + 1 + num_reg                       # patch + cls + register tokens
    n_pad = ((n_real + 31) // 32) * 32             # 32-row pad: clean bf16 vreg packing
    Kp = params["patch_w"].shape[0]
    K = C * patch * patch
    D = params["patch_w"].shape[1]

    # bilinear resize (align_corners=False) — plain XLA at toy size (see header TODO)
    img = bilinear_resize(gt_image, Hn, Wn)        # (C, Hn, Wn)

    # 14x14 / stride-14 conv == patchify (layout plumbing) + matmul (in-kernel)
    patches = img.reshape(C, fh, patch, fw, patch).transpose(1, 3, 0, 2, 4)
    patches = patches.reshape(P, K)
    patches = jnp.pad(patches, ((0, 0), (0, Kp - K))).astype(jnp.bfloat16)   # lane-pad K

    # small host-side parameter combos (tiny, done once per call)
    posp_b = params["pos"][1:] + params["patch_b"]                           # (P, D)
    tail = jnp.concatenate(
        [params["cls"] + params["pos"][:1],
         params["reg"],
         jnp.zeros((n_pad - P - 1 - num_reg, D), jnp.float32)], axis=0)      # (n_pad-P, D)
    kbias = jnp.asarray(
        np.where(np.arange(n_pad) < n_real, 0.0, -1e30), jnp.float32)[None, :]

    # whole ViT (patch embed + all blocks + final LN) in one pallas_call
    x = vit_forward(patches, posp_b, tail, kbias, params, num_heads=num_heads)

    # x_norm_patchtokens -> (D, fh, fw)
    patch_tokens = x[:P]
    return patch_tokens.reshape(fh, fw, D).transpose(2, 0, 1)


# ---------------------------------- main -----------------------------------

if __name__ == "__main__":
    # Down-scaled config consistent with dinov2_vits14_reg structure
    # (patch 14, cls + 4 register tokens, pre-norm blocks, LayerScale).
    IN_CHANS = 3
    PATCH = 14
    EMBED_DIM = 128           # multiple of 128 -> lane-dense tiles
    DEPTH = 2
    NUM_HEADS = 2
    MLP_RATIO = 4
    NUM_REG = 4
    FEATURE_SIZE = 4          # real module default is 50; kept small here
    NUM_PATCHES = FEATURE_SIZE * FEATURE_SIZE
    K_PAD = ((IN_CHANS * PATCH * PATCH + 127) // 128) * 128   # 588 -> 640

    key = jax.random.PRNGKey(0)
    k_img, k_params = jax.random.split(key)

    gt_image = jax.random.uniform(k_img, (IN_CHANS, 32, 32), jnp.float32)

    params = init_params(
        k_params, in_chans=IN_CHANS, patch=PATCH, embed_dim=EMBED_DIM,
        depth=DEPTH, mlp_ratio=MLP_RATIO, num_reg=NUM_REG,
        num_patches=NUM_PATCHES, k_pad=K_PAD)

    fwd = jax.jit(functools.partial(
        dino_feature_extractor, feature_size=FEATURE_SIZE, patch=PATCH,
        num_heads=NUM_HEADS, num_reg=NUM_REG))

    feats = fwd(params, gt_image)
    feats = jax.block_until_ready(feats)

    assert feats.shape == (EMBED_DIM, FEATURE_SIZE, FEATURE_SIZE), feats.shape
    assert bool(jnp.all(jnp.isfinite(feats)))
    print("KERNEL_OK")
</pallas_src>

<mosaic_0001>
module attributes {stable_mosaic.version = 11 : i64} {
  func.func @kernel(%arg0: i32, %arg1: memref<16x640xbf16, #tpu.memory_space<vmem>>, %arg2: memref<640x128xbf16, #tpu.memory_space<vmem>>, %arg3: memref<16x128xf32, #tpu.memory_space<vmem>>, %arg4: memref<16x128xf32, #tpu.memory_space<vmem>>, %arg5: memref<1x32xf32, #tpu.memory_space<vmem>>, %arg6: memref<2x1x128xf32, #tpu.memory_space<vmem>>, %arg7: memref<2x1x128xf32, #tpu.memory_space<vmem>>, %arg8: memref<2x128x384xbf16, #tpu.memory_space<vmem>>, %arg9: memref<2x1x384xf32, #tpu.memory_space<vmem>>, %arg10: memref<2x128x128xbf16, #tpu.memory_space<vmem>>, %arg11: memref<2x1x128xf32, #tpu.memory_space<vmem>>, %arg12: memref<2x1x128xf32, #tpu.memory_space<vmem>>, %arg13: memref<2x1x128xf32, #tpu.memory_space<vmem>>, %arg14: memref<2x1x128xf32, #tpu.memory_space<vmem>>, %arg15: memref<2x128x512xbf16, #tpu.memory_space<vmem>>, %arg16: memref<2x1x512xf32, #tpu.memory_space<vmem>>, %arg17: memref<2x512x128xbf16, #tpu.memory_space<vmem>>, %arg18: memref<2x1x128xf32, #tpu.memory_space<vmem>>, %arg19: memref<2x1x128xf32, #tpu.memory_space<vmem>>, %arg20: memref<1x128xf32, #tpu.memory_space<vmem>>, %arg21: memref<1x128xf32, #tpu.memory_space<vmem>>, %arg22: memref<32x128xf32, #tpu.memory_space<vmem>>, %arg23: memref<32x128xf32, #tpu.memory_space<vmem>>) attributes {dimension_semantics = [#tpu.dimension_semantics<arbitrary>], iteration_bounds = array<i64: 1>, scalar_prefetch = 0 : i64, scratch_operands = 1 : i64, tpu.core_type = #tpu.core_type<tc>, window_params = [{pipeline_mode = #tpu.pipeline_mode<synchronous>, transform_indices = @transform_0, window_bounds = array<i64: 16, 640>}, {pipeline_mode = #tpu.pipeline_mode<synchronous>, transform_indices = @transform_1, window_bounds = array<i64: 640, 128>}, {pipeline_mode = #tpu.pipeline_mode<synchronous>, transform_indices = @transform_2, window_bounds = array<i64: 16, 128>}, {pipeline_mode = #tpu.pipeline_mode<synchronous>, transform_indices = @transform_3, window_bounds = array<i64: 16, 128>}, {pipeline_mode = #tpu.pipeline_mode<synchronous>, transform_indices = @transform_4, window_bounds = array<i64: 1, 32>}, {pipeline_mode = #tpu.pipeline_mode<synchronous>, transform_indices = @transform_5, window_bounds = array<i64: 2, 1, 128>}, {pipeline_mode = #tpu.pipeline_mode<synchronous>, transform_indices = @transform_6, window_bounds = array<i64: 2, 1, 128>}, {pipeline_mode = #tpu.pipeline_mode<synchronous>, transform_indices = @transform_7, window_bounds = array<i64: 2, 128, 384>}, {pipeline_mode = #tpu.pipeline_mode<synchronous>, transform_indices = @transform_8, window_bounds = array<i64: 2, 1, 384>}, {pipeline_mode = #tpu.pipeline_mode<synchronous>, transform_indices = @transform_9, window_bounds = array<i64: 2, 128, 128>}, {pipeline_mode = #tpu.pipeline_mode<synchronous>, transform_indices = @transform_10, window_bounds = array<i64: 2, 1, 128>}, {pipeline_mode = #tpu.pipeline_mode<synchronous>, transform_indices = @transform_11, window_bounds = array<i64: 2, 1, 128>}, {pipeline_mode = #tpu.pipeline_mode<synchronous>, transform_indices = @transform_12, window_bounds = array<i64: 2, 1, 128>}, {pipeline_mode = #tpu.pipeline_mode<synchronous>, transform_indices = @transform_13, window_bounds = array<i64: 2, 1, 128>}, {pipeline_mode = #tpu.pipeline_mode<synchronous>, transform_indices = @transform_14, window_bounds = array<i64: 2, 128, 512>}, {pipeline_mode = #tpu.pipeline_mode<synchronous>, transform_indices = @transform_15, window_bounds = array<i64: 2, 1, 512>}, {pipeline_mode = #tpu.pipeline_mode<synchronous>, transform_indices = @transform_16, window_bounds = array<i64: 2, 512, 128>}, {pipeline_mode = #tpu.pipeline_mode<synchronous>, transform_indices = @transform_17, window_bounds = array<i64: 2, 1, 128>}, {pipeline_mode = #tpu.pipeline_mode<synchronous>, transform_indices = @transform_18, window_bounds = array<i64: 2, 1, 128>}, {pipeline_mode = #tpu.pipeline_mode<synchronous>, transform_indices = @transform_19, window_bounds = array<i64: 1, 128>}, {pipeline_mode = #tpu.pipeline_mode<synchronous>, transform_indices = @transform_20, window_bounds = array<i64: 1, 128>}, {pipeline_mode = #tpu.pipeline_mode<synchronous>, transform_indices = @transform_21, window_bounds = array<i64: 32, 128>}]} {
    %c0 = arith.constant 0 : index
    %c0_0 = arith.constant 0 : index
    %0 = vector.load %arg1[%c0, %c0_0] : memref<16x640xbf16, #tpu.memory_space<vmem>>, vector<16x640xbf16>
    %c0_1 = arith.constant 0 : index
    %c0_2 = arith.constant 0 : index
    %1 = vector.load %arg2[%c0_1, %c0_2] : memref<640x128xbf16, #tpu.memory_space<vmem>>, vector<640x128xbf16>
    %cst = arith.constant dense<0.000000e+00> : vector<16x128xf32>
    %2 = tpu.matmul %0, %1, %cst {dimension_numbers = #tpu.dot_dimension_numbers<[1], [0], [0], [1], [0, 0, 1, 1], [], []>} : vector<16x640xbf16>, vector<640x128xbf16>, vector<16x128xf32> -> vector<16x128xf32>
    %c0_3 = arith.constant 0 : index
    %c0_4 = arith.constant 0 : index
    %3 = vector.load %arg3[%c0_3, %c0_4] : memref<16x128xf32, #tpu.memory_space<vmem>>, vector<16x128xf32>
    %4 = arith.addf %2, %3 : vector<16x128xf32>
    %c0_5 = arith.constant 0 : index
    %c0_6 = arith.constant 0 : index
    %5 = vector.load %arg4[%c0_5, %c0_6] : memref<16x128xf32, #tpu.memory_space<vmem>>, vector<16x128xf32>
    %6 = tpu.concatenate %4, %5 in 0 : vector<16x128xf32>, vector<16x128xf32> -> vector<32x128xf32>
    %c0_7 = arith.constant 0 : index
    %c0_8 = arith.constant 0 : index
    %7 = vector.load %arg5[%c0_7, %c0_8] : memref<1x32xf32, #tpu.memory_space<vmem>>, vector<1x32xf32>
    %c0_9 = arith.constant 0 : index
    %c0_10 = arith.constant 0 : index
    %c0_11 = arith.constant 0 : index
    %8 = vector.load %arg6[%c0_9, %c0_10, %c0_11] : memref<2x1x128xf32, #tpu.memory_space<vmem>>, vector<1x1x128xf32>
    %9 = vector.shape_cast %8 : vector<1x1x128xf32> to vector<1x128xf32>
    %c0_12 = arith.constant 0 : index
    %c0_13 = arith.constant 0 : index
    %c0_14 = arith.constant 0 : index
    %10 = vector.load %arg7[%c0_12, %c0_13, %c0_14] : memref<2x1x128xf32, #tpu.memory_space<vmem>>, vector<1x1x128xf32>
    %11 = vector.shape_cast %10 : vector<1x1x128xf32> to vector<1x128xf32>
    %cst_15 = arith.constant dense<0.000000e+00> : vector<32xf32>
    %12 = vector.multi_reduction <add>, %6, %cst_15 [1] : vector<32x128xf32> to vector<32xf32>
    %13 = vector.shape_cast %12 : vector<32xf32> to vector<32x1xf32>
    %cst_16 = arith.constant 1.280000e+02 : f32
    %14 = vector.broadcast %cst_16 : f32 to vector<32x1xf32>
    %15 = arith.divf %13, %14 : vector<32x1xf32>
    %16 = vector.broadcast %15 : vector<32x1xf32> to vector<32x128xf32>
    %17 = arith.subf %6, %16 : vector<32x128xf32>
    %18 = arith.mulf %17, %17 : vector<32x128xf32>
    %cst_17 = arith.constant dense<0.000000e+00> : vector<32xf32>
    %19 = vector.multi_reduction <add>, %18, %cst_17 [1] : vector<32x128xf32> to vector<32xf32>
    %20 = vector.shape_cast %19 : vector<32xf32> to vector<32x1xf32>
    %cst_18 = arith.constant 1.280000e+02 : f32
    %21 = vector.broadcast %cst_18 : f32 to vector<32x1xf32>
    %22 = arith.divf %20, %21 : vector<32x1xf32>
    %23 = vector.broadcast %15 : vector<32x1xf32> to vector<32x128xf32>
    %24 = arith.subf %6, %23 : vector<32x128xf32>
    %cst_19 = arith.constant 9.99999997E-7 : f32
    %25 = vector.broadcast %cst_19 : f32 to vector<32x1xf32>
    %26 = arith.addf %22, %25 : vector<32x1xf32>
    %27 = math.rsqrt %26 : vector<32x1xf32>
    %28 = vector.broadcast %27 : vector<32x1xf32> to vector<32x128xf32>
    %29 = arith.mulf %24, %28 : vector<32x128xf32>
    %30 = vector.broadcast %9 : vector<1x128xf32> to vector<32x128xf32>
    %31 = arith.mulf %29, %30 : vector<32x128xf32>
    %32 = vector.broadcast %11 : vector<1x128xf32> to vector<32x128xf32>
    %33 = arith.addf %31, %32 : vector<32x128xf32>
    %34 = arith.truncf %33 : vector<32x128xf32> to vector<32x128xbf16>
    %c0_20 = arith.constant 0 : index
    %c0_21 = arith.constant 0 : index
    %c0_22 = arith.constant 0 : index
    %35 = vector.load %arg8[%c0_20, %c0_21, %c0_22] : memref<2x128x384xbf16, #tpu.memory_space<vmem>>, vector<1x128x384xbf16>
    %36 = vector.shape_cast %35 : vector<1x128x384xbf16> to vector<128x384xbf16>
    %cst_23 = arith.constant dense<0.000000e+00> : vector<32x384xf32>
    %37 = tpu.matmul %34, %36, %cst_23 {dimension_numbers = #tpu.dot_dimension_numbers<[1], [0], [0], [1], [0, 0, 1, 1], [], []>} : vector<32x128xbf16>, vector<128x384xbf16>, vector<32x384xf32> -> vector<32x384xf32>
    %c0_24 = arith.constant 0 : index
    %c0_25 = arith.constant 0 : index
    %c0_26 = arith.constant 0 : index
    %38 = vector.load %arg9[%c0_24, %c0_25, %c0_26] : memref<2x1x384xf32, #tpu.memory_space<vmem>>, vector<1x1x384xf32>
    %39 = vector.shape_cast %38 : vector<1x1x384xf32> to vector<1x384xf32>
    %40 = vector.broadcast %39 : vector<1x384xf32> to vector<32x384xf32>
    %41 = arith.addf %37, %40 : vector<32x384xf32>
    %42 = arith.truncf %41 : vector<32x384xf32> to vector<32x384xbf16>
    %43 = vector.extract_strided_slice %42 {offsets = [0, 0], sizes = [32, 64], strides = [1, 1]} : vector<32x384xbf16> to vector<32x64xbf16>
    %44 = vector.extract_strided_slice %42 {offsets = [0, 128], sizes = [32, 64], strides = [1, 1]} : vector<32x384xbf16> to vector<32x64xbf16>
    %45 = vector.extract_strided_slice %42 {offsets = [0, 256], sizes = [32, 64], strides = [1, 1]} : vector<32x384xbf16> to vector<32x64xbf16>
    %cst_27 = arith.constant dense<0.000000e+00> : vector<32x32xf32>
    %46 = tpu.matmul %43, %44, %cst_27 {dimension_numbers = #tpu.dot_dimension_numbers<[1], [1], [0], [0], [0, 0, 1, 0], [], []>} : vector<32x64xbf16>, vector<32x64xbf16>, vector<32x32xf32> -> vector<32x32xf32>
    %cst_28 = arith.constant 1.250000e-01 : f32
    %47 = vector.broadcast %cst_28 : f32 to vector<32x32xf32>
    %48 = arith.mulf %46, %47 : vector<32x32xf32>
    %49 = vector.broadcast %7 : vector<1x32xf32> to vector<32x32xf32>
    %50 = arith.addf %48, %49 : vector<32x32xf32>
    %cst_29 = arith.constant dense<0xFF800000> : vector<32xf32>
    %51 = vector.multi_reduction <maximumf>, %50, %cst_29 [1] : vector<32x32xf32> to vector<32xf32>
    %52 = vector.shape_cast %51 : vector<32xf32> to vector<32x1xf32>
    %53 = vector.broadcast %52 : vector<32x1xf32> to vector<32x32xf32>
    %54 = arith.subf %50, %53 : vector<32x32xf32>
    %55 = math.exp %54 : vector<32x32xf32>
    %cst_30 = arith.constant dense<0.000000e+00> : vector<32xf32>
    %56 = vector.multi_reduction <add>, %55, %cst_30 [1] : vector<32x32xf32> to vector<32xf32>
    %57 = vector.shape_cast %56 : vector<32xf32> to vector<32x1xf32>
    %58 = tpu.reciprocal %57 {approx = true} : vector<32x1xf32> -> vector<32x1xf32>
    %59 = vector.broadcast %58 : vector<32x1xf32> to vector<32x32xf32>
    %60 = arith.mulf %55, %59 : vector<32x32xf32>
    %61 = arith.truncf %60 : vector<32x32xf32> to vector<32x32xbf16>
    %cst_31 = arith.constant dense<0.000000e+00> : vector<32x64xf32>
    %62 = tpu.matmul %61, %45, %cst_31 {dimension_numbers = #tpu.dot_dimension_numbers<[1], [0], [0], [1], [0, 0, 1, 1], [], []>} : vector<32x32xbf16>, vector<32x64xbf16>, vector<32x64xf32> -> vector<32x64xf32>
    %c0_32 = arith.constant 0 : index
    %c0_33 = arith.constant 0 : index
    %63 = vector.load %arg23[%c0_32, %c0_33] : memref<32x128xf32, #tpu.memory_space<vmem>>, vector<32x64xf32>
    tpu.vector_store %arg23[%c0_32, %c0_33], %62 {strides = array<i32>} : memref<32x128xf32, #tpu.memory_space<vmem>>, vector<32x64xf32>,
    %64 = vector.extract_strided_slice %42 {offsets = [0, 64], sizes = [32, 64], strides = [1, 1]} : vector<32x384xbf16> to vector<32x64xbf16>
    %65 = vector.extract_strided_slice %42 {offsets = [0, 192], sizes = [32, 64], strides = [1, 1]} : vector<32x384xbf16> to vector<32x64xbf16>
    %66 = vector.extract_strided_slice %42 {offsets = [0, 320], sizes = [32, 64], strides = [1, 1]} : vector<32x384xbf16> to vector<32x64xbf16>
    %cst_34 = arith.constant dense<0.000000e+00> : vector<32x32xf32>
    %67 = tpu.matmul %64, %65, %cst_34 {dimension_numbers = #tpu.dot_dimension_numbers<[1], [1], [0], [0], [0, 0, 1, 0], [], []>} : vector<32x64xbf16>, vector<32x64xbf16>, vector<32x32xf32> -> vector<32x32xf32>
    %cst_35 = arith.constant 1.250000e-01 : f32
    %68 = vector.broadcast %cst_35 : f32 to vector<32x32xf32>
    %69 = arith.mulf %67, %68 : vector<32x32xf32>
    %70 = vector.broadcast %7 : vector<1x32xf32> to vector<32x32xf32>
    %71 = arith.addf %69, %70 : vector<32x32xf32>
    %cst_36 = arith.constant dense<0xFF800000> : vector<32xf32>
    %72 = vector.multi_reduction <maximumf>, %71, %cst_36 [1] : vector<32x32xf32> to vector<32xf32>
    %73 = vector.shape_cast %72 : vector<32xf32> to vector<32x1xf32>
    %74 = vector.broadcast %73 : vector<32x1xf32> to vector<32x32xf32>
    %75 = arith.subf %71, %74 : vector<32x32xf32>
    %76 = math.exp %75 : vector<32x32xf32>
    %cst_37 = arith.constant dense<0.000000e+00> : vector<32xf32>
    %77 = vector.multi_reduction <add>, %76, %cst_37 [1] : vector<32x32xf32> to vector<32xf32>
    %78 = vector.shape_cast %77 : vector<32xf32> to vector<32x1xf32>
    %79 = tpu.reciprocal %78 {approx = true} : vector<32x1xf32> -> vector<32x1xf32>
    %80 = vector.broadcast %79 : vector<32x1xf32> to vector<32x32xf32>
    %81 = arith.mulf %76, %80 : vector<32x32xf32>
    %82 = arith.truncf %81 : vector<32x32xf32> to vector<32x32xbf16>
    %cst_38 = arith.constant dense<0.000000e+00> : vector<32x64xf32>
    %83 = tpu.matmul %82, %66, %cst_38 {dimension_numbers = #tpu.dot_dimension_numbers<[1], [0], [0], [1], [0, 0, 1, 1], [], []>} : vector<32x32xbf16>, vector<32x64xbf16>, vector<32x64xf32> -> vector<32x64xf32>
    %c0_39 = arith.constant 0 : index
    %c64 = arith.constant 64 : index
    %84 = vector.load %arg23[%c0_39, %c64] : memref<32x128xf32, #tpu.memory_space<vmem>>, vector<32x64xf32>
    tpu.vector_store %arg23[%c0_39, %c64], %83 {strides = array<i32>} : memref<32x128xf32, #tpu.memory_space<vmem>>, vector<32x64xf32>,
    %c0_40 = arith.constant 0 : index
    %c0_41 = arith.constant 0 : index
    %85 = vector.load %arg23[%c0_40, %c0_41] : memref<32x128xf32, #tpu.memory_space<vmem>>, vector<32x128xf32>
    %86 = arith.truncf %85 : vector<32x128xf32> to vector<32x128xbf16>
    %c0_42 = arith.constant 0 : index
    %c0_43 = arith.constant 0 : index
    %c0_44 = arith.constant 0 : index
    %87 = vector.load %arg10[%c0_42, %c0_43, %c0_44] : memref<2x128x128xbf16, #tpu.memory_space<vmem>>, vector<1x128x128xbf16>
    %88 = vector.shape_cast %87 : vector<1x128x128xbf16> to vector<128x128xbf16>
    %cst_45 = arith.constant dense<0.000000e+00> : vector<32x128xf32>
    %89 = tpu.matmul %86, %88, %cst_45 {dimension_numbers = #tpu.dot_dimension_numbers<[1], [0], [0], [1], [0, 0, 1, 1], [], []>} : vector<32x128xbf16>, vector<128x128xbf16>, vector<32x128xf32> -> vector<32x128xf32>
    %c0_46 = arith.constant 0 : index
    %c0_47 = arith.constant 0 : index
    %c0_48 = arith.constant 0 : index
    %90 = vector.load %arg11[%c0_46, %c0_47, %c0_48] : memref<2x1x128xf32, #tpu.memory_space<vmem>>, vector<1x1x128xf32>
    %91 = vector.shape_cast %90 : vector<1x1x128xf32> to vector<1x128xf32>
    %92 = vector.broadcast %91 : vector<1x128xf32> to vector<32x128xf32>
    %93 = arith.addf %89, %92 : vector<32x128xf32>
    %c0_49 = arith.constant 0 : index
    %c0_50 = arith.constant 0 : index
    %c0_51 = arith.constant 0 : index
    %94 = vector.load %arg12[%c0_49, %c0_50, %c0_51] : memref<2x1x128xf32, #tpu.memory_space<vmem>>, vector<1x1x128xf32>
    %95 = vector.shape_cast %94 : vector<1x1x128xf32> to vector<1x128xf32>
    %96 = vector.broadcast %95 : vector<1x128xf32> to vector<32x128xf32>
    %97 = arith.mulf %96, %93 : vector<32x128xf32>
    %98 = arith.addf %6, %97 : vector<32x128xf32>
    %c0_52 = arith.constant 0 : index
    %c0_53 = arith.constant 0 : index
    %c0_54 = arith.constant 0 : index
    %99 = vector.load %arg13[%c0_52, %c0_53, %c0_54] : memref<2x1x128xf32, #tpu.memory_space<vmem>>, vector<1x1x128xf32>
    %100 = vector.shape_cast %99 : vector<1x1x128xf32> to vector<1x128xf32>
    %c0_55 = arith.constant 0 : index
    %c0_56 = arith.constant 0 : index
    %c0_57 = arith.constant 0 : index
    %101 = vector.load %arg14[%c0_55, %c0_56, %c0_57] : memref<2x1x128xf32, #tpu.memory_space<vmem>>, vector<1x1x128xf32>
    %102 = vector.shape_cast %101 : vector<1x1x128xf32> to vector<1x128xf32>
    %cst_58 = arith.constant dense<0.000000e+00> : vector<32xf32>
    %103 = vector.multi_reduction <add>, %98, %cst_58 [1] : vector<32x128xf32> to vector<32xf32>
    %104 = vector.shape_cast %103 : vector<32xf32> to vector<32x1xf32>
    %cst_59 = arith.constant 1.280000e+02 : f32
    %105 = vector.broadcast %cst_59 : f32 to vector<32x1xf32>
    %106 = arith.divf %104, %105 : vector<32x1xf32>
    %107 = vector.broadcast %106 : vector<32x1xf32> to vector<32x128xf32>
    %108 = arith.subf %98, %107 : vector<32x128xf32>
    %109 = arith.mulf %108, %108 : vector<32x128xf32>
    %cst_60 = arith.constant dense<0.000000e+00> : vector<32xf32>
    %110 = vector.multi_reduction <add>, %109, %cst_60 [1] : vector<32x128xf32> to vector<32xf32>
    %111 = vector.shape_cast %110 : vector<32xf32> to vector<32x1xf32>
    %cst_61 = arith.constant 1.280000e+02 : f32
    %112 = vector.broadcast %cst_61 : f32 to vector<32x1xf32>
    %113 = arith.divf %111, %112 : vector<32x1xf32>
    %114 = vector.broadcast %106 : vector<32x1xf32> to vector<32x128xf32>
    %115 = arith.subf %98, %114 : vector<32x128xf32>
    %cst_62 = arith.constant 9.99999997E-7 : f32
    %116 = vector.broadcast %cst_62 : f32 to vector<32x1xf32>
    %117 = arith.addf %113, %116 : vector<32x1xf32>
    %118 = math.rsqrt %117 : vector<32x1xf32>
    %119 = vector.broadcast %118 : vector<32x1xf32> to vector<32x128xf32>
    %120 = arith.mulf %115, %119 : vector<32x128xf32>
    %121 = vector.broadcast %100 : vector<1x128xf32> to vector<32x128xf32>
    %122 = arith.mulf %120, %121 : vector<32x128xf32>
    %123 = vector.broadcast %102 : vector<1x128xf32> to vector<32x128xf32>
    %124 = arith.addf %122, %123 : vector<32x128xf32>
    %125 = arith.truncf %124 : vector<32x128xf32> to vector<32x128xbf16>
    %c0_63 = arith.constant 0 : index
    %c0_64 = arith.constant 0 : index
    %c0_65 = arith.constant 0 : index
    %126 = vector.load %arg15[%c0_63, %c0_64, %c0_65] : memref<2x128x512xbf16, #tpu.memory_space<vmem>>, vector<1x128x512xbf16>
    %127 = vector.shape_cast %126 : vector<1x128x512xbf16> to vector<128x512xbf16>
    %cst_66 = arith.constant dense<0.000000e+00> : vector<32x512xf32>
    %128 = tpu.matmul %125, %127, %cst_66 {dimension_numbers = #tpu.dot_dimension_numbers<[1], [0], [0], [1], [0, 0, 1, 1], [], []>} : vector<32x128xbf16>, vector<128x512xbf16>, vector<32x512xf32> -> vector<32x512xf32>
    %c0_67 = arith.constant 0 : index
    %c0_68 = arith.constant 0 : index
    %c0_69 = arith.constant 0 : index
    %129 = vector.load %arg16[%c0_67, %c0_68, %c0_69] : memref<2x1x512xf32, #tpu.memory_space<vmem>>, vector<1x1x512xf32>
    %130 = vector.shape_cast %129 : vector<1x1x512xf32> to vector<1x512xf32>
    %131 = vector.broadcast %130 : vector<1x512xf32> to vector<32x512xf32>
    %132 = arith.addf %128, %131 : vector<32x512xf32>
    %133 = arith.mulf %132, %132 : vector<32x512xf32>
    %134 = arith.mulf %132, %133 : vector<32x512xf32>
    %cst_70 = arith.constant 4.471500e-02 : f32
    %135 = vector.broadcast %cst_70 : f32 to vector<32x512xf32>
    %136 = arith.mulf %135, %134 : vector<32x512xf32>
    %137 = arith.addf %132, %136 : vector<32x512xf32>
    %cst_71 = arith.constant 0.797884583 : f32
    %138 = vector.broadcast %cst_71 : f32 to vector<32x512xf32>
    %139 = arith.mulf %138, %137 : vector<32x512xf32>
    %140 = math.tanh %139 : vector<32x512xf32>
    %cst_72 = arith.constant 1.000000e+00 : f32
    %141 = vector.broadcast %cst_72 : f32 to vector<32x512xf32>
    %142 = arith.addf %141, %140 : vector<32x512xf32>
    %cst_73 = arith.constant 5.000000e-01 : f32
    %143 = vector.broadcast %cst_73 : f32 to vector<32x512xf32>
    %144 = arith.mulf %143, %142 : vector<32x512xf32>
    %145 = arith.mulf %132, %144 : vector<32x512xf32>
    %146 = arith.truncf %145 : vector<32x512xf32> to vector<32x512xbf16>
    %c0_74 = arith.constant 0 : index
    %c0_75 = arith.constant 0 : index
    %c0_76 = arith.constant 0 : index
    %147 = vector.load %arg17[%c0_74, %c0_75, %c0_76] : memref<2x512x128xbf16, #tpu.memory_space<vmem>>, vector<1x512x128xbf16>
    %148 = vector.shape_cast %147 : vector<1x512x128xbf16> to vector<512x128xbf16>
    %cst_77 = arith.constant dense<0.000000e+00> : vector<32x128xf32>
    %149 = tpu.matmul %146, %148, %cst_77 {dimension_numbers = #tpu.dot_dimension_numbers<[1], [0], [0], [1], [0, 0, 1, 1], [], []>} : vector<32x512xbf16>, vector<512x128xbf16>, vector<32x128xf32> -> vector<32x128xf32>
    %c0_78 = arith.constant 0 : index
    %c0_79 = arith.constant 0 : index
    %c0_80 = arith.constant 0 : index
    %150 = vector.load %arg18[%c0_78, %c0_79, %c0_80] : memref<2x1x128xf32, #tpu.memory_space<vmem>>, vector<1x1x128xf32>
    %151 = vector.shape_cast %150 : vector<1x1x128xf32> to vector<1x128xf32>
    %152 = vector.broadcast %151 : vector<1x128xf32> to vector<32x128xf32>
    %153 = arith.addf %149, %152 : vector<32x128xf32>
    %c0_81 = arith.constant 0 : index
    %c0_82 = arith.constant 0 : index
    %c0_83 = arith.constant 0 : index
    %154 = vector.load %arg19[%c0_81, %c0_82, %c0_83] : memref<2x1x128xf32, #tpu.memory_space<vmem>>, vector<1x1x128xf32>
    %155 = vector.shape_cast %154 : vector<1x1x128xf32> to vector<1x128xf32>
    %156 = vector.broadcast %155 : vector<1x128xf32> to vector<32x128xf32>
    %157 = arith.mulf %156, %153 : vector<32x128xf32>
    %158 = arith.addf %98, %157 : vector<32x128xf32>
    %c1 = arith.constant 1 : index
    %c0_84 = arith.constant 0 : index
    %c0_85 = arith.constant 0 : index
    %159 = vector.load %arg6[%c1, %c0_84, %c0_85] : memref<2x1x128xf32, #tpu.memory_space<vmem>>, vector<1x1x128xf32>
    %160 = vector.shape_cast %159 : vector<1x1x128xf32> to vector<1x128xf32>
    %c1_86 = arith.constant 1 : index
    %c0_87 = arith.constant 0 : index
    %c0_88 = arith.constant 0 : index
    %161 = vector.load %arg7[%c1_86, %c0_87, %c0_88] : memref<2x1x128xf32, #tpu.memory_space<vmem>>, vector<1x1x128xf32>
    %162 = vector.shape_cast %161 : vector<1x1x128xf32> to vector<1x128xf32>
    %cst_89 = arith.constant dense<0.000000e+00> : vector<32xf32>
    %163 = vector.multi_reduction <add>, %158, %cst_89 [1] : vector<32x128xf32> to vector<32xf32>
    %164 = vector.shape_cast %163 : vector<32xf32> to vector<32x1xf32>
    %cst_90 = arith.constant 1.280000e+02 : f32
    %165 = vector.broadcast %cst_90 : f32 to vector<32x1xf32>
    %166 = arith.divf %164, %165 : vector<32x1xf32>
    %167 = vector.broadcast %166 : vector<32x1xf32> to vector<32x128xf32>
    %168 = arith.subf %158, %167 : vector<32x128xf32>
    %169 = arith.mulf %168, %168 : vector<32x128xf32>
    %cst_91 = arith.constant dense<0.000000e+00> : vector<32xf32>
    %170 = vector.multi_reduction <add>, %169, %cst_91 [1] : vector<32x128xf32> to vector<32xf32>
    %171 = vector.shape_cast %170 : vector<32xf32> to vector<32x1xf32>
    %cst_92 = arith.constant 1.280000e+02 : f32
    %172 = vector.broadcast %cst_92 : f32 to vector<32x1xf32>
    %173 = arith.divf %171, %172 : vector<32x1xf32>
    %174 = vector.broadcast %166 : vector<32x1xf32> to vector<32x128xf32>
    %175 = arith.subf %158, %174 : vector<32x128xf32>
    %cst_93 = arith.constant 9.99999997E-7 : f32
    %176 = vector.broadcast %cst_93 : f32 to vector<32x1xf32>
    %177 = arith.addf %173, %176 : vector<32x1xf32>
    %178 = math.rsqrt %177 : vector<32x1xf32>
    %179 = vector.broadcast %178 : vector<32x1xf32> to vector<32x128xf32>
    %180 = arith.mulf %175, %179 : vector<32x128xf32>
    %181 = vector.broadcast %160 : vector<1x128xf32> to vector<32x128xf32>
    %182 = arith.mulf %180, %181 : vector<32x128xf32>
    %183 = vector.broadcast %162 : vector<1x128xf32> to vector<32x128xf32>
    %184 = arith.addf %182, %183 : vector<32x128xf32>
    %185 = arith.truncf %184 : vector<32x128xf32> to vector<32x128xbf16>
    %c1_94 = arith.constant 1 : index
    %c0_95 = arith.constant 0 : index
    %c0_96 = arith.constant 0 : index
    %186 = vector.load %arg8[%c1_94, %c0_95, %c0_96] : memref<2x128x384xbf16, #tpu.memory_space<vmem>>, vector<1x128x384xbf16>
    %187 = vector.shape_cast %186 : vector<1x128x384xbf16> to vector<128x384xbf16>
    %cst_97 = arith.constant dense<0.000000e+00> : vector<32x384xf32>
    %188 = tpu.matmul %185, %187, %cst_97 {dimension_numbers = #tpu.dot_dimension_numbers<[1], [0], [0], [1], [0, 0, 1, 1], [], []>} : vector<32x128xbf16>, vector<128x384xbf16>, vector<32x384xf32> -> vector<32x384xf32>
    %c1_98 = arith.constant 1 : index
    %c0_99 = arith.constant 0 : index
    %c0_100 = arith.constant 0 : index
    %189 = vector.load %arg9[%c1_98, %c0_99, %c0_100] : memref<2x1x384xf32, #tpu.memory_space<vmem>>, vector<1x1x384xf32>
    %190 = vector.shape_cast %189 : vector<1x1x384xf32> to vector<1x384xf32>
    %191 = vector.broadcast %190 : vector<1x384xf32> to vector<32x384xf32>
    %192 = arith.addf %188, %191 : vector<32x384xf32>
    %193 = arith.truncf %192 : vector<32x384xf32> to vector<32x384xbf16>
    %194 = vector.extract_strided_slice %193 {offsets = [0, 0], sizes = [32, 64], strides = [1, 1]} : vector<32x384xbf16> to vector<32x64xbf16>
    %195 = vector.extract_strided_slice %193 {offsets = [0, 128], sizes = [32, 64], strides = [1, 1]} : vector<32x384xbf16> to vector<32x64xbf16>
    %196 = vector.extract_strided_slice %193 {offsets = [0, 256], sizes = [32, 64], strides = [1, 1]} : vector<32x384xbf16> to vector<32x64xbf16>
    %cst_101 = arith.constant dense<0.000000e+00> : vector<32x32xf32>
    %197 = tpu.matmul %194, %195, %cst_101 {dimension_numbers = #tpu.dot_dimension_numbers<[1], [1], [0], [0], [0, 0, 1, 0], [], []>} : vector<32x64xbf16>, vector<32x64xbf16>, vector<32x32xf32> -> vector<32x32xf32>
    %cst_102 = arith.constant 1.250000e-01 : f32
    %198 = vector.broadcast %cst_102 : f32 to vector<32x32xf32>
    %199 = arith.mulf %197, %198 : vector<32x32xf32>
    %200 = vector.broadcast %7 : vector<1x32xf32> to vector<32x32xf32>
    %201 = arith.addf %199, %200 : vector<32x32xf32>
    %cst_103 = arith.constant dense<0xFF800000> : vector<32xf32>
    %202 = vector.multi_reduction <maximumf>, %201, %cst_103 [1] : vector<32x32xf32> to vector<32xf32>
    %203 = vector.shape_cast %202 : vector<32xf32> to vector<32x1xf32>
    %204 = vector.broadcast %203 : vector<32x1xf32> to vector<32x32xf32>
    %205 = arith.subf %201, %204 : vector<32x32xf32>
    %206 = math.exp %205 : vector<32x32xf32>
    %cst_104 = arith.constant dense<0.000000e+00> : vector<32xf32>
    %207 = vector.multi_reduction <add>, %206, %cst_104 [1] : vector<32x32xf32> to vector<32xf32>
    %208 = vector.shape_cast %207 : vector<32xf32> to vector<32x1xf32>
    %209 = tpu.reciprocal %208 {approx = true} : vector<32x1xf32> -> vector<32x1xf32>
    %210 = vector.broadcast %209 : vector<32x1xf32> to vector<32x32xf32>
    %211 = arith.mulf %206, %210 : vector<32x32xf32>
    %212 = arith.truncf %211 : vector<32x32xf32> to vector<32x32xbf16>
    %cst_105 = arith.constant dense<0.000000e+00> : vector<32x64xf32>
    %213 = tpu.matmul %212, %196, %cst_105 {dimension_numbers = #tpu.dot_dimension_numbers<[1], [0], [0], [1], [0, 0, 1, 1], [], []>} : vector<32x32xbf16>, vector<32x64xbf16>, vector<32x64xf32> -> vector<32x64xf32>
    %c0_106 = arith.constant 0 : index
    %c0_107 = arith.constant 0 : index
    %214 = vector.load %arg23[%c0_106, %c0_107] : memref<32x128xf32, #tpu.memory_space<vmem>>, vector<32x64xf32>
    tpu.vector_store %arg23[%c0_106, %c0_107], %213 {strides = array<i32>} : memref<32x128xf32, #tpu.memory_space<vmem>>, vector<32x64xf32>,
    %215 = vector.extract_strided_slice %193 {offsets = [0, 64], sizes = [32, 64], strides = [1, 1]} : vector<32x384xbf16> to vector<32x64xbf16>
    %216 = vector.extract_strided_slice %193 {offsets = [0, 192], sizes = [32, 64], strides = [1, 1]} : vector<32x384xbf16> to vector<32x64xbf16>
    %217 = vector.extract_strided_slice %193 {offsets = [0, 320], sizes = [32, 64], strides = [1, 1]} : vector<32x384xbf16> to vector<32x64xbf16>
    %cst_108 = arith.constant dense<0.000000e+00> : vector<32x32xf32>
    %218 = tpu.matmul %215, %216, %cst_108 {dimension_numbers = #tpu.dot_dimension_numbers<[1], [1], [0], [0], [0, 0, 1, 0], [], []>} : vector<32x64xbf16>, vector<32x64xbf16>, vector<32x32xf32> -> vector<32x32xf32>
    %cst_109 = arith.constant 1.250000e-01 : f32
    %219 = vector.broadcast %cst_109 : f32 to vector<32x32xf32>
    %220 = arith.mulf %218, %219 : vector<32x32xf32>
    %221 = vector.broadcast %7 : vector<1x32xf32> to vector<32x32xf32>
    %222 = arith.addf %220, %221 : vector<32x32xf32>
    %cst_110 = arith.constant dense<0xFF800000> : vector<32xf32>
    %223 = vector.multi_reduction <maximumf>, %222, %cst_110 [1] : vector<32x32xf32> to vector<32xf32>
    %224 = vector.shape_cast %223 : vector<32xf32> to vector<32x1xf32>
    %225 = vector.broadcast %224 : vector<32x1xf32> to vector<32x32xf32>
    %226 = arith.subf %222, %225 : vector<32x32xf32>
    %227 = math.exp %226 : vector<32x32xf32>
    %cst_111 = arith.constant dense<0.000000e+00> : vector<32xf32>
    %228 = vector.multi_reduction <add>, %227, %cst_111 [1] : vector<32x32xf32> to vector<32xf32>
    %229 = vector.shape_cast %228 : vector<32xf32> to vector<32x1xf32>
    %230 = tpu.reciprocal %229 {approx = true} : vector<32x1xf32> -> vector<32x1xf32>
    %231 = vector.broadcast %230 : vector<32x1xf32> to vector<32x32xf32>
    %232 = arith.mulf %227, %231 : vector<32x32xf32>
    %233 = arith.truncf %232 : vector<32x32xf32> to vector<32x32xbf16>
    %cst_112 = arith.constant dense<0.000000e+00> : vector<32x64xf32>
    %234 = tpu.matmul %233, %217, %cst_112 {dimension_numbers = #tpu.dot_dimension_numbers<[1], [0], [0], [1], [0, 0, 1, 1], [], []>} : vector<32x32xbf16>, vector<32x64xbf16>, vector<32x64xf32> -> vector<32x64xf32>
    %c0_113 = arith.constant 0 : index
    %c64_114 = arith.constant 64 : index
    %235 = vector.load %arg23[%c0_113, %c64_114] : memref<32x128xf32, #tpu.memory_space<vmem>>, vector<32x64xf32>
    tpu.vector_store %arg23[%c0_113, %c64_114], %234 {strides = array<i32>} : memref<32x128xf32, #tpu.memory_space<vmem>>, vector<32x64xf32>,
    %c0_115 = arith.constant 0 : index
    %c0_116 = arith.constant 0 : index
    %236 = vector.load %arg23[%c0_115, %c0_116] : memref<32x128xf32, #tpu.memory_space<vmem>>, vector<32x128xf32>
    %237 = arith.truncf %236 : vector<32x128xf32> to vector<32x128xbf16>
    %c1_117 = arith.constant 1 : index
    %c0_118 = arith.constant 0 : index
    %c0_119 = arith.constant 0 : index
    %238 = vector.load %arg10[%c1_117, %c0_118, %c0_119] : memref<2x128x128xbf16, #tpu.memory_space<vmem>>, vector<1x128x128xbf16>
    %239 = vector.shape_cast %238 : vector<1x128x128xbf16> to vector<128x128xbf16>
    %cst_120 = arith.constant dense<0.000000e+00> : vector<32x128xf32>
    %240 = tpu.matmul %237, %239, %cst_120 {dimension_numbers = #tpu.dot_dimension_numbers<[1], [0], [0], [1], [0, 0, 1, 1], [], []>} : vector<32x128xbf16>, vector<128x128xbf16>, vector<32x128xf32> -> vector<32x128xf32>
    %c1_121 = arith.constant 1 : index
    %c0_122 = arith.constant 0 : index
    %c0_123 = arith.constant 0 : index
    %241 = vector.load %arg11[%c1_121, %c0_122, %c0_123] : memref<2x1x128xf32, #tpu.memory_space<vmem>>, vector<1x1x128xf32>
    %242 = vector.shape_cast %241 : vector<1x1x128xf32> to vector<1x128xf32>
    %243 = vector.broadcast %242 : vector<1x128xf32> to vector<32x128xf32>
    %244 = arith.addf %240, %243 : vector<32x128xf32>
    %c1_124 = arith.constant 1 : index
    %c0_125 = arith.constant 0 : index
    %c0_126 = arith.constant 0 : index
    %245 = vector.load %arg12[%c1_124, %c0_125, %c0_126] : memref<2x1x128xf32, #tpu.memory_space<vmem>>, vector<1x1x128xf32>
    %246 = vector.shape_cast %245 : vector<1x1x128xf32> to vector<1x128xf32>
    %247 = vector.broadcast %246 : vector<1x128xf32> to vector<32x128xf32>
    %248 = arith.mulf %247, %244 : vector<32x128xf32>
    %249 = arith.addf %158, %248 : vector<32x128xf32>
    %c1_127 = arith.constant 1 : index
    %c0_128 = arith.constant 0 : index
    %c0_129 = arith.constant 0 : index
    %250 = vector.load %arg13[%c1_127, %c0_128, %c0_129] : memref<2x1x128xf32, #tpu.memory_space<vmem>>, vector<1x1x128xf32>
    %251 = vector.shape_cast %250 : vector<1x1x128xf32> to vector<1x128xf32>
    %c1_130 = arith.constant 1 : index
    %c0_131 = arith.constant 0 : index
    %c0_132 = arith.constant 0 : index
    %252 = vector.load %arg14[%c1_130, %c0_131, %c0_132] : memref<2x1x128xf32, #tpu.memory_space<vmem>>, vector<1x1x128xf32>
    %253 = vector.shape_cast %252 : vector<1x1x128xf32> to vector<1x128xf32>
    %cst_133 = arith.constant dense<0.000000e+00> : vector<32xf32>
    %254 = vector.multi_reduction <add>, %249, %cst_133 [1] : vector<32x128xf32> to vector<32xf32>
    %255 = vector.shape_cast %254 : vector<32xf32> to vector<32x1xf32>
    %cst_134 = arith.constant 1.280000e+02 : f32
    %256 = vector.broadcast %cst_134 : f32 to vector<32x1xf32>
    %257 = arith.divf %255, %256 : vector<32x1xf32>
    %258 = vector.broadcast %257 : vector<32x1xf32> to vector<32x128xf32>
    %259 = arith.subf %249, %258 : vector<32x128xf32>
    %260 = arith.mulf %259, %259 : vector<32x128xf32>
    %cst_135 = arith.constant dense<0.000000e+00> : vector<32xf32>
    %261 = vector.multi_reduction <add>, %260, %cst_135 [1] : vector<32x128xf32> to vector<32xf32>
    %262 = vector.shape_cast %261 : vector<32xf32> to vector<32x1xf32>
    %cst_136 = arith.constant 1.280000e+02 : f32
    %263 = vector.broadcast %cst_136 : f32 to vector<32x1xf32>
    %264 = arith.divf %262, %263 : vector<32x1xf32>
    %265 = vector.broadcast %257 : vector<32x1xf32> to vector<32x128xf32>
    %266 = arith.subf %249, %265 : vector<32x128xf32>
    %cst_137 = arith.constant 9.99999997E-7 : f32
    %267 = vector.broadcast %cst_137 : f32 to vector<32x1xf32>
    %268 = arith.addf %264, %267 : vector<32x1xf32>
    %269 = math.rsqrt %268 : vector<32x1xf32>
    %270 = vector.broadcast %269 : vector<32x1xf32> to vector<32x128xf32>
    %271 = arith.mulf %266, %270 : vector<32x128xf32>
    %272 = vector.broadcast %251 : vector<1x128xf32> to vector<32x128xf32>
    %273 = arith.mulf %271, %272 : vector<32x128xf32>
    %274 = vector.broadcast %253 : vector<1x128xf32> to vector<32x128xf32>
    %275 = arith.addf %273, %274 : vector<32x128xf32>
    %276 = arith.truncf %275 : vector<32x128xf32> to vector<32x128xbf16>
    %c1_138 = arith.constant 1 : index
    %c0_139 = arith.constant 0 : index
    %c0_140 = arith.constant 0 : index
    %277 = vector.load %arg15[%c1_138, %c0_139, %c0_140] : memref<2x128x512xbf16, #tpu.memory_space<vmem>>, vector<1x128x512xbf16>
    %278 = vector.shape_cast %277 : vector<1x128x512xbf16> to vector<128x512xbf16>
    %cst_141 = arith.constant dense<0.000000e+00> : vector<32x512xf32>
    %279 = tpu.matmul %276, %278, %cst_141 {dimension_numbers = #tpu.dot_dimension_numbers<[1], [0], [0], [1], [0, 0, 1, 1], [], []>} : vector<32x128xbf16>, vector<128x512xbf16>, vector<32x512xf32> -> vector<32x512xf32>
    %c1_142 = arith.constant 1 : index
    %c0_143 = arith.constant 0 : index
    %c0_144 = arith.constant 0 : index
    %280 = vector.load %arg16[%c1_142, %c0_143, %c0_144] : memref<2x1x512xf32, #tpu.memory_space<vmem>>, vector<1x1x512xf32>
    %281 = vector.shape_cast %280 : vector<1x1x512xf32> to vector<1x512xf32>
    %282 = vector.broadcast %281 : vector<1x512xf32> to vector<32x512xf32>
    %283 = arith.addf %279, %282 : vector<32x512xf32>
    %284 = arith.mulf %283, %283 : vector<32x512xf32>
    %285 = arith.mulf %283, %284 : vector<32x512xf32>
    %cst_145 = arith.constant 4.471500e-02 : f32
    %286 = vector.broadcast %cst_145 : f32 to vector<32x512xf32>
    %287 = arith.mulf %286, %285 : vector<32x512xf32>
    %288 = arith.addf %283, %287 : vector<32x512xf32>
    %cst_146 = arith.constant 0.797884583 : f32
    %289 = vector.broadcast %cst_146 : f32 to vector<32x512xf32>
    %290 = arith.mulf %289, %288 : vector<32x512xf32>
    %291 = math.tanh %290 : vector<32x512xf32>
    %cst_147 = arith.constant 1.000000e+00 : f32
    %292 = vector.broadcast %cst_147 : f32 to vector<32x512xf32>
    %293 = arith.addf %292, %291 : vector<32x512xf32>
    %cst_148 = arith.constant 5.000000e-01 : f32
    %294 = vector.broadcast %cst_148 : f32 to vector<32x512xf32>
    %295 = arith.mulf %294, %293 : vector<32x512xf32>
    %296 = arith.mulf %283, %295 : vector<32x512xf32>
    %297 = arith.truncf %296 : vector<32x512xf32> to vector<32x512xbf16>
    %c1_149 = arith.constant 1 : index
    %c0_150 = arith.constant 0 : index
    %c0_151 = arith.constant 0 : index
    %298 = vector.load %arg17[%c1_149, %c0_150, %c0_151] : memref<2x512x128xbf16, #tpu.memory_space<vmem>>, vector<1x512x128xbf16>
    %299 = vector.shape_cast %298 : vector<1x512x128xbf16> to vector<512x128xbf16>
    %cst_152 = arith.constant dense<0.000000e+00> : vector<32x128xf32>
    %300 = tpu.matmul %297, %299, %cst_152 {dimension_numbers = #tpu.dot_dimension_numbers<[1], [0], [0], [1], [0, 0, 1, 1], [], []>} : vector<32x512xbf16>, vector<512x128xbf16>, vector<32x128xf32> -> vector<32x128xf32>
    %c1_153 = arith.constant 1 : index
    %c0_154 = arith.constant 0 : index
    %c0_155 = arith.constant 0 : index
    %301 = vector.load %arg18[%c1_153, %c0_154, %c0_155] : memref<2x1x128xf32, #tpu.memory_space<vmem>>, vector<1x1x128xf32>
    %302 = vector.shape_cast %301 : vector<1x1x128xf32> to vector<1x128xf32>
    %303 = vector.broadcast %302 : vector<1x128xf32> to vector<32x128xf32>
    %304 = arith.addf %300, %303 : vector<32x128xf32>
    %c1_156 = arith.constant 1 : index
    %c0_157 = arith.constant 0 : index
    %c0_158 = arith.constant 0 : index
    %305 = vector.load %arg19[%c1_156, %c0_157, %c0_158] : memref<2x1x128xf32, #tpu.memory_space<vmem>>, vector<1x1x128xf32>
    %306 = vector.shape_cast %305 : vector<1x1x128xf32> to vector<1x128xf32>
    %307 = vector.broadcast %306 : vector<1x128xf32> to vector<32x128xf32>
    %308 = arith.mulf %307, %304 : vector<32x128xf32>
    %309 = arith.addf %249, %308 : vector<32x128xf32>
    %c0_159 = arith.constant 0 : index
    %c0_160 = arith.constant 0 : index
    %310 = vector.load %arg20[%c0_159, %c0_160] : memref<1x128xf32, #tpu.memory_space<vmem>>, vector<1x128xf32>
    %c0_161 = arith.constant 0 : index
    %c0_162 = arith.constant 0 : index
    %311 = vector.load %arg21[%c0_161, %c0_162] : memref<1x128xf32, #tpu.memory_space<vmem>>, vector<1x128xf32>
    %cst_163 = arith.constant dense<0.000000e+00> : vector<32xf32>
    %312 = vector.multi_reduction <add>, %309, %cst_163 [1] : vector<32x128xf32> to vector<32xf32>
    %313 = vector.shape_cast %312 : vector<32xf32> to vector<32x1xf32>
    %cst_164 = arith.constant 1.280000e+02 : f32
    %314 = vector.broadcast %cst_164 : f32 to vector<32x1xf32>
    %315 = arith.divf %313, %314 : vector<32x1xf32>
    %316 = vector.broadcast %315 : vector<32x1xf32> to vector<32x128xf32>
    %317 = arith.subf %309, %316 : vector<32x128xf32>
    %318 = arith.mulf %317, %317 : vector<32x128xf32>
    %cst_165 = arith.constant dense<0.000000e+00> : vector<32xf32>
    %319 = vector.multi_reduction <add>, %318, %cst_165 [1] : vector<32x128xf32> to vector<32xf32>
    %320 = vector.shape_cast %319 : vector<32xf32> to vector<32x1xf32>
    %cst_166 = arith.constant 1.280000e+02 : f32
    %321 = vector.broadcast %cst_166 : f32 to vector<32x1xf32>
    %322 = arith.divf %320, %321 : vector<32x1xf32>
    %323 = vector.broadcast %315 : vector<32x1xf32> to vector<32x128xf32>
    %324 = arith.subf %309, %323 : vector<32x128xf32>
    %cst_167 = arith.constant 9.99999997E-7 : f32
    %325 = vector.broadcast %cst_167 : f32 to vector<32x1xf32>
    %326 = arith.addf %322, %325 : vector<32x1xf32>
    %327 = math.rsqrt %326 : vector<32x1xf32>
    %328 = vector.broadcast %327 : vector<32x1xf32> to vector<32x128xf32>
    %329 = arith.mulf %324, %328 : vector<32x128xf32>
    %330 = vector.broadcast %310 : vector<1x128xf32> to vector<32x128xf32>
    %331 = arith.mulf %329, %330 : vector<32x128xf32>
    %332 = vector.broadcast %311 : vector<1x128xf32> to vector<32x128xf32>
    %333 = arith.addf %331, %332 : vector<32x128xf32>
    %c0_168 = arith.constant 0 : index
    %c0_169 = arith.constant 0 : index
    %334 = vector.load %arg22[%c0_168, %c0_169] : memref<32x128xf32, #tpu.memory_space<vmem>>, vector<32x128xf32>
    tpu.vector_store %arg22[%c0_168, %c0_169], %333 {strides = array<i32>} : memref<32x128xf32, #tpu.memory_space<vmem>>, vector<32x128xf32>,
    return
  }
  func.func @transform_0(%arg0: i32) -> (i32, i32) {
    %c0_i32 = arith.constant 0 : i32
    %c0_i32_0 = arith.constant 0 : i32
    %c0_i32_1 = arith.constant 0 : i32
    return %c0_i32, %c0_i32_0 : i32, i32
  }
  func.func @transform_1(%arg0: i32) -> (i32, i32) {
    %c0_i32 = arith.constant 0 : i32
    %c0_i32_0 = arith.constant 0 : i32
    %c0_i32_1 = arith.constant 0 : i32
    return %c0_i32, %c0_i32_0 : i32, i32
  }
  func.func @transform_2(%arg0: i32) -> (i32, i32) {
    %c0_i32 = arith.constant 0 : i32
    %c0_i32_0 = arith.constant 0 : i32
    %c0_i32_1 = arith.constant 0 : i32
    return %c0_i32, %c0_i32_0 : i32, i32
  }
  func.func @transform_3(%arg0: i32) -> (i32, i32) {
    %c0_i32 = arith.constant 0 : i32
    %c0_i32_0 = arith.constant 0 : i32
    %c0_i32_1 = arith.constant 0 : i32
    return %c0_i32, %c0_i32_0 : i32, i32
  }
  func.func @transform_4(%arg0: i32) -> (i32, i32) {
    %c0_i32 = arith.constant 0 : i32
    %c0_i32_0 = arith.constant 0 : i32
    %c0_i32_1 = arith.constant 0 : i32
    return %c0_i32, %c0_i32_0 : i32, i32
  }
  func.func @transform_5(%arg0: i32) -> (i32, i32, i32) {
    %c0_i32 = arith.constant 0 : i32
    %c0_i32_0 = arith.constant 0 : i32
    %c0_i32_1 = arith.constant 0 : i32
    %c0_i32_2 = arith.constant 0 : i32
    return %c0_i32, %c0_i32_0, %c0_i32_1 : i32, i32, i32
  }
  func.func @transform_6(%arg0: i32) -> (i32, i32, i32) {
    %c0_i32 = arith.constant 0 : i32
    %c0_i32_0 = arith.constant 0 : i32
    %c0_i32_1 = arith.constant 0 : i32
    %c0_i32_2 = arith.constant 0 : i32
    return %c0_i32, %c0_i32_0, %c0_i32_1 : i32, i32, i32
  }
  func.func @transform_7(%arg0: i32) -> (i32, i32, i32) {
    %c0_i32 = arith.constant 0 : i32
    %c0_i32_0 = arith.constant 0 : i32
    %c0_i32_1 = arith.constant 0 : i32
    %c0_i32_2 = arith.constant 0 : i32
    return %c0_i32, %c0_i32_0, %c0_i32_1 : i32, i32, i32
  }
  func.func @transform_8(%arg0: i32) -> (i32, i32, i32) {
    %c0_i32 = arith.constant 0 : i32
    %c0_i32_0 = arith.constant 0 : i32
    %c0_i32_1 = arith.constant 0 : i32
    %c0_i32_2 = arith.constant 0 : i32
    return %c0_i32, %c0_i32_0, %c0_i32_1 : i32, i32, i32
  }
  func.func @transform_9(%arg0: i32) -> (i32, i32, i32) {
    %c0_i32 = arith.constant 0 : i32
    %c0_i32_0 = arith.constant 0 : i32
    %c0_i32_1 = arith.constant 0 : i32
    %c0_i32_2 = arith.constant 0 : i32
    return %c0_i32, %c0_i32_0, %c0_i32_1 : i32, i32, i32
  }
  func.func @transform_10(%arg0: i32) -> (i32, i32, i32) {
    %c0_i32 = arith.constant 0 : i32
    %c0_i32_0 = arith.constant 0 : i32
    %c0_i32_1 = arith.constant 0 : i32
    %c0_i32_2 = arith.constant 0 : i32
    return %c0_i32, %c0_i32_0, %c0_i32_1 : i32, i32, i32
  }
  func.func @transform_11(%arg0: i32) -> (i32, i32, i32) {
    %c0_i32 = arith.constant 0 : i32
    %c0_i32_0 = arith.constant 0 : i32
    %c0_i32_1 = arith.constant 0 : i32
    %c0_i32_2 = arith.constant 0 : i32
    return %c0_i32, %c0_i32_0, %c0_i32_1 : i32, i32, i32
  }
  func.func @transform_12(%arg0: i32) -> (i32, i32, i32) {
    %c0_i32 = arith.constant 0 : i32
    %c0_i32_0 = arith.constant 0 : i32
    %c0_i32_1 = arith.constant 0 : i32
    %c0_i32_2 = arith.constant 0 : i32
    return %c0_i32, %c0_i32_0, %c0_i32_1 : i32, i32, i32
  }
  func.func @transform_13(%arg0: i32) -> (i32, i32, i32) {
    %c0_i32 = arith.constant 0 : i32
    %c0_i32_0 = arith.constant 0 : i32
    %c0_i32_1 = arith.constant 0 : i32
    %c0_i32_2 = arith.constant 0 : i32
    return %c0_i32, %c0_i32_0, %c0_i32_1 : i32, i32, i32
  }
  func.func @transform_14(%arg0: i32) -> (i32, i32, i32) {
    %c0_i32 = arith.constant 0 : i32
    %c0_i32_0 = arith.constant 0 : i32
    %c0_i32_1 = arith.constant 0 : i32
    %c0_i32_2 = arith.constant 0 : i32
    return %c0_i32, %c0_i32_0, %c0_i32_1 : i32, i32, i32
  }
  func.func @transform_15(%arg0: i32) -> (i32, i32, i32) {
    %c0_i32 = arith.constant 0 : i32
    %c0_i32_0 = arith.constant 0 : i32
    %c0_i32_1 = arith.constant 0 : i32
    %c0_i32_2 = arith.constant 0 : i32
    return %c0_i32, %c0_i32_0, %c0_i32_1 : i32, i32, i32
  }
  func.func @transform_16(%arg0: i32) -> (i32, i32, i32) {
    %c0_i32 = arith.constant 0 : i32
    %c0_i32_0 = arith.constant 0 : i32
    %c0_i32_1 = arith.constant 0 : i32
    %c0_i32_2 = arith.constant 0 : i32
    return %c0_i32, %c0_i32_0, %c0_i32_1 : i32, i32, i32
  }
  func.func @transform_17(%arg0: i32) -> (i32, i32, i32) {
    %c0_i32 = arith.constant 0 : i32
    %c0_i32_0 = arith.constant 0 : i32
    %c0_i32_1 = arith.constant 0 : i32
    %c0_i32_2 = arith.constant 0 : i32
    return %c0_i32, %c0_i32_0, %c0_i32_1 : i32, i32, i32
  }
  func.func @transform_18(%arg0: i32) -> (i32, i32, i32) {
    %c0_i32 = arith.constant 0 : i32
    %c0_i32_0 = arith.constant 0 : i32
    %c0_i32_1 = arith.constant 0 : i32
    %c0_i32_2 = arith.constant 0 : i32
    return %c0_i32, %c0_i32_0, %c0_i32_1 : i32, i32, i32
  }
  func.func @transform_19(%arg0: i32) -> (i32, i32) {
    %c0_i32 = arith.constant 0 : i32
    %c0_i32_0 = arith.constant 0 : i32
    %c0_i32_1 = arith.constant 0 : i32
    return %c0_i32, %c0_i32_0 : i32, i32
  }
  func.func @transform_20(%arg0: i32) -> (i32, i32) {
    %c0_i32 = arith.constant 0 : i32
    %c0_i32_0 = arith.constant 0 : i32
    %c0_i32_1 = arith.constant 0 : i32
    return %c0_i32, %c0_i32_0 : i32, i32
  }
  func.func @transform_21(%arg0: i32) -> (i32, i32) {
    %c0_i32 = arith.constant 0 : i32
    %c0_i32_0 = arith.constant 0 : i32
    %c0_i32_1 = arith.constant 0 : i32
    return %c0_i32, %c0_i32_0 : i32, i32
  }
}

</mosaic_0001>

<llo_original>
// kernel: dino_feature_extractor.1
$region0: #{dino_feature_extractor.1}
  #allocation0 [shape = 'u32[]', space=smem, size = 0x4, offset = 0x4, fixed_abs, tag = 'smem constant byte address 0x4 - core index']
  #allocation1 [shape = 'u32[72,128]{1,0:T(1,128)}', space=vmem, size = 0x9000, scoped, tag = 'internal scratch']
  #allocation2 [shape = 'f32[32,128]{1,0:T(8,128)}', space=vmem, size = 0x4000, scoped, tag = 'scratch operand']
  %s0 = inlined_call_operand.vmem [shape: bf16[16,640], index: 0, kind: input, shape index: {}]
  %s1 = inlined_call_operand.vmem [shape: bf16[640,128], index: 1, kind: input, shape index: {}]
  %s2 = inlined_call_operand.vmem [shape: f32[16,128], index: 2, kind: input, shape index: {}]
  %s3 = inlined_call_operand.vmem [shape: f32[16,128], index: 3, kind: input, shape index: {}]
  %s4 = inlined_call_operand.vmem [shape: f32[1,32], index: 4, kind: input, shape index: {}]
  %s5 = inlined_call_operand.vmem [shape: f32[2,1,128], index: 5, kind: input, shape index: {}]
  %s6 = inlined_call_operand.vmem [shape: f32[2,1,128], index: 6, kind: input, shape index: {}]
  %s7 = inlined_call_operand.vmem [shape: bf16[2,128,384], index: 7, kind: input, shape index: {}]
  %s8 = inlined_call_operand.vmem [shape: f32[2,1,384], index: 8, kind: input, shape index: {}]
  %s9 = inlined_call_operand.vmem [shape: bf16[2,128,128], index: 9, kind: input, shape index: {}]
  %s10 = inlined_call_operand.vmem [shape: f32[2,1,128], index: 10, kind: input, shape index: {}]
  %s11 = inlined_call_operand.vmem [shape: f32[2,1,128], index: 11, kind: input, shape index: {}]
  %s12 = inlined_call_operand.vmem [shape: f32[2,1,128], index: 12, kind: input, shape index: {}]
  %s13 = inlined_call_operand.vmem [shape: f32[2,1,128], index: 13, kind: input, shape index: {}]
  %s14 = inlined_call_operand.vmem [shape: bf16[2,128,512], index: 14, kind: input, shape index: {}]
  %s15 = inlined_call_operand.vmem [shape: f32[2,1,512], index: 15, kind: input, shape index: {}]
  %s16 = inlined_call_operand.vmem [shape: bf16[2,512,128], index: 16, kind: input, shape index: {}]
  %s17 = inlined_call_operand.vmem [shape: f32[2,1,128], index: 17, kind: input, shape index: {}]
  %s18 = inlined_call_operand.vmem [shape: f32[2,1,128], index: 18, kind: input, shape index: {}]
  %s19 = inlined_call_operand.vmem [shape: f32[1,128], index: 19, kind: input, shape index: {}]
  %s20 = inlined_call_operand.vmem [shape: f32[1,128], index: 20, kind: input, shape index: {}]
  %s21 = inlined_call_operand.vmem [shape: f32[32,128], index: 21, kind: output, shape index: {}]
  %s22 = sld [smem:[#allocation0]]
  $region94: #{dino_feature_extractor.1} parent=0
    _
  %s24 = ssub.s32 1, %s22
  %s25 = scalar_select 0, %s24, %s22
  // Predicated region
  $region2: #{dino_feature_extractor.1} parent=0 // pred_check
    _
  $region3: #{dino_feature_extractor.1} parent=0 // pred_check_branch
    %27 = sbr.rel (0) target = $region5
  $region4: #{dino_feature_extractor.1} parent=0 // pred_region
    _
  $region5: #{dino_feature_extractor.1} parent=0 // pred_fallthru
    _
  // Predicated region
  $region6: #{dino_feature_extractor.1} parent=0 // pred_check
    _
  $region7: #{dino_feature_extractor.1} parent=0 // pred_check_branch
    %29 = sbr.rel (0) target = $region9
  $region8: #{dino_feature_extractor.1} parent=0 // pred_region
    _
  $region9: #{dino_feature_extractor.1} parent=0 // pred_fallthru
    _
  // Predicated region
  $region10: #{dino_feature_extractor.1} parent=0 // pred_check
    _
  $region11: #{dino_feature_extractor.1} parent=0 // pred_check_branch
    %31 = sbr.rel (0) target = $region13
  $region12: #{dino_feature_extractor.1} parent=0 // pred_region
    _
  $region13: #{dino_feature_extractor.1} parent=0 // pred_fallthru
    _
  // Predicated region
  $region14: #{dino_feature_extractor.1} parent=0 // pred_check
    _
  $region15: #{dino_feature_extractor.1} parent=0 // pred_check_branch
    %33 = sbr.rel (0) target = $region17
  $region16: #{dino_feature_extractor.1} parent=0 // pred_region
    _
  $region17: #{dino_feature_extractor.1} parent=0 // pred_fallthru
    _
  // Predicated region
  $region18: #{dino_feature_extractor.1} parent=0 // pred_check
    _
  $region19: #{dino_feature_extractor.1} parent=0 // pred_check_branch
    %35 = sbr.rel (0) target = $region21
  $region20: #{dino_feature_extractor.1} parent=0 // pred_region
    _
  $region21: #{dino_feature_extractor.1} parent=0 // pred_fallthru
    _
  // Predicated region
  $region22: #{dino_feature_extractor.1} parent=0 // pred_check
    _
  $region23: #{dino_feature_extractor.1} parent=0 // pred_check_branch
    %37 = sbr.rel (0) target = $region25
  $region24: #{dino_feature_extractor.1} parent=0 // pred_region
    _
  $region25: #{dino_feature_extractor.1} parent=0 // pred_fallthru
    _
  // Predicated region
  $region26: #{dino_feature_extractor.1} parent=0 // pred_check
    _
  $region27: #{dino_feature_extractor.1} parent=0 // pred_check_branch
    %39 = sbr.rel (0) target = $region29
  $region28: #{dino_feature_extractor.1} parent=0 // pred_region
    _
  $region29: #{dino_feature_extractor.1} parent=0 // pred_fallthru
    _
  // Predicated region
  $region30: #{dino_feature_extractor.1} parent=0 // pred_check
    _
  $region31: #{dino_feature_extractor.1} parent=0 // pred_check_branch
    %41 = sbr.rel (0) target = $region33
  $region32: #{dino_feature_extractor.1} parent=0 // pred_region
    _
  $region33: #{dino_feature_extractor.1} parent=0 // pred_fallthru
    _
  // Predicated region
  $region34: #{dino_feature_extractor.1} parent=0 // pred_check
    _
  $region35: #{dino_feature_extractor.1} parent=0 // pred_check_branch
    %43 = sbr.rel (0) target = $region37
  $region36: #{dino_feature_extractor.1} parent=0 // pred_region
    _
  $region37: #{dino_feature_extractor.1} parent=0 // pred_fallthru
    _
  // Predicated region
  $region38: #{dino_feature_extractor.1} parent=0 // pred_check
    _
  $region39: #{dino_feature_extractor.1} parent=0 // pred_check_branch
    %45 = sbr.rel (0) target = $region41
  $region40: #{dino_feature_extractor.1} parent=0 // pred_region
    _
  $region41: #{dino_feature_extractor.1} parent=0 // pred_fallthru
    _
  // Predicated region
  $region42: #{dino_feature_extractor.1} parent=0 // pred_check
    _
  $region43: #{dino_feature_extractor.1} parent=0 // pred_check_branch
    %47 = sbr.rel (0) target = $region45
  $region44: #{dino_feature_extractor.1} parent=0 // pred_region
    _
  $region45: #{dino_feature_extractor.1} parent=0 // pred_fallthru
    _
  // Predicated region
  $region46: #{dino_feature_extractor.1} parent=0 // pred_check
    _
  $region47: #{dino_feature_extractor.1} parent=0 // pred_check_branch
    %49 = sbr.rel (0) target = $region49
  $region48: #{dino_feature_extractor.1} parent=0 // pred_region
    _
  $region49: #{dino_feature_extractor.1} parent=0 // pred_fallthru
    _
  // Predicated region
  $region50: #{dino_feature_extractor.1} parent=0 // pred_check
    _
  $region51: #{dino_feature_extractor.1} parent=0 // pred_check_branch
    %51 = sbr.rel (0) target = $region53
  $region52: #{dino_feature_extractor.1} parent=0 // pred_region
    _
  $region53: #{dino_feature_extractor.1} parent=0 // pred_fallthru
    _
  // Predicated region
  $region54: #{dino_feature_extractor.1} parent=0 // pred_check
    _
  $region55: #{dino_feature_extractor.1} parent=0 // pred_check_branch
    %53 = sbr.rel (0) target = $region57
  $region56: #{dino_feature_extractor.1} parent=0 // pred_region
    _
  $region57: #{dino_feature_extractor.1} parent=0 // pred_fallthru
    _
  // Predicated region
  $region58: #{dino_feature_extractor.1} parent=0 // pred_check
    _
  $region59: #{dino_feature_extractor.1} parent=0 // pred_check_branch
    %55 = sbr.rel (0) target = $region61
  $region60: #{dino_feature_extractor.1} parent=0 // pred_region
    _
  $region61: #{dino_feature_extractor.1} parent=0 // pred_fallthru
    _
  // Predicated region
  $region62: #{dino_feature_extractor.1} parent=0 // pred_check
    _
  $region63: #{dino_feature_extractor.1} parent=0 // pred_check_branch
    %57 = sbr.rel (0) target = $region65
  $region64: #{dino_feature_extractor.1} parent=0 // pred_region
    _
  $region65: #{dino_feature_extractor.1} parent=0 // pred_fallthru
    _
  // Predicated region
  $region66: #{dino_feature_extractor.1} parent=0 // pred_check
    _
  $region67: #{dino_feature_extractor.1} parent=0 // pred_check_branch
    %59 = sbr.rel (0) target = $region69
  $region68: #{dino_feature_extractor.1} parent=0 // pred_region
    _
  $region69: #{dino_feature_extractor.1} parent=0 // pred_fallthru
    _
  // Predicated region
  $region70: #{dino_feature_extractor.1} parent=0 // pred_check
    _
  $region71: #{dino_feature_extractor.1} parent=0 // pred_check_branch
    %61 = sbr.rel (0) target = $region73
  $region72: #{dino_feature_extractor.1} parent=0 // pred_region
    _
  $region73: #{dino_feature_extractor.1} parent=0 // pred_fallthru
    _
  // Predicated region
  $region74: #{dino_feature_extractor.1} parent=0 // pred_check
    _
  $region75: #{dino_feature_extractor.1} parent=0 // pred_check_branch
    %63 = sbr.rel (0) target = $region77
  $region76: #{dino_feature_extractor.1} parent=0 // pred_region
    _
  $region77: #{dino_feature_extractor.1} parent=0 // pred_fallthru
    _
  // Predicated region
  $region78: #{dino_feature_extractor.1} parent=0 // pred_check
    _
  $region79: #{dino_feature_extractor.1} parent=0 // pred_check_branch
    %65 = sbr.rel (0) target = $region81
  $region80: #{dino_feature_extractor.1} parent=0 // pred_region
    _
  $region81: #{dino_feature_extractor.1} parent=0 // pred_fallthru
    _
  // Predicated region
  $region82: #{dino_feature_extractor.1} parent=0 // pred_check
    _
  $region83: #{dino_feature_extractor.1} parent=0 // pred_check_branch
    %67 = sbr.rel (0) target = $region85
  $region84: #{dino_feature_extractor.1} parent=0 // pred_region
    _
  $region85: #{dino_feature_extractor.1} parent=0 // pred_fallthru
    _
  %v69 = vld [vmem:[%s0] sm:$0xff]
  %v70 = vld [vmem:[%s0 + $0x8] sm:$0xff]
  %v71 = vld [vmem:[%s0 + $0x10] sm:$0xf]
  %v72 = vld [vmem:[%s0 + $0x14] sm:$0xff]
  %v73 = vld [vmem:[%s0 + $0x1c] sm:$0xff]
  %v74 = vld [vmem:[%s0 + $0x24] sm:$0xf]
  %v75 = vld [vmem:[%s1] sm:$0xf]
  %v76 = vld [vmem:[%s1 + $0x4] sm:$0xf]
  %v77 = vld [vmem:[%s1 + $0x8] sm:$0xf]
  %v78 = vld [vmem:[%s1 + $0xc] sm:$0xf]
  %v79 = vld [vmem:[%s1 + $0x10] sm:$0xf]
  %v80 = vld [vmem:[%s1 + $0x14] sm:$0xf]
  %v81 = vld [vmem:[%s1 + $0x18] sm:$0xf]
  %v82 = vld [vmem:[%s1 + $0x1c] sm:$0xf]
  %v83 = vld [vmem:[%s1 + $0x20] sm:$0xf]
  %v84 = vld [vmem:[%s1 + $0x24] sm:$0xf]
  %v85 = vld [vmem:[%s1 + $0x28] sm:$0xf]
  %v86 = vld [vmem:[%s1 + $0x2c] sm:$0xf]
  %v87 = vld [vmem:[%s1 + $0x30] sm:$0xf]
  %v88 = vld [vmem:[%s1 + $0x34] sm:$0xf]
  %v89 = vld [vmem:[%s1 + $0x38] sm:$0xf]
  %v90 = vld [vmem:[%s1 + $0x3c] sm:$0xf]
  %v91 = vld [vmem:[%s1 + $0x40] sm:$0xf]
  %v92 = vld [vmem:[%s1 + $0x44] sm:$0xf]
  %v93 = vld [vmem:[%s1 + $0x48] sm:$0xf]
  %v94 = vld [vmem:[%s1 + $0x4c] sm:$0xf]
  %v95 = vld [vmem:[%s1 + $0x50] sm:$0xf]
  %v96 = vld [vmem:[%s1 + $0x54] sm:$0xf]
  %v97 = vld [vmem:[%s1 + $0x58] sm:$0xf]
  %v98 = vld [vmem:[%s1 + $0x5c] sm:$0xf]
  %v99 = vld [vmem:[%s1 + $0x60] sm:$0xf]
  %v100 = vld [vmem:[%s1 + $0x64] sm:$0xf]
  %v101 = vld [vmem:[%s1 + $0x68] sm:$0xf]
  %v102 = vld [vmem:[%s1 + $0x6c] sm:$0xf]
  %v103 = vld [vmem:[%s1 + $0x70] sm:$0xf]
  %v104 = vld [vmem:[%s1 + $0x74] sm:$0xf]
  %v105 = vld [vmem:[%s1 + $0x78] sm:$0xf]
  %v106 = vld [vmem:[%s1 + $0x7c] sm:$0xf]
  %v107 = vld [vmem:[%s1 + $0x80] sm:$0xf]
  %v108 = vld [vmem:[%s1 + $0x84] sm:$0xf]
  %v109 = vld [vmem:[%s1 + $0x88] sm:$0xf]
  %v110 = vld [vmem:[%s1 + $0x8c] sm:$0xf]
  %v111 = vld [vmem:[%s1 + $0x90] sm:$0xf]
  %v112 = vld [vmem:[%s1 + $0x94] sm:$0xf]
  %v113 = vld [vmem:[%s1 + $0x98] sm:$0xf]
  %v114 = vld [vmem:[%s1 + $0x9c] sm:$0xf]
  %v115 = vld [vmem:[%s1 + $0xa0] sm:$0xf]
  %v116 = vld [vmem:[%s1 + $0xa4] sm:$0xf]
  %v117 = vld [vmem:[%s1 + $0xa8] sm:$0xf]
  %v118 = vld [vmem:[%s1 + $0xac] sm:$0xf]
  %v119 = vld [vmem:[%s1 + $0xb0] sm:$0xf]
  %v120 = vld [vmem:[%s1 + $0xb4] sm:$0xf]
  %v121 = vld [vmem:[%s1 + $0xb8] sm:$0xf]
  %v122 = vld [vmem:[%s1 + $0xbc] sm:$0xf]
  %v123 = vld [vmem:[%s1 + $0xc0] sm:$0xf]
  %v124 = vld [vmem:[%s1 + $0xc4] sm:$0xf]
  %v125 = vld [vmem:[%s1 + $0xc8] sm:$0xf]
  %v126 = vld [vmem:[%s1 + $0xcc] sm:$0xf]
  %v127 = vld [vmem:[%s1 + $0xd0] sm:$0xf]
  %v128 = vld [vmem:[%s1 + $0xd4] sm:$0xf]
  %v129 = vld [vmem:[%s1 + $0xd8] sm:$0xf]
  %v130 = vld [vmem:[%s1 + $0xdc] sm:$0xf]
  %v131 = vld [vmem:[%s1 + $0xe0] sm:$0xf]
  %v132 = vld [vmem:[%s1 + $0xe4] sm:$0xf]
  %v133 = vld [vmem:[%s1 + $0xe8] sm:$0xf]
  %v134 = vld [vmem:[%s1 + $0xec] sm:$0xf]
  %v135 = vld [vmem:[%s1 + $0xf0] sm:$0xf]
  %v136 = vld [vmem:[%s1 + $0xf4] sm:$0xf]
  %v137 = vld [vmem:[%s1 + $0xf8] sm:$0xf]
  %v138 = vld [vmem:[%s1 + $0xfc] sm:$0xf]
  %v139 = vld [vmem:[%s1 + $0x100] sm:$0xf]
  %v140 = vld [vmem:[%s1 + $0x104] sm:$0xf]
  %v141 = vld [vmem:[%s1 + $0x108] sm:$0xf]
  %v142 = vld [vmem:[%s1 + $0x10c] sm:$0xf]
  %v143 = vld [vmem:[%s1 + $0x110] sm:$0xf]
  %v144 = vld [vmem:[%s1 + $0x114] sm:$0xf]
  %v145 = vld [vmem:[%s1 + $0x118] sm:$0xf]
  %v146 = vld [vmem:[%s1 + $0x11c] sm:$0xf]
  %v147 = vld [vmem:[%s1 + $0x120] sm:$0xf]
  %v148 = vld [vmem:[%s1 + $0x124] sm:$0xf]
  %v149 = vld [vmem:[%s1 + $0x128] sm:$0xf]
  %v150 = vld [vmem:[%s1 + $0x12c] sm:$0xf]
  %v151 = vld [vmem:[%s1 + $0x130] sm:$0xf]
  %v152 = vld [vmem:[%s1 + $0x134] sm:$0xf]
  %v153 = vld [vmem:[%s1 + $0x138] sm:$0xf]
  %v154 = vld [vmem:[%s1 + $0x13c] sm:$0xf]
  %v155 = vld [vmem:[%s2] sm:$0xff]
  %v156 = vld [vmem:[%s2 + $0x8] sm:$0xff]
  %v163 = vunpack.c.l.b16 %v69
  %v164 = vunpack.c.h.b16 %v69
  %v165 = vunpack.c.l.b16 %v70
  %v166 = vunpack.c.h.b16 %v70
  %v167 = vunpack.c.l.b16 %v71
  %v168 = vunpack.c.l.b16 %v72
  %v169 = vunpack.c.h.b16 %v72
  %v170 = vunpack.c.l.b16 %v73
  %v171 = vunpack.c.h.b16 %v73
  %v172 = vunpack.c.l.b16 %v74
  %v173 = vpack.c.b16 %v168, %v163
  %v174 = vpack.c.b16 %v169, %v164
  %v175 = vpack.c.b16 %v170, %v165
  %v176 = vpack.c.b16 %v171, %v166
  %v177 = vpack.c.b16 %v172, %v167
  %v263 = vunpack.c.l.b16 %v75
  %v264 = vunpack.c.l.b16 %v76
  %v265 = vunpack.c.l.b16 %v77
  %v266 = vunpack.c.l.b16 %v78
  %v267 = vunpack.c.l.b16 %v79
  %v268 = vunpack.c.l.b16 %v80
  %v269 = vunpack.c.l.b16 %v81
  %v270 = vunpack.c.l.b16 %v82
  %v271 = vunpack.c.l.b16 %v83
  %v272 = vunpack.c.l.b16 %v84
  %v273 = vunpack.c.l.b16 %v85
  %v274 = vunpack.c.l.b16 %v86
  %v275 = vunpack.c.l.b16 %v87
  %v276 = vunpack.c.l.b16 %v88
  %v277 = vunpack.c.l.b16 %v89
  %v278 = vunpack.c.l.b16 %v90
  %v279 = vunpack.c.l.b16 %v91
  %v280 = vunpack.c.l.b16 %v92
  %v281 = vunpack.c.l.b16 %v93
  %v282 = vunpack.c.l.b16 %v94
  %v283 = vunpack.c.l.b16 %v95
  %v284 = vunpack.c.l.b16 %v96
  %v285 = vunpack.c.l.b16 %v97
  %v286 = vunpack.c.l.b16 %v98
  %v287 = vunpack.c.l.b16 %v99
  %v288 = vunpack.c.l.b16 %v100
  %v289 = vunpack.c.l.b16 %v101
  %v290 = vunpack.c.l.b16 %v102
  %v291 = vunpack.c.l.b16 %v103
  %v292 = vunpack.c.l.b16 %v104
  %v293 = vunpack.c.l.b16 %v105
  %v294 = vunpack.c.l.b16 %v106
  %v295 = vunpack.c.l.b16 %v107
  %v296 = vunpack.c.l.b16 %v108
  %v297 = vunpack.c.l.b16 %v109
  %v298 = vunpack.c.l.b16 %v110
  %v299 = vunpack.c.l.b16 %v111
  %v300 = vunpack.c.l.b16 %v112
  %v301 = vunpack.c.l.b16 %v113
  %v302 = vunpack.c.l.b16 %v114
  %v303 = vunpack.c.l.b16 %v115
  %v304 = vunpack.c.l.b16 %v116
  %v305 = vunpack.c.l.b16 %v117
  %v306 = vunpack.c.l.b16 %v118
  %v307 = vunpack.c.l.b16 %v119
  %v308 = vunpack.c.l.b16 %v120
  %v309 = vunpack.c.l.b16 %v121
  %v310 = vunpack.c.l.b16 %v122
  %v311 = vunpack.c.l.b16 %v123
  %v312 = vunpack.c.l.b16 %v124
  %v313 = vunpack.c.l.b16 %v125
  %v314 = vunpack.c.l.b16 %v126
  %v315 = vunpack.c.l.b16 %v127
  %v316 = vunpack.c.l.b16 %v128
  %v317 = vunpack.c.l.b16 %v129
  %v318 = vunpack.c.l.b16 %v130
  %v319 = vunpack.c.l.b16 %v131
  %v320 = vunpack.c.l.b16 %v132
  %v321 = vunpack.c.l.b16 %v133
  %v322 = vunpack.c.l.b16 %v134
  %v323 = vunpack.c.l.b16 %v135
  %v324 = vunpack.c.l.b16 %v136
  %v325 = vunpack.c.l.b16 %v137
  %v326 = vunpack.c.l.b16 %v138
  %v327 = vunpack.c.l.b16 %v139
  %v328 = vunpack.c.l.b16 %v140
  %v329 = vunpack.c.l.b16 %v141
  %v330 = vunpack.c.l.b16 %v142
  %v331 = vunpack.c.l.b16 %v143
  %v332 = vunpack.c.l.b16 %v144
  %v333 = vunpack.c.l.b16 %v145
  %v334 = vunpack.c.l.b16 %v146
  %v335 = vunpack.c.l.b16 %v147
  %v336 = vunpack.c.l.b16 %v148
  %v337 = vunpack.c.l.b16 %v149
  %v338 = vunpack.c.l.b16 %v150
  %v339 = vunpack.c.l.b16 %v151
  %v340 = vunpack.c.l.b16 %v152
  %v341 = vunpack.c.l.b16 %v153
  %v342 = vunpack.c.l.b16 %v154
  %v343 = vpack.c.b16 %v264, %v263
  %v344 = vpack.c.b16 %v266, %v265
  %v345 = vpack.c.b16 %v268, %v267
  %v346 = vpack.c.b16 %v270, %v269
  %v347 = vpack.c.b16 %v272, %v271
  %v348 = vpack.c.b16 %v274, %v273
  %v349 = vpack.c.b16 %v276, %v275
  %v350 = vpack.c.b16 %v278, %v277
  %v351 = vpack.c.b16 %v280, %v279
  %v352 = vpack.c.b16 %v282, %v281
  %v353 = vpack.c.b16 %v284, %v283
  %v354 = vpack.c.b16 %v286, %v285
  %v355 = vpack.c.b16 %v288, %v287
  %v356 = vpack.c.b16 %v290, %v289
  %v357 = vpack.c.b16 %v292, %v291
  %v358 = vpack.c.b16 %v294, %v293
  %v359 = vpack.c.b16 %v296, %v295
  %v360 = vpack.c.b16 %v298, %v297
  %v361 = vpack.c.b16 %v300, %v299
  %v362 = vpack.c.b16 %v302, %v301
  %v363 = vpack.c.b16 %v304, %v303
  %v364 = vpack.c.b16 %v306, %v305
  %v365 = vpack.c.b16 %v308, %v307
  %v366 = vpack.c.b16 %v310, %v309
  %v367 = vpack.c.b16 %v312, %v311
  %v368 = vpack.c.b16 %v314, %v313
  %v369 = vpack.c.b16 %v316, %v315
  %v370 = vpack.c.b16 %v318, %v317
  %v371 = vpack.c.b16 %v320, %v319
  %v372 = vpack.c.b16 %v322, %v321
  %v373 = vpack.c.b16 %v324, %v323
  %v374 = vpack.c.b16 %v326, %v325
  %v375 = vpack.c.b16 %v328, %v327
  %v376 = vpack.c.b16 %v330, %v329
  %v377 = vpack.c.b16 %v332, %v331
  %v378 = vpack.c.b16 %v334, %v333
  %v379 = vpack.c.b16 %v336, %v335
  %v380 = vpack.c.b16 %v338, %v337
  %v381 = vpack.c.b16 %v340, %v339
  %v382 = vpack.c.b16 %v342, %v341
  %423 = vmatpush.bf16.msra.mxu0 %v350
  %424 = vmatpush.bf16.msra.mxu0 %v349
  %425 = vmatpush.bf16.msra.mxu0 %v348
  %426 = vmatpush.bf16.msra.mxu0 %v347
  %427 = vmatpush.bf16.msra.mxu0 %v346
  %428 = vmatpush.bf16.msra.mxu0 %v345
  %429 = vmatpush.bf16.msra.mxu0 %v344
  %430 = vmatpush.bf16.msra.mxu0 %v343
  %431 = vmatmul.bf16.gmra.mxu0 %v173
  %v432 = vpop.f32.mrf.mxu0
  %v433 = vadd.f32 %v155, %v432
  %v434 = vpop.f32.mrf.mxu0
  %v435 = vadd.f32 %v156, %v434
  %436 = vdwg.mxu0
  %437 = vmatpush.bf16.msra.mxu0 %v358
  %438 = vmatpush.bf16.msra.mxu0 %v357
  %439 = vmatpush.bf16.msra.mxu0 %v356
  %440 = vmatpush.bf16.msra.mxu0 %v355
  %441 = vmatpush.bf16.msra.mxu0 %v354
  %442 = vmatpush.bf16.msra.mxu0 %v353
  %443 = vmatpush.bf16.msra.mxu0 %v352
  %444 = vmatpush.bf16.msra.mxu0 %v351
  %445 = vmatmul.bf16.gmra.mxu0 %v174
  %v446 = vpop.f32.mrf.mxu0
  %v447 = vadd.f32 %v433, %v446
  %v448 = vpop.f32.mrf.mxu0
  %v449 = vadd.f32 %v435, %v448
  %450 = vdwg.mxu0
  %451 = vmatpush.bf16.msra.mxu0 %v366
  %452 = vmatpush.bf16.msra.mxu0 %v365
  %453 = vmatpush.bf16.msra.mxu0 %v364
  %454 = vmatpush.bf16.msra.mxu0 %v363
  %455 = vmatpush.bf16.msra.mxu0 %v362
  %456 = vmatpush.bf16.msra.mxu0 %v361
  %457 = vmatpush.bf16.msra.mxu0 %v360
  %458 = vmatpush.bf16.msra.mxu0 %v359
  %459 = vmatmul.bf16.gmra.mxu0 %v175
  %v460 = vpop.f32.mrf.mxu0
  %v461 = vadd.f32 %v447, %v460
  %v462 = vpop.f32.mrf.mxu0
  %v463 = vadd.f32 %v449, %v462
  %464 = vdwg.mxu0
  %465 = vmatpush.bf16.msra.mxu0 %v374
  %466 = vmatpush.bf16.msra.mxu0 %v373
  %467 = vmatpush.bf16.msra.mxu0 %v372
  %468 = vmatpush.bf16.msra.mxu0 %v371
  %469 = vmatpush.bf16.msra.mxu0 %v370
  %470 = vmatpush.bf16.msra.mxu0 %v369
  %471 = vmatpush.bf16.msra.mxu0 %v368
  %472 = vmatpush.bf16.msra.mxu0 %v367
  %473 = vmatmul.bf16.gmra.mxu0 %v176
  %v474 = vpop.f32.mrf.mxu0
  %v475 = vadd.f32 %v461, %v474
  %v476 = vpop.f32.mrf.mxu0
  %v477 = vadd.f32 %v463, %v476
  %478 = vdwg.mxu0
  %479 = vmatpush.bf16.msra.mxu0 %v382
  %480 = vmatpush.bf16.msra.mxu0 %v381
  %481 = vmatpush.bf16.msra.mxu0 %v380
  %482 = vmatpush.bf16.msra.mxu0 %v379
  %483 = vmatpush.bf16.msra.mxu0 %v378
  %484 = vmatpush.bf16.msra.mxu0 %v377
  %485 = vmatpush.bf16.msra.mxu0 %v376
  %486 = vmatpush.bf16.msra.mxu0 %v375
  %487 = vmatmul.bf16.gmra.mxu0 %v177
  %v488 = vpop.f32.mrf.mxu0
  %v489 = vadd.f32 %v475, %v488
  %v490 = vpop.f32.mrf.mxu0
  %v491 = vadd.f32 %v477, %v490
  %492 = vdwg.mxu0
  %v493 = vld [vmem:[%s3] sm:$0xff]
  %v494 = vld [vmem:[%s3 + $0x8] sm:$0xff]
  %v495 = vld [vmem:[%s4] sm:$0x1]
  %v496 = vld [vmem:[%s5] sm:$0x1]
  %v497 = vld [vmem:[%s6] sm:$0x1]
  %498 = vadd.xlane.f32.xlu0 %v489
  %v499 = vpop.xlane.xlu0 %498
  %500 = vadd.xlane.f32.xlu0 %v491
  %v501 = vpop.xlane.xlu0 %500
  %502 = vadd.xlane.f32.xlu0 %v493
  %v503 = vpop.xlane.xlu0 %502
  %504 = vadd.xlane.f32.xlu0 %v494
  %v505 = vpop.xlane.xlu0 %504
  %v506 = vrcp.pop 128.0
  %v507 = vmul.f32 128.0, %v506
  %v508 = vsub.f32 1.0, %v507
  %v509 = vmul.f32 %v506, %v508
  %v510 = vadd.f32 %v506, %v509
  %vm511 = vweird.f32 %v506
  %v512 = vsel %vm511, %v506, %v510
  %v513 = vmul.f32 %v499, %v512
  %v514 = vmul.f32 %v501, %v512
  %v515 = vmul.f32 %v503, %v512
  %v516 = vmul.f32 %v505, %v512
  %v517 = vsub.f32 %v489, %v513
  %v518 = vsub.f32 %v491, %v514
  %v519 = vsub.f32 %v493, %v515
  %v520 = vsub.f32 %v494, %v516
  %v521 = vmul.f32 %v517, %v517
  %v522 = vmul.f32 %v518, %v518
  %v523 = vmul.f32 %v519, %v519
  %v524 = vmul.f32 %v520, %v520
  %525 = vadd.xlane.f32.xlu0 %v521
  %v526 = vpop.xlane.xlu0 %525
  %527 = vadd.xlane.f32.xlu0 %v522
  %v528 = vpop.xlane.xlu0 %527
  %529 = vadd.xlane.f32.xlu0 %v523
  %v530 = vpop.xlane.xlu0 %529
  %531 = vadd.xlane.f32.xlu0 %v524
  %v532 = vpop.xlane.xlu0 %531
  %v533 = vmul.f32 %v526, %v512
  %v534 = vmul.f32 %v528, %v512
  %v535 = vmul.f32 %v530, %v512
  %v536 = vmul.f32 %v532, %v512
  %v537 = vadd.f32 %v533, 1e-06
  %v538 = vadd.f32 %v534, 1e-06
  %v539 = vadd.f32 %v535, 1e-06
  %v540 = vadd.f32 %v536, 1e-06
  %v541 = vrsqrt.pop %v537
  %v542 = vmul.f32 %v541, %v537
  %v543 = vmul.f32 %v542, %v541
  %v544 = vmul.f32 0.5, %v543
  %v545 = vsub.f32 1.5, %v544
  %v546 = vmul.f32 %v541, %v545
  %vm547 = vweird.f32 %v537
  %vm548 = vweird.f32 %v541
  %vm549 = vmor %vm547, %vm548
  %v550 = vsel %vm549, %v541, %v546
  %v551 = vrsqrt.pop %v538
  %v552 = vmul.f32 %v551, %v538
  %v553 = vmul.f32 %v552, %v551
  %v554 = vmul.f32 0.5, %v553
  %v555 = vsub.f32 1.5, %v554
  %v556 = vmul.f32 %v551, %v555
  %vm557 = vweird.f32 %v538
  %vm558 = vweird.f32 %v551
  %vm559 = vmor %vm557, %vm558
  %v560 = vsel %vm559, %v551, %v556
  %v561 = vrsqrt.pop %v539
  %v562 = vmul.f32 %v561, %v539
  %v563 = vmul.f32 %v562, %v561
  %v564 = vmul.f32 0.5, %v563
  %v565 = vsub.f32 1.5, %v564
  %v566 = vmul.f32 %v561, %v565
  %vm567 = vweird.f32 %v539
  %vm568 = vweird.f32 %v561
  %vm569 = vmor %vm567, %vm568
  %v570 = vsel %vm569, %v561, %v566
  %v571 = vrsqrt.pop %v540
  %v572 = vmul.f32 %v571, %v540
  %v573 = vmul.f32 %v572, %v571
  %v574 = vmul.f32 0.5, %v573
  %v575 = vsub.f32 1.5, %v574
  %v576 = vmul.f32 %v571, %v575
  %vm577 = vweird.f32 %v540
  %vm578 = vweird.f32 %v571
  %vm579 = vmor %vm577, %vm578
  %v580 = vsel %vm579, %v571, %v576
  %v581 = vmul.f32 %v517, %v550
  %v582 = vmul.f32 %v518, %v560
  %v583 = vmul.f32 %v519, %v570
  %v584 = vmul.f32 %v520, %v580
  %v586 = vperm.slane %v496, 0
  %v588 = vmul.f32 %v581, %v586
  %v589 = vmul.f32 %v582, %v586
  %v590 = vmul.f32 %v583, %v586
  %v591 = vmul.f32 %v584, %v586
  %v593 = vperm.slane %v497, 0
  %v595 = vadd.f32 %v588, %v593
  %v596 = vadd.f32 %v589, %v593
  %v597 = vadd.f32 %v590, %v593
  %v598 = vadd.f32 %v591, %v593
  %v599 = vpack.c.bf16 %v596, %v595
  %v600 = vpack.c.bf16 %v598, %v597
  %v601 = vld [vmem:[%s7] sm:$0xff]
  %v602 = vld [vmem:[%s7 + $0x8] sm:$0xf]
  %v603 = vld [vmem:[%s7 + $0xc] sm:$0xff]
  %v604 = vld [vmem:[%s7 + $0x14] sm:$0xf]
  %v605 = vld [vmem:[%s7 + $0x18] sm:$0xff]
  %v606 = vld [vmem:[%s7 + $0x20] sm:$0xf]
  %v607 = vld [vmem:[%s7 + $0x24] sm:$0xff]
  %v608 = vld [vmem:[%s7 + $0x2c] sm:$0xf]
  %v609 = vld [vmem:[%s7 + $0x30] sm:$0xff]
  %v610 = vld [vmem:[%s7 + $0x38] sm:$0xf]
  %v611 = vld [vmem:[%s7 + $0x3c] sm:$0xff]
  %v612 = vld [vmem:[%s7 + $0x44] sm:$0xf]
  %v613 = vld [vmem:[%s7 + $0x48] sm:$0xff]
  %v614 = vld [vmem:[%s7 + $0x50] sm:$0xf]
  %v615 = vld [vmem:[%s7 + $0x54] sm:$0xff]
  %v616 = vld [vmem:[%s7 + $0x5c] sm:$0xf]
  %v617 = vld [vmem:[%s7 + $0x60] sm:$0xff]
  %v618 = vld [vmem:[%s7 + $0x68] sm:$0xf]
  %v619 = vld [vmem:[%s7 + $0x6c] sm:$0xff]
  %v620 = vld [vmem:[%s7 + $0x74] sm:$0xf]
  %v621 = vld [vmem:[%s7 + $0x78] sm:$0xff]
  %v622 = vld [vmem:[%s7 + $0x80] sm:$0xf]
  %v623 = vld [vmem:[%s7 + $0x84] sm:$0xff]
  %v624 = vld [vmem:[%s7 + $0x8c] sm:$0xf]
  %v625 = vld [vmem:[%s7 + $0x90] sm:$0xff]
  %v626 = vld [vmem:[%s7 + $0x98] sm:$0xf]
  %v627 = vld [vmem:[%s7 + $0x9c] sm:$0xff]
  %v628 = vld [vmem:[%s7 + $0xa4] sm:$0xf]
  %v629 = vld [vmem:[%s7 + $0xa8] sm:$0xff]
  %v630 = vld [vmem:[%s7 + $0xb0] sm:$0xf]
  %v631 = vld [vmem:[%s7 + $0xb4] sm:$0xff]
  %v632 = vld [vmem:[%s7 + $0xbc] sm:$0xf]
  %v633 = vld [vmem:[%s8] sm:$0x7]
  %v635 = vperm.slane %v633, 0
  %v636 = vperm.slane %v633, 1
  %v637 = vperm.slane %v633, 2
  %v673 = vunpack.c.l.b16 %v601
  %v674 = vunpack.c.h.b16 %v601
  %v675 = vunpack.c.l.b16 %v602
  %v676 = vunpack.c.l.b16 %v603
  %v677 = vunpack.c.h.b16 %v603
  %v678 = vunpack.c.l.b16 %v604
  %v679 = vunpack.c.l.b16 %v605
  %v680 = vunpack.c.h.b16 %v605
  %v681 = vunpack.c.l.b16 %v606
  %v682 = vunpack.c.l.b16 %v607
  %v683 = vunpack.c.h.b16 %v607
  %v684 = vunpack.c.l.b16 %v608
  %v685 = vunpack.c.l.b16 %v609
  %v686 = vunpack.c.h.b16 %v609
  %v687 = vunpack.c.l.b16 %v610
  %v688 = vunpack.c.l.b16 %v611
  %v689 = vunpack.c.h.b16 %v611
  %v690 = vunpack.c.l.b16 %v612
  %v691 = vunpack.c.l.b16 %v613
  %v692 = vunpack.c.h.b16 %v613
  %v693 = vunpack.c.l.b16 %v614
  %v694 = vunpack.c.l.b16 %v615
  %v695 = vunpack.c.h.b16 %v615
  %v696 = vunpack.c.l.b16 %v616
  %v697 = vunpack.c.l.b16 %v617
  %v698 = vunpack.c.h.b16 %v617
  %v699 = vunpack.c.l.b16 %v618
  %v700 = vunpack.c.l.b16 %v619
  %v701 = vunpack.c.h.b16 %v619
  %v702 = vunpack.c.l.b16 %v620
  %v703 = vunpack.c.l.b16 %v621
  %v704 = vunpack.c.h.b16 %v621
  %v705 = vunpack.c.l.b16 %v622
  %v706 = vunpack.c.l.b16 %v623
  %v707 = vunpack.c.h.b16 %v623
  %v708 = vunpack.c.l.b16 %v624
  %v709 = vunpack.c.l.b16 %v625
  %v710 = vunpack.c.h.b16 %v625
  %v711 = vunpack.c.l.b16 %v626
  %v712 = vunpack.c.l.b16 %v627
  %v713 = vunpack.c.h.b16 %v627
  %v714 = vunpack.c.l.b16 %v628
  %v715 = vunpack.c.l.b16 %v629
  %v716 = vunpack.c.h.b16 %v629
  %v717 = vunpack.c.l.b16 %v630
  %v718 = vunpack.c.l.b16 %v631
  %v719 = vunpack.c.h.b16 %v631
  %v720 = vunpack.c.l.b16 %v632
  %v721 = vpack.c.b16 %v676, %v673
  %v722 = vpack.c.b16 %v677, %v674
  %v723 = vpack.c.b16 %v678, %v675
  %v724 = vpack.c.b16 %v682, %v679
  %v725 = vpack.c.b16 %v683, %v680
  %v726 = vpack.c.b16 %v684, %v681
  %v727 = vpack.c.b16 %v688, %v685
  %v728 = vpack.c.b16 %v689, %v686
  %v729 = vpack.c.b16 %v690, %v687
  %v730 = vpack.c.b16 %v694, %v691
  %v731 = vpack.c.b16 %v695, %v692
  %v732 = vpack.c.b16 %v696, %v693
  %v733 = vpack.c.b16 %v700, %v697
  %v734 = vpack.c.b16 %v701, %v698
  %v735 = vpack.c.b16 %v702, %v699
  %v736 = vpack.c.b16 %v706, %v703
  %v737 = vpack.c.b16 %v707, %v704
  %v738 = vpack.c.b16 %v708, %v705
  %v739 = vpack.c.b16 %v712, %v709
  %v740 = vpack.c.b16 %v713, %v710
  %v741 = vpack.c.b16 %v714, %v711
  %v742 = vpack.c.b16 %v718, %v715
  %v743 = vpack.c.b16 %v719, %v716
  %v744 = vpack.c.b16 %v720, %v717
  %769 = vmatpush.bf16.msra.mxu0 %v742
  %770 = vmatpush.bf16.msra.mxu0 %v739
  %771 = vmatpush.bf16.msra.mxu0 %v736
  %772 = vmatpush.bf16.msra.mxu0 %v733
  %773 = vmatpush.bf16.msra.mxu0 %v730
  %774 = vmatpush.bf16.msra.mxu0 %v727
  %775 = vmatpush.bf16.msra.mxu0 %v724
  %776 = vmatpush.bf16.msra.mxu0 %v721
  %777 = vmatmul.bf16.gmra.mxu0 %v599
  %v778 = vpop.f32.mrf.mxu0
  %v779 = vadd.f32 %v635, %v778
  %v780 = vpop.f32.mrf.mxu0
  %v781 = vadd.f32 %v635, %v780
  %782 = vmatmul.bf16.gmra.mxu0 %v600
  %v783 = vpop.f32.mrf.mxu0
  %v784 = vadd.f32 %v635, %v783
  %v785 = vpop.f32.mrf.mxu0
  %v786 = vadd.f32 %v635, %v785
  %787 = vdwg.mxu0
  %788 = vmatpush.bf16.msra.mxu0 %v743
  %789 = vmatpush.bf16.msra.mxu0 %v740
  %790 = vmatpush.bf16.msra.mxu0 %v737
  %791 = vmatpush.bf16.msra.mxu0 %v734
  %792 = vmatpush.bf16.msra.mxu0 %v731
  %793 = vmatpush.bf16.msra.mxu0 %v728
  %794 = vmatpush.bf16.msra.mxu0 %v725
  %795 = vmatpush.bf16.msra.mxu0 %v722
  %796 = vmatmul.bf16.gmra.mxu0 %v599
  %v797 = vpop.f32.mrf.mxu0
  %v798 = vadd.f32 %v636, %v797
  %v799 = vpop.f32.mrf.mxu0
  %v800 = vadd.f32 %v636, %v799
  %801 = vmatmul.bf16.gmra.mxu0 %v600
  %v802 = vpop.f32.mrf.mxu0
  %v803 = vadd.f32 %v636, %v802
  %v804 = vpop.f32.mrf.mxu0
  %v805 = vadd.f32 %v636, %v804
  %806 = vdwg.mxu0
  %807 = vmatpush.bf16.msra.mxu0 %v744
  %808 = vmatpush.bf16.msra.mxu0 %v741
  %809 = vmatpush.bf16.msra.mxu0 %v738
  %810 = vmatpush.bf16.msra.mxu0 %v735
  %811 = vmatpush.bf16.msra.mxu0 %v732
  %812 = vmatpush.bf16.msra.mxu0 %v729
  %813 = vmatpush.bf16.msra.mxu0 %v726
  %814 = vmatpush.bf16.msra.mxu0 %v723
  %815 = vmatmul.bf16.gmra.mxu0 %v599
  %v816 = vpop.f32.mrf.mxu0
  %v817 = vadd.f32 %v637, %v816
  %v818 = vpop.f32.mrf.mxu0
  %v819 = vadd.f32 %v637, %v818
  %820 = vmatmul.bf16.gmra.mxu0 %v600
  %v821 = vpop.f32.mrf.mxu0
  %v822 = vadd.f32 %v637, %v821
  %v823 = vpop.f32.mrf.mxu0
  %v824 = vadd.f32 %v637, %v823
  %825 = vdwg.mxu0
  %v826 = vpack.c.bf16 %v798, %v779
  %v827 = vpack.c.bf16 %v817, %v817
  %v828 = vpack.c.bf16 %v800, %v781
  %v829 = vpack.c.bf16 %v819, %v819
  %v830 = vpack.c.bf16 %v803, %v784
  %v831 = vpack.c.bf16 %v822, %v822
  %v832 = vpack.c.bf16 %v805, %v786
  %v833 = vpack.c.bf16 %v824, %v824
  %v838 = vunpack.c.l.b16 %v826
  %v839 = vunpack.c.l.b16 %v828
  %v840 = vunpack.c.l.b16 %v830
  %v841 = vunpack.c.l.b16 %v832
  %v842 = vpack.c.b16 %v839, %v838
  %v843 = vpack.c.b16 %v841, %v840
  %v844 = vunpack.c.h.b16 %v826
  %v845 = vunpack.c.h.b16 %v828
  %v846 = vunpack.c.h.b16 %v830
  %v847 = vunpack.c.h.b16 %v832
  %v848 = vpack.c.b16 %v845, %v844
  %v849 = vpack.c.b16 %v847, %v846
  %vm850 = vcmask 523264
  %v852 = vsel %vm850, %v842, 0
  %v855 = vsel %vm850, %v843, 0
  %v858 = vsel %vm850, %v848, 0
  %v861 = vsel %vm850, %v849, 0
  %863 = vmatpush.bf16.xpose.msra.mxu0 0
  %864 = vmatpush.bf16.xpose.msra.mxu0 0
  %865 = vmatpush.bf16.xpose.msra.mxu0 0
  %866 = vmatpush.bf16.xpose.msra.mxu0 0
  %867 = vmatpush.bf16.xpose.msra.mxu0 0
  %868 = vmatpush.bf16.xpose.msra.mxu0 0
  %869 = vmatpush.bf16.xpose.msra.mxu0 %v861
  %870 = vmatpush.bf16.xpose.msra.mxu0 %v858
  %871 = vmatmul.bf16.gmra.mxu0 %v852
  %v872 = vpop.f32.mrf.mxu0
  %v873 = vadd.f32 0.0, %v872
  %v874 = vpop.f32.mrf.mxu0
  %v875 = vadd.f32 0.0, %v874
  %876 = vmatmul.bf16.gmra.mxu0 %v855
  %v877 = vpop.f32.mrf.mxu0
  %v878 = vadd.f32 0.0, %v877
  %v879 = vpop.f32.mrf.mxu0
  %v880 = vadd.f32 0.0, %v879
  %881 = vdwg.mxu0
  %v882 = vmul.f32 %v873, 0.125
  %v883 = vmul.f32 %v875, 0.125
  %v884 = vmul.f32 %v878, 0.125
  %v885 = vmul.f32 %v880, 0.125
  %v887 = vperm.slane %v495, 0
  %v889 = vadd.f32 %v882, %v887
  %v890 = vadd.f32 %v883, %v887
  %v891 = vadd.f32 %v884, %v887
  %v892 = vadd.f32 %v885, %v887
  %vm893 = vcmask 261120
  %v894 = vsel %vm893, %v889, -inf
  %895 = vmax.xlane.f32.xlu0 %v894
  %v896 = vpop.xlane.xlu0 %895
  %v897 = vsel %vm893, %v890, -inf
  %898 = vmax.xlane.f32.xlu0 %v897
  %v899 = vpop.xlane.xlu0 %898
  %v900 = vsel %vm893, %v891, -inf
  %901 = vmax.xlane.f32.xlu0 %v900
  %v902 = vpop.xlane.xlu0 %901
  %v903 = vsel %vm893, %v892, -inf
  %904 = vmax.xlane.f32.xlu0 %v903
  %v905 = vpop.xlane.xlu0 %904
  %v906 = vsub.f32 %v889, %v896
  %v907 = vsub.f32 %v890, %v899
  %v908 = vsub.f32 %v891, %v902
  %v909 = vsub.f32 %v892, %v905
  %v910 = vmul.f32 %v906, 1.442695
  %v911 = vpow.pop %v910
  %v912 = vmul.f32 %v907, 1.442695
  %v913 = vpow.pop %v912
  %v914 = vmul.f32 %v908, 1.442695
  %v915 = vpow.pop %v914
  %v916 = vmul.f32 %v909, 1.442695
  %v917 = vpow.pop %v916
  %v918 = vsel %vm893, %v911, 0.0
  %919 = vadd.xlane.f32.xlu0 %v918
  %v920 = vpop.xlane.xlu0 %919
  %v921 = vsel %vm893, %v913, 0.0
  %922 = vadd.xlane.f32.xlu0 %v921
  %v923 = vpop.xlane.xlu0 %922
  %v924 = vsel %vm893, %v915, 0.0
  %925 = vadd.xlane.f32.xlu0 %v924
  %v926 = vpop.xlane.xlu0 %925
  %v927 = vsel %vm893, %v917, 0.0
  %928 = vadd.xlane.f32.xlu0 %v927
  %v929 = vpop.xlane.xlu0 %928
  %v930 = vrcp.pop %v920
  %v931 = vrcp.pop %v923
  %v932 = vrcp.pop %v926
  %v933 = vrcp.pop %v929
  %v934 = vmul.f32 %v911, %v930
  %v935 = vmul.f32 %v913, %v931
  %v936 = vmul.f32 %v915, %v932
  %v937 = vmul.f32 %v917, %v933
  %v938 = vpack.c.bf16 %v935, %v934
  %v939 = vpack.c.bf16 %v937, %v936
  %v944 = vunpack.c.l.b16 %v827
  %v945 = vunpack.c.l.b16 %v829
  %v946 = vunpack.c.l.b16 %v831
  %v947 = vunpack.c.l.b16 %v833
  %v948 = vpack.c.b16 %v945, %v944
  %v949 = vpack.c.b16 %v947, %v946
  %v953 = vsel %vm893, %v938, 0
  %v956 = vsel %vm893, %v939, 0
  %958 = vmatpush.bf16.msra.mxu0 0
  %959 = vmatpush.bf16.msra.mxu0 0
  %960 = vmatpush.bf16.msra.mxu0 0
  %961 = vmatpush.bf16.msra.mxu0 0
  %962 = vmatpush.bf16.msra.mxu0 0
  %963 = vmatpush.bf16.msra.mxu0 0
  %964 = vmatpush.bf16.msra.mxu0 %v949
  %965 = vmatpush.bf16.msra.mxu0 %v948
  %966 = vmatmul.bf16.gmra.mxu0 %v953
  %v967 = vpop.f32.mrf.mxu0
  %v968 = vadd.f32 0.0, %v967
  %v969 = vpop.f32.mrf.mxu0
  %v970 = vadd.f32 0.0, %v969
  %971 = vmatmul.bf16.gmra.mxu0 %v956
  %v972 = vpop.f32.mrf.mxu0
  %v973 = vadd.f32 0.0, %v972
  %v974 = vpop.f32.mrf.mxu0
  %v975 = vadd.f32 0.0, %v974
  %976 = vdwg.mxu0
  %977 = vst.msk [vmem:[#allocation2] sm:$0xff] %vm850, %v968
  %978 = vst.msk [vmem:[#allocation2 + $0x8] sm:$0xff] %vm850, %v970
  %979 = vst.msk [vmem:[#allocation2 + $0x10] sm:$0xff] %vm850, %v973
  %980 = vst.msk [vmem:[#allocation2 + $0x18] sm:$0xff] %vm850, %v975
  %981 = vrot.lane.b32.xlu0 %v842, 64
  %v982 = vpop.permute.xlu0 %981
  %983 = vrot.lane.b32.xlu0 %v843, 64
  %v984 = vpop.permute.xlu0 %983
  %985 = vrot.lane.b32.xlu0 %v848, 64
  %v986 = vpop.permute.xlu0 %985
  %987 = vrot.lane.b32.xlu0 %v849, 64
  %v988 = vpop.permute.xlu0 %987
  %v990 = vsel %vm850, %v982, 0
  %v993 = vsel %vm850, %v984, 0
  %v996 = vsel %vm850, %v986, 0
  %v999 = vsel %vm850, %v988, 0
  %1001 = vmatpush.bf16.xpose.msra.mxu0 0
  %1002 = vmatpush.bf16.xpose.msra.mxu0 0
  %1003 = vmatpush.bf16.xpose.msra.mxu0 0
  %1004 = vmatpush.bf16.xpose.msra.mxu0 0
  %1005 = vmatpush.bf16.xpose.msra.mxu0 0
  %1006 = vmatpush.bf16.xpose.msra.mxu0 0
  %1007 = vmatpush.bf16.xpose.msra.mxu0 %v999
  %1008 = vmatpush.bf16.xpose.msra.mxu0 %v996
  %1009 = vmatmul.bf16.gmra.mxu0 %v990
  %v1010 = vpop.f32.mrf.mxu0
  %v1011 = vadd.f32 0.0, %v1010
  %v1012 = vpop.f32.mrf.mxu0
  %v1013 = vadd.f32 0.0, %v1012
  %1014 = vmatmul.bf16.gmra.mxu0 %v993
  %v1015 = vpop.f32.mrf.mxu0
  %v1016 = vadd.f32 0.0, %v1015
  %v1017 = vpop.f32.mrf.mxu0
  %v1018 = vadd.f32 0.0, %v1017
  %1019 = vdwg.mxu0
  %v1020 = vmul.f32 %v1011, 0.125
  %v1021 = vmul.f32 %v1013, 0.125
  %v1022 = vmul.f32 %v1016, 0.125
  %v1023 = vmul.f32 %v1018, 0.125
  %v1024 = vadd.f32 %v1020, %v887
  %v1025 = vadd.f32 %v1021, %v887
  %v1026 = vadd.f32 %v1022, %v887
  %v1027 = vadd.f32 %v1023, %v887
  %v1028 = vsel %vm893, %v1024, -inf
  %1029 = vmax.xlane.f32.xlu0 %v1028
  %v1030 = vpop.xlane.xlu0 %1029
  %v1031 = vsel %vm893, %v1025, -inf
  %1032 = vmax.xlane.f32.xlu0 %v1031
  %v1033 = vpop.xlane.xlu0 %1032
  %v1034 = vsel %vm893, %v1026, -inf
  %1035 = vmax.xlane.f32.xlu0 %v1034
  %v1036 = vpop.xlane.xlu0 %1035
  %v1037 = vsel %vm893, %v1027, -inf
  %1038 = vmax.xlane.f32.xlu0 %v1037
  %v1039 = vpop.xlane.xlu0 %1038
  %v1040 = vsub.f32 %v1024, %v1030
  %v1041 = vsub.f32 %v1025, %v1033
  %v1042 = vsub.f32 %v1026, %v1036
  %v1043 = vsub.f32 %v1027, %v1039
  %v1044 = vmul.f32 %v1040, 1.442695
  %v1045 = vpow.pop %v1044
  %v1046 = vmul.f32 %v1041, 1.442695
  %v1047 = vpow.pop %v1046
  %v1048 = vmul.f32 %v1042, 1.442695
  %v1049 = vpow.pop %v1048
  %v1050 = vmul.f32 %v1043, 1.442695
  %v1051 = vpow.pop %v1050
  %v1052 = vsel %vm893, %v1045, 0.0
  %1053 = vadd.xlane.f32.xlu0 %v1052
  %v1054 = vpop.xlane.xlu0 %1053
  %v1055 = vsel %vm893, %v1047, 0.0
  %1056 = vadd.xlane.f32.xlu0 %v1055
  %v1057 = vpop.xlane.xlu0 %1056
  %v1058 = vsel %vm893, %v1049, 0.0
  %1059 = vadd.xlane.f32.xlu0 %v1058
  %v1060 = vpop.xlane.xlu0 %1059
  %v1061 = vsel %vm893, %v1051, 0.0
  %1062 = vadd.xlane.f32.xlu0 %v1061
  %v1063 = vpop.xlane.xlu0 %1062
  %v1064 = vrcp.pop %v1054
  %v1065 = vrcp.pop %v1057
  %v1066 = vrcp.pop %v1060
  %v1067 = vrcp.pop %v1063
  %v1068 = vmul.f32 %v1045, %v1064
  %v1069 = vmul.f32 %v1047, %v1065
  %v1070 = vmul.f32 %v1049, %v1066
  %v1071 = vmul.f32 %v1051, %v1067
  %v1072 = vpack.c.bf16 %v1069, %v1068
  %v1073 = vpack.c.bf16 %v1071, %v1070
  %1074 = vrot.lane.b32.xlu0 %v948, 64
  %v1075 = vpop.permute.xlu0 %1074
  %1076 = vrot.lane.b32.xlu0 %v949, 64
  %v1077 = vpop.permute.xlu0 %1076
  %v1081 = vsel %vm893, %v1072, 0
  %v1084 = vsel %vm893, %v1073, 0
  %1086 = vmatpush.bf16.msra.mxu0 0
  %1087 = vmatpush.bf16.msra.mxu0 0
  %1088 = vmatpush.bf16.msra.mxu0 0
  %1089 = vmatpush.bf16.msra.mxu0 0
  %1090 = vmatpush.bf16.msra.mxu0 0
  %1091 = vmatpush.bf16.msra.mxu0 0
  %1092 = vmatpush.bf16.msra.mxu0 %v1077
  %1093 = vmatpush.bf16.msra.mxu0 %v1075
  %1094 = vmatmul.bf16.gmra.mxu0 %v1081
  %v1095 = vpop.f32.mrf.mxu0
  %v1096 = vadd.f32 0.0, %v1095
  %v1097 = vpop.f32.mrf.mxu0
  %v1098 = vadd.f32 0.0, %v1097
  %1099 = vmatmul.bf16.gmra.mxu0 %v1084
  %v1100 = vpop.f32.mrf.mxu0
  %v1101 = vadd.f32 0.0, %v1100
  %v1102 = vpop.f32.mrf.mxu0
  %v1103 = vadd.f32 0.0, %v1102
  %1104 = vdwg.mxu0
  %1109 = vrot.lane.b32.xlu0 %v1096, 64
  %v1110 = vpop.permute.xlu0 %1109
  %1111 = vrot.lane.b32.xlu0 %v1098, 64
  %v1112 = vpop.permute.xlu0 %1111
  %1113 = vrot.lane.b32.xlu0 %v1101, 64
  %v1114 = vpop.permute.xlu0 %1113
  %1115 = vrot.lane.b32.xlu0 %v1103, 64
  %v1116 = vpop.permute.xlu0 %1115
  %vm1121 = vcmask 1048064
  %1122 = vst.msk [vmem:[#allocation2] sm:$0xff] %vm1121, %v1110
  %1123 = vst.msk [vmem:[#allocation2 + $0x8] sm:$0xff] %vm1121, %v1112
  %1124 = vst.msk [vmem:[#allocation2 + $0x10] sm:$0xff] %vm1121, %v1114
  %1125 = vst.msk [vmem:[#allocation2 + $0x18] sm:$0xff] %vm1121, %v1116
  %v1126 = vld [vmem:[#allocation2] sm:$0xff]
  %v1127 = vld [vmem:[#allocation2 + $0x8] sm:$0xff]
  %v1128 = vld [vmem:[#allocation2 + $0x10] sm:$0xff]
  %v1129 = vld [vmem:[#allocation2 + $0x18] sm:$0xff]
  %v1130 = vpack.c.bf16 %v1127, %v1126
  %v1131 = vpack.c.bf16 %v1129, %v1128
  %v1132 = vld [vmem:[%s9] sm:$0xf]
  %v1133 = vld [vmem:[%s9 + $0x4] sm:$0xf]
  %v1134 = vld [vmem:[%s9 + $0x8] sm:$0xf]
  %v1135 = vld [vmem:[%s9 + $0xc] sm:$0xf]
  %v1136 = vld [vmem:[%s9 + $0x10] sm:$0xf]
  %v1137 = vld [vmem:[%s9 + $0x14] sm:$0xf]
  %v1138 = vld [vmem:[%s9 + $0x18] sm:$0xf]
  %v1139 = vld [vmem:[%s9 + $0x1c] sm:$0xf]
  %v1140 = vld [vmem:[%s9 + $0x20] sm:$0xf]
  %v1141 = vld [vmem:[%s9 + $0x24] sm:$0xf]
  %v1142 = vld [vmem:[%s9 + $0x28] sm:$0xf]
  %v1143 = vld [vmem:[%s9 + $0x2c] sm:$0xf]
  %v1144 = vld [vmem:[%s9 + $0x30] sm:$0xf]
  %v1145 = vld [vmem:[%s9 + $0x34] sm:$0xf]
  %v1146 = vld [vmem:[%s9 + $0x38] sm:$0xf]
  %v1147 = vld [vmem:[%s9 + $0x3c] sm:$0xf]
  %v1148 = vld [vmem:[%s10] sm:$0x1]
  %v1150 = vperm.slane %v1148, 0
  %v1168 = vunpack.c.l.b16 %v1132
  %v1169 = vunpack.c.l.b16 %v1133
  %v1170 = vunpack.c.l.b16 %v1134
  %v1171 = vunpack.c.l.b16 %v1135
  %v1172 = vunpack.c.l.b16 %v1136
  %v1173 = vunpack.c.l.b16 %v1137
  %v1174 = vunpack.c.l.b16 %v1138
  %v1175 = vunpack.c.l.b16 %v1139
  %v1176 = vunpack.c.l.b16 %v1140
  %v1177 = vunpack.c.l.b16 %v1141
  %v1178 = vunpack.c.l.b16 %v1142
  %v1179 = vunpack.c.l.b16 %v1143
  %v1180 = vunpack.c.l.b16 %v1144
  %v1181 = vunpack.c.l.b16 %v1145
  %v1182 = vunpack.c.l.b16 %v1146
  %v1183 = vunpack.c.l.b16 %v1147
  %v1184 = vpack.c.b16 %v1169, %v1168
  %v1185 = vpack.c.b16 %v1171, %v1170
  %v1186 = vpack.c.b16 %v1173, %v1172
  %v1187 = vpack.c.b16 %v1175, %v1174
  %v1188 = vpack.c.b16 %v1177, %v1176
  %v1189 = vpack.c.b16 %v1179, %v1178
  %v1190 = vpack.c.b16 %v1181, %v1180
  %v1191 = vpack.c.b16 %v1183, %v1182
  %1200 = vmatpush.bf16.msra.mxu0 %v1191
  %1201 = vmatpush.bf16.msra.mxu0 %v1190
  %1202 = vmatpush.bf16.msra.mxu0 %v1189
  %1203 = vmatpush.bf16.msra.mxu0 %v1188
  %1204 = vmatpush.bf16.msra.mxu0 %v1187
  %1205 = vmatpush.bf16.msra.mxu0 %v1186
  %1206 = vmatpush.bf16.msra.mxu0 %v1185
  %1207 = vmatpush.bf16.msra.mxu0 %v1184
  %1208 = vmatmul.bf16.gmra.mxu0 %v1130
  %v1209 = vpop.f32.mrf.mxu0
  %v1210 = vadd.f32 %v1150, %v1209
  %v1211 = vpop.f32.mrf.mxu0
  %v1212 = vadd.f32 %v1150, %v1211
  %1213 = vmatmul.bf16.gmra.mxu0 %v1131
  %v1214 = vpop.f32.mrf.mxu0
  %v1215 = vadd.f32 %v1150, %v1214
  %v1216 = vpop.f32.mrf.mxu0
  %v1217 = vadd.f32 %v1150, %v1216
  %1218 = vdwg.mxu0
  %v1219 = vld [vmem:[%s11] sm:$0x1]
  %v1221 = vperm.slane %v1219, 0
  %v1223 = vmul.f32 %v1221, %v1210
  %v1224 = vmul.f32 %v1221, %v1212
  %v1225 = vmul.f32 %v1221, %v1215
  %v1226 = vmul.f32 %v1221, %v1217
  %v1227 = vadd.f32 %v489, %v1223
  %v1228 = vadd.f32 %v491, %v1224
  %v1229 = vadd.f32 %v493, %v1225
  %v1230 = vadd.f32 %v494, %v1226
  %v1231 = vld [vmem:[%s12] sm:$0x1]
  %v1232 = vld [vmem:[%s13] sm:$0x1]
  %1233 = vadd.xlane.f32.xlu0 %v1227
  %v1234 = vpop.xlane.xlu0 %1233
  %1235 = vadd.xlane.f32.xlu0 %v1228
  %v1236 = vpop.xlane.xlu0 %1235
  %1237 = vadd.xlane.f32.xlu0 %v1229
  %v1238 = vpop.xlane.xlu0 %1237
  %1239 = vadd.xlane.f32.xlu0 %v1230
  %v1240 = vpop.xlane.xlu0 %1239
  %v1241 = vmul.f32 %v1234, %v512
  %v1242 = vmul.f32 %v1236, %v512
  %v1243 = vmul.f32 %v1238, %v512
  %v1244 = vmul.f32 %v1240, %v512
  %v1245 = vsub.f32 %v1227, %v1241
  %v1246 = vsub.f32 %v1228, %v1242
  %v1247 = vsub.f32 %v1229, %v1243
  %v1248 = vsub.f32 %v1230, %v1244
  %v1249 = vmul.f32 %v1245, %v1245
  %v1250 = vmul.f32 %v1246, %v1246
  %v1251 = vmul.f32 %v1247, %v1247
  %v1252 = vmul.f32 %v1248, %v1248
  %1253 = vadd.xlane.f32.xlu0 %v1249
  %v1254 = vpop.xlane.xlu0 %1253
  %1255 = vadd.xlane.f32.xlu0 %v1250
  %v1256 = vpop.xlane.xlu0 %1255
  %1257 = vadd.xlane.f32.xlu0 %v1251
  %v1258 = vpop.xlane.xlu0 %1257
  %1259 = vadd.xlane.f32.xlu0 %v1252
  %v1260 = vpop.xlane.xlu0 %1259
  %v1261 = vmul.f32 %v1254, %v512
  %v1262 = vmul.f32 %v1256, %v512
  %v1263 = vmul.f32 %v1258, %v512
  %v1264 = vmul.f32 %v1260, %v512
  %v1265 = vadd.f32 %v1261, 1e-06
  %v1266 = vadd.f32 %v1262, 1e-06
  %v1267 = vadd.f32 %v1263, 1e-06
  %v1268 = vadd.f32 %v1264, 1e-06
  %v1269 = vrsqrt.pop %v1265
  %v1270 = vmul.f32 %v1269, %v1265
  %v1271 = vmul.f32 %v1270, %v1269
  %v1272 = vmul.f32 0.5, %v1271
  %v1273 = vsub.f32 1.5, %v1272
  %v1274 = vmul.f32 %v1269, %v1273
  %vm1275 = vweird.f32 %v1265
  %vm1276 = vweird.f32 %v1269
  %vm1277 = vmor %vm1275, %vm1276
  %v1278 = vsel %vm1277, %v1269, %v1274
  %v1279 = vrsqrt.pop %v1266
  %v1280 = vmul.f32 %v1279, %v1266
  %v1281 = vmul.f32 %v1280, %v1279
  %v1282 = vmul.f32 0.5, %v1281
  %v1283 = vsub.f32 1.5, %v1282
  %v1284 = vmul.f32 %v1279, %v1283
  %vm1285 = vweird.f32 %v1266
  %vm1286 = vweird.f32 %v1279
  %vm1287 = vmor %vm1285, %vm1286
  %v1288 = vsel %vm1287, %v1279, %v1284
  %v1289 = vrsqrt.pop %v1267
  %v1290 = vmul.f32 %v1289, %v1267
  %v1291 = vmul.f32 %v1290, %v1289
  %v1292 = vmul.f32 0.5, %v1291
  %v1293 = vsub.f32 1.5, %v1292
  %v1294 = vmul.f32 %v1289, %v1293
  %vm1295 = vweird.f32 %v1267
  %vm1296 = vweird.f32 %v1289
  %vm1297 = vmor %vm1295, %vm1296
  %v1298 = vsel %vm1297, %v1289, %v1294
  %v1299 = vrsqrt.pop %v1268
  %v1300 = vmul.f32 %v1299, %v1268
  %v1301 = vmul.f32 %v1300, %v1299
  %v1302 = vmul.f32 0.5, %v1301
  %v1303 = vsub.f32 1.5, %v1302
  %v1304 = vmul.f32 %v1299, %v1303
  %vm1305 = vweird.f32 %v1268
  %vm1306 = vweird.f32 %v1299
  %vm1307 = vmor %vm1305, %vm1306
  %v1308 = vsel %vm1307, %v1299, %v1304
  %v1309 = vmul.f32 %v1245, %v1278
  %v1310 = vmul.f32 %v1246, %v1288
  %v1311 = vmul.f32 %v1247, %v1298
  %v1312 = vmul.f32 %v1248, %v1308
  %v1314 = vperm.slane %v1231, 0
  %v1316 = vmul.f32 %v1309, %v1314
  %v1317 = vmul.f32 %v1310, %v1314
  %v1318 = vmul.f32 %v1311, %v1314
  %v1319 = vmul.f32 %v1312, %v1314
  %v1321 = vperm.slane %v1232, 0
  %v1323 = vadd.f32 %v1316, %v1321
  %v1324 = vadd.f32 %v1317, %v1321
  %v1325 = vadd.f32 %v1318, %v1321
  %v1326 = vadd.f32 %v1319, %v1321
  %v1327 = vpack.c.bf16 %v1324, %v1323
  %v1328 = vpack.c.bf16 %v1326, %v1325
  %v1329 = vld [vmem:[%s14] sm:$0xff]
  %v1330 = vld [vmem:[%s14 + $0x8] sm:$0xff]
  %v1331 = vld [vmem:[%s14 + $0x10] sm:$0xff]
  %v1332 = vld [vmem:[%s14 + $0x18] sm:$0xff]
  %v1333 = vld [vmem:[%s14 + $0x20] sm:$0xff]
  %v1334 = vld [vmem:[%s14 + $0x28] sm:$0xff]
  %v1335 = vld [vmem:[%s14 + $0x30] sm:$0xff]
  %v1336 = vld [vmem:[%s14 + $0x38] sm:$0xff]
  %v1337 = vld [vmem:[%s14 + $0x40] sm:$0xff]
  %v1338 = vld [vmem:[%s14 + $0x48] sm:$0xff]
  %v1339 = vld [vmem:[%s14 + $0x50] sm:$0xff]
  %v1340 = vld [vmem:[%s14 + $0x58] sm:$0xff]
  %v1341 = vld [vmem:[%s14 + $0x60] sm:$0xff]
  %v1342 = vld [vmem:[%s14 + $0x68] sm:$0xff]
  %v1343 = vld [vmem:[%s14 + $0x70] sm:$0xff]
  %v1344 = vld [vmem:[%s14 + $0x78] sm:$0xff]
  %v1345 = vld [vmem:[%s14 + $0x80] sm:$0xff]
  %v1346 = vld [vmem:[%s14 + $0x88] sm:$0xff]
  %v1347 = vld [vmem:[%s14 + $0x90] sm:$0xff]
  %v1348 = vld [vmem:[%s14 + $0x98] sm:$0xff]
  %v1349 = vld [vmem:[%s14 + $0xa0] sm:$0xff]
  %v1350 = vld [vmem:[%s14 + $0xa8] sm:$0xff]
  %v1351 = vld [vmem:[%s14 + $0xb0] sm:$0xff]
  %v1352 = vld [vmem:[%s14 + $0xb8] sm:$0xff]
  %v1353 = vld [vmem:[%s14 + $0xc0] sm:$0xff]
  %v1354 = vld [vmem:[%s14 + $0xc8] sm:$0xff]
  %v1355 = vld [vmem:[%s14 + $0xd0] sm:$0xff]
  %v1356 = vld [vmem:[%s14 + $0xd8] sm:$0xff]
  %v1357 = vld [vmem:[%s14 + $0xe0] sm:$0xff]
  %v1358 = vld [vmem:[%s14 + $0xe8] sm:$0xff]
  %v1359 = vld [vmem:[%s14 + $0xf0] sm:$0xff]
  %v1360 = vld [vmem:[%s14 + $0xf8] sm:$0xff]
  %v1361 = vld [vmem:[%s15] sm:$0xf]
  %v1363 = vperm.slane %v1361, 0
  %v1364 = vperm.slane %v1361, 1
  %v1365 = vperm.slane %v1361, 2
  %v1366 = vperm.slane %v1361, 3
  %v1403 = vunpack.c.l.b16 %v1329
  %v1404 = vunpack.c.h.b16 %v1329
  %v1405 = vunpack.c.l.b16 %v1330
  %v1406 = vunpack.c.h.b16 %v1330
  %v1407 = vunpack.c.l.b16 %v1331
  %v1408 = vunpack.c.h.b16 %v1331
  %v1409 = vunpack.c.l.b16 %v1332
  %v1410 = vunpack.c.h.b16 %v1332
  %v1411 = vunpack.c.l.b16 %v1333
  %v1412 = vunpack.c.h.b16 %v1333
  %v1413 = vunpack.c.l.b16 %v1334
  %v1414 = vunpack.c.h.b16 %v1334
  %v1415 = vunpack.c.l.b16 %v1335
  %v1416 = vunpack.c.h.b16 %v1335
  %v1417 = vunpack.c.l.b16 %v1336
  %v1418 = vunpack.c.h.b16 %v1336
  %v1419 = vunpack.c.l.b16 %v1337
  %v1420 = vunpack.c.h.b16 %v1337
  %v1421 = vunpack.c.l.b16 %v1338
  %v1422 = vunpack.c.h.b16 %v1338
  %v1423 = vunpack.c.l.b16 %v1339
  %v1424 = vunpack.c.h.b16 %v1339
  %v1425 = vunpack.c.l.b16 %v1340
  %v1426 = vunpack.c.h.b16 %v1340
  %v1427 = vunpack.c.l.b16 %v1341
  %v1428 = vunpack.c.h.b16 %v1341
  %v1429 = vunpack.c.l.b16 %v1342
  %v1430 = vunpack.c.h.b16 %v1342
  %v1431 = vunpack.c.l.b16 %v1343
  %v1432 = vunpack.c.h.b16 %v1343
  %v1433 = vunpack.c.l.b16 %v1344
  %v1434 = vunpack.c.h.b16 %v1344
  %v1435 = vunpack.c.l.b16 %v1345
  %v1436 = vunpack.c.h.b16 %v1345
  %v1437 = vunpack.c.l.b16 %v1346
  %v1438 = vunpack.c.h.b16 %v1346
  %v1439 = vunpack.c.l.b16 %v1347
  %v1440 = vunpack.c.h.b16 %v1347
  %v1441 = vunpack.c.l.b16 %v1348
  %v1442 = vunpack.c.h.b16 %v1348
  %v1443 = vunpack.c.l.b16 %v1349
  %v1444 = vunpack.c.h.b16 %v1349
  %v1445 = vunpack.c.l.b16 %v1350
  %v1446 = vunpack.c.h.b16 %v1350
  %v1447 = vunpack.c.l.b16 %v1351
  %v1448 = vunpack.c.h.b16 %v1351
  %v1449 = vunpack.c.l.b16 %v1352
  %v1450 = vunpack.c.h.b16 %v1352
  %v1451 = vunpack.c.l.b16 %v1353
  %v1452 = vunpack.c.h.b16 %v1353
  %v1453 = vunpack.c.l.b16 %v1354
  %v1454 = vunpack.c.h.b16 %v1354
  %v1455 = vunpack.c.l.b16 %v1355
  %v1456 = vunpack.c.h.b16 %v1355
  %v1457 = vunpack.c.l.b16 %v1356
  %v1458 = vunpack.c.h.b16 %v1356
  %v1459 = vunpack.c.l.b16 %v1357
  %v1460 = vunpack.c.h.b16 %v1357
  %v1461 = vunpack.c.l.b16 %v1358
  %v1462 = vunpack.c.h.b16 %v1358
  %v1463 = vunpack.c.l.b16 %v1359
  %v1464 = vunpack.c.h.b16 %v1359
  %v1465 = vunpack.c.l.b16 %v1360
  %v1466 = vunpack.c.h.b16 %v1360
  %v1467 = vpack.c.b16 %v1407, %v1403
  %v1468 = vpack.c.b16 %v1408, %v1404
  %v1469 = vpack.c.b16 %v1409, %v1405
  %v1470 = vpack.c.b16 %v1410, %v1406
  %v1471 = vpack.c.b16 %v1415, %v1411
  %v1472 = vpack.c.b16 %v1416, %v1412
  %v1473 = vpack.c.b16 %v1417, %v1413
  %v1474 = vpack.c.b16 %v1418, %v1414
  %v1475 = vpack.c.b16 %v1423, %v1419
  %v1476 = vpack.c.b16 %v1424, %v1420
  %v1477 = vpack.c.b16 %v1425, %v1421
  %v1478 = vpack.c.b16 %v1426, %v1422
  %v1479 = vpack.c.b16 %v1431, %v1427
  %v1480 = vpack.c.b16 %v1432, %v1428
  %v1481 = vpack.c.b16 %v1433, %v1429
  %v1482 = vpack.c.b16 %v1434, %v1430
  %v1483 = vpack.c.b16 %v1439, %v1435
  %v1484 = vpack.c.b16 %v1440, %v1436
  %v1485 = vpack.c.b16 %v1441, %v1437
  %v1486 = vpack.c.b16 %v1442, %v1438
  %v1487 = vpack.c.b16 %v1447, %v1443
  %v1488 = vpack.c.b16 %v1448, %v1444
  %v1489 = vpack.c.b16 %v1449, %v1445
  %v1490 = vpack.c.b16 %v1450, %v1446
  %v1491 = vpack.c.b16 %v1455, %v1451
  %v1492 = vpack.c.b16 %v1456, %v1452
  %v1493 = vpack.c.b16 %v1457, %v1453
  %v1494 = vpack.c.b16 %v1458, %v1454
  %v1495 = vpack.c.b16 %v1463, %v1459
  %v1496 = vpack.c.b16 %v1464, %v1460
  %v1497 = vpack.c.b16 %v1465, %v1461
  %v1498 = vpack.c.b16 %v1466, %v1462
  %1531 = vmatpush.bf16.msra.mxu0 %v1495
  %1532 = vmatpush.bf16.msra.mxu0 %v1491
  %1533 = vmatpush.bf16.msra.mxu0 %v1487
  %1534 = vmatpush.bf16.msra.mxu0 %v1483
  %1535 = vmatpush.bf16.msra.mxu0 %v1479
  %1536 = vmatpush.bf16.msra.mxu0 %v1475
  %1537 = vmatpush.bf16.msra.mxu0 %v1471
  %1538 = vmatpush.bf16.msra.mxu0 %v1467
  %1539 = vmatmul.bf16.gmra.mxu0 %v1327
  %v1540 = vpop.f32.mrf.mxu0
  %v1541 = vadd.f32 %v1363, %v1540
  %v1542 = vpop.f32.mrf.mxu0
  %v1543 = vadd.f32 %v1363, %v1542
  %1544 = vmatmul.bf16.gmra.mxu0 %v1328
  %v1545 = vpop.f32.mrf.mxu0
  %v1546 = vadd.f32 %v1363, %v1545
  %v1547 = vpop.f32.mrf.mxu0
  %v1548 = vadd.f32 %v1363, %v1547
  %1549 = vdwg.mxu0
  %1550 = vmatpush.bf16.msra.mxu0 %v1496
  %1551 = vmatpush.bf16.msra.mxu0 %v1492
  %1552 = vmatpush.bf16.msra.mxu0 %v1488
  %1553 = vmatpush.bf16.msra.mxu0 %v1484
  %1554 = vmatpush.bf16.msra.mxu0 %v1480
  %1555 = vmatpush.bf16.msra.mxu0 %v1476
  %1556 = vmatpush.bf16.msra.mxu0 %v1472
  %1557 = vmatpush.bf16.msra.mxu0 %v1468
  %1558 = vmatmul.bf16.gmra.mxu0 %v1327
  %v1559 = vpop.f32.mrf.mxu0
  %v1560 = vadd.f32 %v1364, %v1559
  %v1561 = vpop.f32.mrf.mxu0
  %v1562 = vadd.f32 %v1364, %v1561
  %1563 = vmatmul.bf16.gmra.mxu0 %v1328
  %v1564 = vpop.f32.mrf.mxu0
  %v1565 = vadd.f32 %v1364, %v1564
  %v1566 = vpop.f32.mrf.mxu0
  %v1567 = vadd.f32 %v1364, %v1566
  %1568 = vdwg.mxu0
  %1569 = vmatpush.bf16.msra.mxu0 %v1497
  %1570 = vmatpush.bf16.msra.mxu0 %v1493
  %1571 = vmatpush.bf16.msra.mxu0 %v1489
  %1572 = vmatpush.bf16.msra.mxu0 %v1485
  %1573 = vmatpush.bf16.msra.mxu0 %v1481
  %1574 = vmatpush.bf16.msra.mxu0 %v1477
  %1575 = vmatpush.bf16.msra.mxu0 %v1473
  %1576 = vmatpush.bf16.msra.mxu0 %v1469
  %1577 = vmatmul.bf16.gmra.mxu0 %v1327
  %v1578 = vpop.f32.mrf.mxu0
  %v1579 = vadd.f32 %v1365, %v1578
  %v1580 = vpop.f32.mrf.mxu0
  %v1581 = vadd.f32 %v1365, %v1580
  %1582 = vmatmul.bf16.gmra.mxu0 %v1328
  %v1583 = vpop.f32.mrf.mxu0
  %v1584 = vadd.f32 %v1365, %v1583
  %v1585 = vpop.f32.mrf.mxu0
  %v1586 = vadd.f32 %v1365, %v1585
  %1587 = vdwg.mxu0
  %1588 = vmatpush.bf16.msra.mxu0 %v1498
  %1589 = vmatpush.bf16.msra.mxu0 %v1494
  %1590 = vmatpush.bf16.msra.mxu0 %v1490
  %1591 = vmatpush.bf16.msra.mxu0 %v1486
  %1592 = vmatpush.bf16.msra.mxu0 %v1482
  %1593 = vmatpush.bf16.msra.mxu0 %v1478
  %1594 = vmatpush.bf16.msra.mxu0 %v1474
  %1595 = vmatpush.bf16.msra.mxu0 %v1470
  %1596 = vmatmul.bf16.gmra.mxu0 %v1327
  %v1597 = vpop.f32.mrf.mxu0
  %v1598 = vadd.f32 %v1366, %v1597
  %v1599 = vpop.f32.mrf.mxu0
  %v1600 = vadd.f32 %v1366, %v1599
  %1601 = vmatmul.bf16.gmra.mxu0 %v1328
  %v1602 = vpop.f32.mrf.mxu0
  %v1603 = vadd.f32 %v1366, %v1602
  %v1604 = vpop.f32.mrf.mxu0
  %v1605 = vadd.f32 %v1366, %v1604
  %1606 = vdwg.mxu0
  %v1607 = vmul.f32 %v1541, %v1541
  %v1608 = vmul.f32 %v1560, %v1560
  %v1609 = vmul.f32 %v1579, %v1579
  %v1610 = vmul.f32 %v1598, %v1598
  %v1611 = vmul.f32 %v1543, %v1543
  %v1612 = vmul.f32 %v1562, %v1562
  %v1613 = vmul.f32 %v1581, %v1581
  %v1614 = vmul.f32 %v1600, %v1600
  %v1615 = vmul.f32 %v1546, %v1546
  %v1616 = vmul.f32 %v1565, %v1565
  %v1617 = vmul.f32 %v1584, %v1584
  %v1618 = vmul.f32 %v1603, %v1603
  %v1619 = vmul.f32 %v1548, %v1548
  %v1620 = vmul.f32 %v1567, %v1567
  %v1621 = vmul.f32 %v1586, %v1586
  %v1622 = vmul.f32 %v1605, %v1605
  %v1623 = vmul.f32 %v1541, %v1607
  %v1624 = vmul.f32 %v1560, %v1608
  %v1625 = vmul.f32 %v1579, %v1609
  %v1626 = vmul.f32 %v1598, %v1610
  %v1627 = vmul.f32 %v1543, %v1611
  %v1628 = vmul.f32 %v1562, %v1612
  %v1629 = vmul.f32 %v1581, %v1613
  %v1630 = vmul.f32 %v1600, %v1614
  %v1631 = vmul.f32 %v1546, %v1615
  %v1632 = vmul.f32 %v1565, %v1616
  %v1633 = vmul.f32 %v1584, %v1617
  %v1634 = vmul.f32 %v1603, %v1618
  %v1635 = vmul.f32 %v1548, %v1619
  %v1636 = vmul.f32 %v1567, %v1620
  %v1637 = vmul.f32 %v1586, %v1621
  %v1638 = vmul.f32 %v1605, %v1622
  %v1639 = vmul.f32 %v1623, 0.044715
  %v1640 = vmul.f32 %v1624, 0.044715
  %v1641 = vmul.f32 %v1625, 0.044715
  %v1642 = vmul.f32 %v1626, 0.044715
  %v1643 = vmul.f32 %v1627, 0.044715
  %v1644 = vmul.f32 %v1628, 0.044715
  %v1645 = vmul.f32 %v1629, 0.044715
  %v1646 = vmul.f32 %v1630, 0.044715
  %v1647 = vmul.f32 %v1631, 0.044715
  %v1648 = vmul.f32 %v1632, 0.044715
  %v1649 = vmul.f32 %v1633, 0.044715
  %v1650 = vmul.f32 %v1634, 0.044715
  %v1651 = vmul.f32 %v1635, 0.044715
  %v1652 = vmul.f32 %v1636, 0.044715
  %v1653 = vmul.f32 %v1637, 0.044715
  %v1654 = vmul.f32 %v1638, 0.044715
  %v1655 = vadd.f32 %v1541, %v1639
  %v1656 = vadd.f32 %v1560, %v1640
  %v1657 = vadd.f32 %v1579, %v1641
  %v1658 = vadd.f32 %v1598, %v1642
  %v1659 = vadd.f32 %v1543, %v1643
  %v1660 = vadd.f32 %v1562, %v1644
  %v1661 = vadd.f32 %v1581, %v1645
  %v1662 = vadd.f32 %v1600, %v1646
  %v1663 = vadd.f32 %v1546, %v1647
  %v1664 = vadd.f32 %v1565, %v1648
  %v1665 = vadd.f32 %v1584, %v1649
  %v1666 = vadd.f32 %v1603, %v1650
  %v1667 = vadd.f32 %v1548, %v1651
  %v1668 = vadd.f32 %v1567, %v1652
  %v1669 = vadd.f32 %v1586, %v1653
  %v1670 = vadd.f32 %v1605, %v1654
  %v1671 = vmul.f32 %v1655, 0.7978846
  %v1672 = vmul.f32 %v1656, 0.7978846
  %v1673 = vmul.f32 %v1657, 0.7978846
  %v1674 = vmul.f32 %v1658, 0.7978846
  %v1675 = vmul.f32 %v1659, 0.7978846
  %v1676 = vmul.f32 %v1660, 0.7978846
  %v1677 = vmul.f32 %v1661, 0.7978846
  %v1678 = vmul.f32 %v1662, 0.7978846
  %v1679 = vmul.f32 %v1663, 0.7978846
  %v1680 = vmul.f32 %v1664, 0.7978846
  %v1681 = vmul.f32 %v1665, 0.7978846
  %v1682 = vmul.f32 %v1666, 0.7978846
  %v1683 = vmul.f32 %v1667, 0.7978846
  %v1684 = vmul.f32 %v1668, 0.7978846
  %v1685 = vmul.f32 %v1669, 0.7978846
  %v1686 = vmul.f32 %v1670, 0.7978846
  %v1687 = vtanh.pop %v1671
  %v1688 = vtanh.pop %v1672
  %v1689 = vtanh.pop %v1673
  %v1690 = vtanh.pop %v1674
  %v1691 = vtanh.pop %v1675
  %v1692 = vtanh.pop %v1676
  %v1693 = vtanh.pop %v1677
  %v1694 = vtanh.pop %v1678
  %v1695 = vtanh.pop %v1679
  %v1696 = vtanh.pop %v1680
  %v1697 = vtanh.pop %v1681
  %v1698 = vtanh.pop %v1682
  %v1699 = vtanh.pop %v1683
  %v1700 = vtanh.pop %v1684
  %v1701 = vtanh.pop %v1685
  %v1702 = vtanh.pop %v1686
  %v1703 = vadd.f32 %v1687, 1.0
  %v1704 = vadd.f32 %v1688, 1.0
  %v1705 = vadd.f32 %v1689, 1.0
  %v1706 = vadd.f32 %v1690, 1.0
  %v1707 = vadd.f32 %v1691, 1.0
  %v1708 = vadd.f32 %v1692, 1.0
  %v1709 = vadd.f32 %v1693, 1.0
  %v1710 = vadd.f32 %v1694, 1.0
  %v1711 = vadd.f32 %v1695, 1.0
  %v1712 = vadd.f32 %v1696, 1.0
  %v1713 = vadd.f32 %v1697, 1.0
  %v1714 = vadd.f32 %v1698, 1.0
  %v1715 = vadd.f32 %v1699, 1.0
  %v1716 = vadd.f32 %v1700, 1.0
  %v1717 = vadd.f32 %v1701, 1.0
  %v1718 = vadd.f32 %v1702, 1.0
  %v1719 = vmul.f32 %v1703, 0.5
  %v1720 = vmul.f32 %v1704, 0.5
  %v1721 = vmul.f32 %v1705, 0.5
  %v1722 = vmul.f32 %v1706, 0.5
  %v1723 = vmul.f32 %v1707, 0.5
  %v1724 = vmul.f32 %v1708, 0.5
  %v1725 = vmul.f32 %v1709, 0.5
  %v1726 = vmul.f32 %v1710, 0.5
  %v1727 = vmul.f32 %v1711, 0.5
  %v1728 = vmul.f32 %v1712, 0.5
  %v1729 = vmul.f32 %v1713, 0.5
  %v1730 = vmul.f32 %v1714, 0.5
  %v1731 = vmul.f32 %v1715, 0.5
  %v1732 = vmul.f32 %v1716, 0.5
  %v1733 = vmul.f32 %v1717, 0.5
  %v1734 = vmul.f32 %v1718, 0.5
  %v1735 = vmul.f32 %v1541, %v1719
  %v1736 = vmul.f32 %v1560, %v1720
  %v1737 = vmul.f32 %v1579, %v1721
  %v1738 = vmul.f32 %v1598, %v1722
  %v1739 = vmul.f32 %v1543, %v1723
  %v1740 = vmul.f32 %v1562, %v1724
  %v1741 = vmul.f32 %v1581, %v1725
  %v1742 = vmul.f32 %v1600, %v1726
  %v1743 = vmul.f32 %v1546, %v1727
  %v1744 = vmul.f32 %v1565, %v1728
  %v1745 = vmul.f32 %v1584, %v1729
  %v1746 = vmul.f32 %v1603, %v1730
  %v1747 = vmul.f32 %v1548, %v1731
  %v1748 = vmul.f32 %v1567, %v1732
  %v1749 = vmul.f32 %v1586, %v1733
  %v1750 = vmul.f32 %v1605, %v1734
  %v1751 = vpack.c.bf16 %v1739, %v1735
  %v1752 = vpack.c.bf16 %v1740, %v1736
  %v1753 = vpack.c.bf16 %v1741, %v1737
  %v1754 = vpack.c.bf16 %v1742, %v1738
  %v1755 = vpack.c.bf16 %v1747, %v1743
  %v1756 = vpack.c.bf16 %v1748, %v1744
  %v1757 = vpack.c.bf16 %v1749, %v1745
  %v1758 = vpack.c.bf16 %v1750, %v1746
  %v1759 = vld [vmem:[%s16] sm:$0xf]
  %v1760 = vld [vmem:[%s16 + $0x4] sm:$0xf]
  %v1761 = vld [vmem:[%s16 + $0x8] sm:$0xf]
  %v1762 = vld [vmem:[%s16 + $0xc] sm:$0xf]
  %v1763 = vld [vmem:[%s16 + $0x10] sm:$0xf]
  %v1764 = vld [vmem:[%s16 + $0x14] sm:$0xf]
  %v1765 = vld [vmem:[%s16 + $0x18] sm:$0xf]
  %v1766 = vld [vmem:[%s16 + $0x1c] sm:$0xf]
  %v1767 = vld [vmem:[%s16 + $0x20] sm:$0xf]
  %v1768 = vld [vmem:[%s16 + $0x24] sm:$0xf]
  %v1769 = vld [vmem:[%s16 + $0x28] sm:$0xf]
  %v1770 = vld [vmem:[%s16 + $0x2c] sm:$0xf]
  %v1771 = vld [vmem:[%s16 + $0x30] sm:$0xf]
  %v1772 = vld [vmem:[%s16 + $0x34] sm:$0xf]
  %v1773 = vld [vmem:[%s16 + $0x38] sm:$0xf]
  %v1774 = vld [vmem:[%s16 + $0x3c] sm:$0xf]
  %v1775 = vld [vmem:[%s16 + $0x40] sm:$0xf]
  %v1776 = vld [vmem:[%s16 + $0x44] sm:$0xf]
  %v1777 = vld [vmem:[%s16 + $0x48] sm:$0xf]
  %v1778 = vld [vmem:[%s16 + $0x4c] sm:$0xf]
  %v1779 = vld [vmem:[%s16 + $0x50] sm:$0xf]
  %v1780 = vld [vmem:[%s16 + $0x54] sm:$0xf]
  %v1781 = vld [vmem:[%s16 + $0x58] sm:$0xf]
  %v1782 = vld [vmem:[%s16 + $0x5c] sm:$0xf]
  %v1783 = vld [vmem:[%s16 + $0x60] sm:$0xf]
  %v1784 = vld [vmem:[%s16 + $0x64] sm:$0xf]
  %v1785 = vld [vmem:[%s16 + $0x68] sm:$0xf]
  %v1786 = vld [vmem:[%s16 + $0x6c] sm:$0xf]
  %v1787 = vld [vmem:[%s16 + $0x70] sm:$0xf]
  %v1788 = vld [vmem:[%s16 + $0x74] sm:$0xf]
  %v1789 = vld [vmem:[%s16 + $0x78] sm:$0xf]
  %v1790 = vld [vmem:[%s16 + $0x7c] sm:$0xf]
  %v1791 = vld [vmem:[%s16 + $0x80] sm:$0xf]
  %v1792 = vld [vmem:[%s16 + $0x84] sm:$0xf]
  %v1793 = vld [vmem:[%s16 + $0x88] sm:$0xf]
  %v1794 = vld [vmem:[%s16 + $0x8c] sm:$0xf]
  %v1795 = vld [vmem:[%s16 + $0x90] sm:$0xf]
  %v1796 = vld [vmem:[%s16 + $0x94] sm:$0xf]
  %v1797 = vld [vmem:[%s16 + $0x98] sm:$0xf]
  %v1798 = vld [vmem:[%s16 + $0x9c] sm:$0xf]
  %v1799 = vld [vmem:[%s16 + $0xa0] sm:$0xf]
  %v1800 = vld [vmem:[%s16 + $0xa4] sm:$0xf]
  %v1801 = vld [vmem:[%s16 + $0xa8] sm:$0xf]
  %v1802 = vld [vmem:[%s16 + $0xac] sm:$0xf]
  %v1803 = vld [vmem:[%s16 + $0xb0] sm:$0xf]
  %v1804 = vld [vmem:[%s16 + $0xb4] sm:$0xf]
  %v1805 = vld [vmem:[%s16 + $0xb8] sm:$0xf]
  %v1806 = vld [vmem:[%s16 + $0xbc] sm:$0xf]
  %v1807 = vld [vmem:[%s16 + $0xc0] sm:$0xf]
  %v1808 = vld [vmem:[%s16 + $0xc4] sm:$0xf]
  %v1809 = vld [vmem:[%s16 + $0xc8] sm:$0xf]
  %v1810 = vld [vmem:[%s16 + $0xcc] sm:$0xf]
  %v1811 = vld [vmem:[%s16 + $0xd0] sm:$0xf]
  %v1812 = vld [vmem:[%s16 + $0xd4] sm:$0xf]
  %v1813 = vld [vmem:[%s16 + $0xd8] sm:$0xf]
  %v1814 = vld [vmem:[%s16 + $0xdc] sm:$0xf]
  %v1815 = vld [vmem:[%s16 + $0xe0] sm:$0xf]
  %v1816 = vld [vmem:[%s16 + $0xe4] sm:$0xf]
  %v1817 = vld [vmem:[%s16 + $0xe8] sm:$0xf]
  %v1818 = vld [vmem:[%s16 + $0xec] sm:$0xf]
  %v1819 = vld [vmem:[%s16 + $0xf0] sm:$0xf]
  %v1820 = vld [vmem:[%s16 + $0xf4] sm:$0xf]
  %v1821 = vld [vmem:[%s16 + $0xf8] sm:$0xf]
  %v1822 = vld [vmem:[%s16 + $0xfc] sm:$0xf]
  %v1823 = vld [vmem:[%s17] sm:$0x1]
  %v1825 = vperm.slane %v1823, 0
  %v1891 = vunpack.c.l.b16 %v1759
  %v1892 = vunpack.c.l.b16 %v1760
  %v1893 = vunpack.c.l.b16 %v1761
  %v1894 = vunpack.c.l.b16 %v1762
  %v1895 = vunpack.c.l.b16 %v1763
  %v1896 = vunpack.c.l.b16 %v1764
  %v1897 = vunpack.c.l.b16 %v1765
  %v1898 = vunpack.c.l.b16 %v1766
  %v1899 = vunpack.c.l.b16 %v1767
  %v1900 = vunpack.c.l.b16 %v1768
  %v1901 = vunpack.c.l.b16 %v1769
  %v1902 = vunpack.c.l.b16 %v1770
  %v1903 = vunpack.c.l.b16 %v1771
  %v1904 = vunpack.c.l.b16 %v1772
  %v1905 = vunpack.c.l.b16 %v1773
  %v1906 = vunpack.c.l.b16 %v1774
  %v1907 = vunpack.c.l.b16 %v1775
  %v1908 = vunpack.c.l.b16 %v1776
  %v1909 = vunpack.c.l.b16 %v1777
  %v1910 = vunpack.c.l.b16 %v1778
  %v1911 = vunpack.c.l.b16 %v1779
  %v1912 = vunpack.c.l.b16 %v1780
  %v1913 = vunpack.c.l.b16 %v1781
  %v1914 = vunpack.c.l.b16 %v1782
  %v1915 = vunpack.c.l.b16 %v1783
  %v1916 = vunpack.c.l.b16 %v1784
  %v1917 = vunpack.c.l.b16 %v1785
  %v1918 = vunpack.c.l.b16 %v1786
  %v1919 = vunpack.c.l.b16 %v1787
  %v1920 = vunpack.c.l.b16 %v1788
  %v1921 = vunpack.c.l.b16 %v1789
  %v1922 = vunpack.c.l.b16 %v1790
  %v1923 = vunpack.c.l.b16 %v1791
  %v1924 = vunpack.c.l.b16 %v1792
  %v1925 = vunpack.c.l.b16 %v1793
  %v1926 = vunpack.c.l.b16 %v1794
  %v1927 = vunpack.c.l.b16 %v1795
  %v1928 = vunpack.c.l.b16 %v1796
  %v1929 = vunpack.c.l.b16 %v1797
  %v1930 = vunpack.c.l.b16 %v1798
  %v1931 = vunpack.c.l.b16 %v1799
  %v1932 = vunpack.c.l.b16 %v1800
  %v1933 = vunpack.c.l.b16 %v1801
  %v1934 = vunpack.c.l.b16 %v1802
  %v1935 = vunpack.c.l.b16 %v1803
  %v1936 = vunpack.c.l.b16 %v1804
  %v1937 = vunpack.c.l.b16 %v1805
  %v1938 = vunpack.c.l.b16 %v1806
  %v1939 = vunpack.c.l.b16 %v1807
  %v1940 = vunpack.c.l.b16 %v1808
  %v1941 = vunpack.c.l.b16 %v1809
  %v1942 = vunpack.c.l.b16 %v1810
  %v1943 = vunpack.c.l.b16 %v1811
  %v1944 = vunpack.c.l.b16 %v1812
  %v1945 = vunpack.c.l.b16 %v1813
  %v1946 = vunpack.c.l.b16 %v1814
  %v1947 = vunpack.c.l.b16 %v1815
  %v1948 = vunpack.c.l.b16 %v1816
  %v1949 = vunpack.c.l.b16 %v1817
  %v1950 = vunpack.c.l.b16 %v1818
  %v1951 = vunpack.c.l.b16 %v1819
  %v1952 = vunpack.c.l.b16 %v1820
  %v1953 = vunpack.c.l.b16 %v1821
  %v1954 = vunpack.c.l.b16 %v1822
  %v1955 = vpack.c.b16 %v1892, %v1891
  %v1956 = vpack.c.b16 %v1894, %v1893
  %v1957 = vpack.c.b16 %v1896, %v1895
  %v1958 = vpack.c.b16 %v1898, %v1897
  %v1959 = vpack.c.b16 %v1900, %v1899
  %v1960 = vpack.c.b16 %v1902, %v1901
  %v1961 = vpack.c.b16 %v1904, %v1903
  %v1962 = vpack.c.b16 %v1906, %v1905
  %v1963 = vpack.c.b16 %v1908, %v1907
  %v1964 = vpack.c.b16 %v1910, %v1909
  %v1965 = vpack.c.b16 %v1912, %v1911
  %v1966 = vpack.c.b16 %v1914, %v1913
  %v1967 = vpack.c.b16 %v1916, %v1915
  %v1968 = vpack.c.b16 %v1918, %v1917
  %v1969 = vpack.c.b16 %v1920, %v1919
  %v1970 = vpack.c.b16 %v1922, %v1921
  %v1971 = vpack.c.b16 %v1924, %v1923
  %v1972 = vpack.c.b16 %v1926, %v1925
  %v1973 = vpack.c.b16 %v1928, %v1927
  %v1974 = vpack.c.b16 %v1930, %v1929
  %v1975 = vpack.c.b16 %v1932, %v1931
  %v1976 = vpack.c.b16 %v1934, %v1933
  %v1977 = vpack.c.b16 %v1936, %v1935
  %v1978 = vpack.c.b16 %v1938, %v1937
  %v1979 = vpack.c.b16 %v1940, %v1939
  %v1980 = vpack.c.b16 %v1942, %v1941
  %v1981 = vpack.c.b16 %v1944, %v1943
  %v1982 = vpack.c.b16 %v1946, %v1945
  %v1983 = vpack.c.b16 %v1948, %v1947
  %v1984 = vpack.c.b16 %v1950, %v1949
  %v1985 = vpack.c.b16 %v1952, %v1951
  %v1986 = vpack.c.b16 %v1954, %v1953
  %2019 = vmatpush.bf16.msra.mxu0 %v1962
  %2020 = vmatpush.bf16.msra.mxu0 %v1961
  %2021 = vmatpush.bf16.msra.mxu0 %v1960
  %2022 = vmatpush.bf16.msra.mxu0 %v1959
  %2023 = vmatpush.bf16.msra.mxu0 %v1958
  %2024 = vmatpush.bf16.msra.mxu0 %v1957
  %2025 = vmatpush.bf16.msra.mxu0 %v1956
  %2026 = vmatpush.bf16.msra.mxu0 %v1955
  %2027 = vmatmul.bf16.gmra.mxu0 %v1751
  %v2028 = vpop.f32.mrf.mxu0
  %v2029 = vadd.f32 %v1825, %v2028
  %v2030 = vpop.f32.mrf.mxu0
  %v2031 = vadd.f32 %v1825, %v2030
  %2032 = vmatmul.bf16.gmra.mxu0 %v1755
  %v2033 = vpop.f32.mrf.mxu0
  %v2034 = vadd.f32 %v1825, %v2033
  %v2035 = vpop.f32.mrf.mxu0
  %v2036 = vadd.f32 %v1825, %v2035
  %2037 = vdwg.mxu0
  %2038 = vmatpush.bf16.msra.mxu0 %v1970
  %2039 = vmatpush.bf16.msra.mxu0 %v1969
  %2040 = vmatpush.bf16.msra.mxu0 %v1968
  %2041 = vmatpush.bf16.msra.mxu0 %v1967
  %2042 = vmatpush.bf16.msra.mxu0 %v1966
  %2043 = vmatpush.bf16.msra.mxu0 %v1965
  %2044 = vmatpush.bf16.msra.mxu0 %v1964
  %2045 = vmatpush.bf16.msra.mxu0 %v1963
  %2046 = vmatmul.bf16.gmra.mxu0 %v1752
  %v2047 = vpop.f32.mrf.mxu0
  %v2048 = vadd.f32 %v2029, %v2047
  %v2049 = vpop.f32.mrf.mxu0
  %v2050 = vadd.f32 %v2031, %v2049
  %2051 = vmatmul.bf16.gmra.mxu0 %v1756
  %v2052 = vpop.f32.mrf.mxu0
  %v2053 = vadd.f32 %v2034, %v2052
  %v2054 = vpop.f32.mrf.mxu0
  %v2055 = vadd.f32 %v2036, %v2054
  %2056 = vdwg.mxu0
  %2057 = vmatpush.bf16.msra.mxu0 %v1978
  %2058 = vmatpush.bf16.msra.mxu0 %v1977
  %2059 = vmatpush.bf16.msra.mxu0 %v1976
  %2060 = vmatpush.bf16.msra.mxu0 %v1975
  %2061 = vmatpush.bf16.msra.mxu0 %v1974
  %2062 = vmatpush.bf16.msra.mxu0 %v1973
  %2063 = vmatpush.bf16.msra.mxu0 %v1972
  %2064 = vmatpush.bf16.msra.mxu0 %v1971
  %2065 = vmatmul.bf16.gmra.mxu0 %v1753
  %v2066 = vpop.f32.mrf.mxu0
  %v2067 = vadd.f32 %v2048, %v2066
  %v2068 = vpop.f32.mrf.mxu0
  %v2069 = vadd.f32 %v2050, %v2068
  %2070 = vmatmul.bf16.gmra.mxu0 %v1757
  %v2071 = vpop.f32.mrf.mxu0
  %v2072 = vadd.f32 %v2053, %v2071
  %v2073 = vpop.f32.mrf.mxu0
  %v2074 = vadd.f32 %v2055, %v2073
  %2075 = vdwg.mxu0
  %2076 = vmatpush.bf16.msra.mxu0 %v1986
  %2077 = vmatpush.bf16.msra.mxu0 %v1985
  %2078 = vmatpush.bf16.msra.mxu0 %v1984
  %2079 = vmatpush.bf16.msra.mxu0 %v1983
  %2080 = vmatpush.bf16.msra.mxu0 %v1982
  %2081 = vmatpush.bf16.msra.mxu0 %v1981
  %2082 = vmatpush.bf16.msra.mxu0 %v1980
  %2083 = vmatpush.bf16.msra.mxu0 %v1979
  %2084 = vmatmul.bf16.gmra.mxu0 %v1754
  %v2085 = vpop.f32.mrf.mxu0
  %v2086 = vadd.f32 %v2067, %v2085
  %v2087 = vpop.f32.mrf.mxu0
  %v2088 = vadd.f32 %v2069, %v2087
  %2089 = vmatmul.bf16.gmra.mxu0 %v1758
  %v2090 = vpop.f32.mrf.mxu0
  %v2091 = vadd.f32 %v2072, %v2090
  %v2092 = vpop.f32.mrf.mxu0
  %v2093 = vadd.f32 %v2074, %v2092
  %2094 = vdwg.mxu0
  %v2095 = vld [vmem:[%s18] sm:$0x1]
  %v2097 = vperm.slane %v2095, 0
  %v2099 = vmul.f32 %v2097, %v2086
  %v2100 = vmul.f32 %v2097, %v2088
  %v2101 = vmul.f32 %v2097, %v2091
  %v2102 = vmul.f32 %v2097, %v2093
  %v2103 = vadd.f32 %v1227, %v2099
  %v2104 = vadd.f32 %v1228, %v2100
  %v2105 = vadd.f32 %v1229, %v2101
  %v2106 = vadd.f32 %v1230, %v2102
  %s2107 = scalar_lea.vmem %s5, 1
  %v2108 = vld [vmem:[%s2107] sm:$0x1]
  %s2109 = scalar_lea.vmem %s6, 1
  %v2110 = vld [vmem:[%s2109] sm:$0x1]
  %2111 = vadd.xlane.f32.xlu0 %v2103
  %v2112 = vpop.xlane.xlu0 %2111
  %2113 = vadd.xlane.f32.xlu0 %v2104
  %v2114 = vpop.xlane.xlu0 %2113
  %2115 = vadd.xlane.f32.xlu0 %v2105
  %v2116 = vpop.xlane.xlu0 %2115
  %2117 = vadd.xlane.f32.xlu0 %v2106
  %v2118 = vpop.xlane.xlu0 %2117
  %v2119 = vmul.f32 %v2112, %v512
  %v2120 = vmul.f32 %v2114, %v512
  %v2121 = vmul.f32 %v2116, %v512
  %v2122 = vmul.f32 %v2118, %v512
  %v2123 = vsub.f32 %v2103, %v2119
  %v2124 = vsub.f32 %v2104, %v2120
  %v2125 = vsub.f32 %v2105, %v2121
  %v2126 = vsub.f32 %v2106, %v2122
  %v2127 = vmul.f32 %v2123, %v2123
  %v2128 = vmul.f32 %v2124, %v2124
  %v2129 = vmul.f32 %v2125, %v2125
  %v2130 = vmul.f32 %v2126, %v2126
  %2131 = vadd.xlane.f32.xlu0 %v2127
  %v2132 = vpop.xlane.xlu0 %2131
  %2133 = vadd.xlane.f32.xlu0 %v2128
  %v2134 = vpop.xlane.xlu0 %2133
  %2135 = vadd.xlane.f32.xlu0 %v2129
  %v2136 = vpop.xlane.xlu0 %2135
  %2137 = vadd.xlane.f32.xlu0 %v2130
  %v2138 = vpop.xlane.xlu0 %2137
  %v2139 = vmul.f32 %v2132, %v512
  %v2140 = vmul.f32 %v2134, %v512
  %v2141 = vmul.f32 %v2136, %v512
  %v2142 = vmul.f32 %v2138, %v512
  %v2143 = vadd.f32 %v2139, 1e-06
  %v2144 = vadd.f32 %v2140, 1e-06
  %v2145 = vadd.f32 %v2141, 1e-06
  %v2146 = vadd.f32 %v2142, 1e-06
  %v2147 = vrsqrt.pop %v2143
  %v2148 = vmul.f32 %v2147, %v2143
  %v2149 = vmul.f32 %v2148, %v2147
  %v2150 = vmul.f32 0.5, %v2149
  %v2151 = vsub.f32 1.5, %v2150
  %v2152 = vmul.f32 %v2147, %v2151
  %vm2153 = vweird.f32 %v2143
  %vm2154 = vweird.f32 %v2147
  %vm2155 = vmor %vm2153, %vm2154
  %v2156 = vsel %vm2155, %v2147, %v2152
  %v2157 = vrsqrt.pop %v2144
  %v2158 = vmul.f32 %v2157, %v2144
  %v2159 = vmul.f32 %v2158, %v2157
  %v2160 = vmul.f32 0.5, %v2159
  %v2161 = vsub.f32 1.5, %v2160
  %v2162 = vmul.f32 %v2157, %v2161
  %vm2163 = vweird.f32 %v2144
  %vm2164 = vweird.f32 %v2157
  %vm2165 = vmor %vm2163, %vm2164
  %v2166 = vsel %vm2165, %v2157, %v2162
  %v2167 = vrsqrt.pop %v2145
  %v2168 = vmul.f32 %v2167, %v2145
  %v2169 = vmul.f32 %v2168, %v2167
  %v2170 = vmul.f32 0.5, %v2169
  %v2171 = vsub.f32 1.5, %v2170
  %v2172 = vmul.f32 %v2167, %v2171
  %vm2173 = vweird.f32 %v2145
  %vm2174 = vweird.f32 %v2167
  %vm2175 = vmor %vm2173, %vm2174
  %v2176 = vsel %vm2175, %v2167, %v2172
  %v2177 = vrsqrt.pop %v2146
  %v2178 = vmul.f32 %v2177, %v2146
  %v2179 = vmul.f32 %v2178, %v2177
  %v2180 = vmul.f32 0.5, %v2179
  %v2181 = vsub.f32 1.5, %v2180
  %v2182 = vmul.f32 %v2177, %v2181
  %vm2183 = vweird.f32 %v2146
  %vm2184 = vweird.f32 %v2177
  %vm2185 = vmor %vm2183, %vm2184
  %v2186 = vsel %vm2185, %v2177, %v2182
  %v2187 = vmul.f32 %v2123, %v2156
  %v2188 = vmul.f32 %v2124, %v2166
  %v2189 = vmul.f32 %v2125, %v2176
  %v2190 = vmul.f32 %v2126, %v2186
  %v2192 = vperm.slane %v2108, 0
  %v2194 = vmul.f32 %v2187, %v2192
  %v2195 = vmul.f32 %v2188, %v2192
  %v2196 = vmul.f32 %v2189, %v2192
  %v2197 = vmul.f32 %v2190, %v2192
  %v2199 = vperm.slane %v2110, 0
  %v2201 = vadd.f32 %v2194, %v2199
  %v2202 = vadd.f32 %v2195, %v2199
  %v2203 = vadd.f32 %v2196, %v2199
  %v2204 = vadd.f32 %v2197, %v2199
  %v2205 = vpack.c.bf16 %v2202, %v2201
  %v2206 = vpack.c.bf16 %v2204, %v2203
  %s2207 = scalar_lea.vmem %s7, 192
  %v2208 = vld [vmem:[%s2207] sm:$0xff]
  %v2209 = vld [vmem:[%s2207 + $0x8] sm:$0xf]
  %v2210 = vld [vmem:[%s2207 + $0xc] sm:$0xff]
  %v2211 = vld [vmem:[%s2207 + $0x14] sm:$0xf]
  %v2212 = vld [vmem:[%s2207 + $0x18] sm:$0xff]
  %v2213 = vld [vmem:[%s2207 + $0x20] sm:$0xf]
  %v2214 = vld [vmem:[%s2207 + $0x24] sm:$0xff]
  %v2215 = vld [vmem:[%s2207 + $0x2c] sm:$0xf]
  %v2216 = vld [vmem:[%s2207 + $0x30] sm:$0xff]
  %v2217 = vld [vmem:[%s2207 + $0x38] sm:$0xf]
  %v2218 = vld [vmem:[%s2207 + $0x3c] sm:$0xff]
  %v2219 = vld [vmem:[%s2207 + $0x44] sm:$0xf]
  %v2220 = vld [vmem:[%s2207 + $0x48] sm:$0xff]
  %v2221 = vld [vmem:[%s2207 + $0x50] sm:$0xf]
  %v2222 = vld [vmem:[%s2207 + $0x54] sm:$0xff]
  %v2223 = vld [vmem:[%s2207 + $0x5c] sm:$0xf]
  %v2224 = vld [vmem:[%s2207 + $0x60] sm:$0xff]
  %v2225 = vld [vmem:[%s2207 + $0x68] sm:$0xf]
  %v2226 = vld [vmem:[%s2207 + $0x6c] sm:$0xff]
  %v2227 = vld [vmem:[%s2207 + $0x74] sm:$0xf]
  %v2228 = vld [vmem:[%s2207 + $0x78] sm:$0xff]
  %v2229 = vld [vmem:[%s2207 + $0x80] sm:$0xf]
  %v2230 = vld [vmem:[%s2207 + $0x84] sm:$0xff]
  %v2231 = vld [vmem:[%s2207 + $0x8c] sm:$0xf]
  %v2232 = vld [vmem:[%s2207 + $0x90] sm:$0xff]
  %v2233 = vld [vmem:[%s2207 + $0x98] sm:$0xf]
  %v2234 = vld [vmem:[%s2207 + $0x9c] sm:$0xff]
  %v2235 = vld [vmem:[%s2207 + $0xa4] sm:$0xf]
  %v2236 = vld [vmem:[%s2207 + $0xa8] sm:$0xff]
  %v2237 = vld [vmem:[%s2207 + $0xb0] sm:$0xf]
  %v2238 = vld [vmem:[%s2207 + $0xb4] sm:$0xff]
  %v2239 = vld [vmem:[%s2207 + $0xbc] sm:$0xf]
  %s2240 = scalar_lea.vmem %s8, 3
  %v2241 = vld [vmem:[%s2240] sm:$0x7]
  %v2243 = vperm.slane %v2241, 0
  %v2244 = vperm.slane %v2241, 1
  %v2245 = vperm.slane %v2241, 2
  %v2281 = vunpack.c.l.b16 %v2208
  %v2282 = vunpack.c.h.b16 %v2208
  %v2283 = vunpack.c.l.b16 %v2209
  %v2284 = vunpack.c.l.b16 %v2210
  %v2285 = vunpack.c.h.b16 %v2210
  %v2286 = vunpack.c.l.b16 %v2211
  %v2287 = vunpack.c.l.b16 %v2212
  %v2288 = vunpack.c.h.b16 %v2212
  %v2289 = vunpack.c.l.b16 %v2213
  %v2290 = vunpack.c.l.b16 %v2214
  %v2291 = vunpack.c.h.b16 %v2214
  %v2292 = vunpack.c.l.b16 %v2215
  %v2293 = vunpack.c.l.b16 %v2216
  %v2294 = vunpack.c.h.b16 %v2216
  %v2295 = vunpack.c.l.b16 %v2217
  %v2296 = vunpack.c.l.b16 %v2218
  %v2297 = vunpack.c.h.b16 %v2218
  %v2298 = vunpack.c.l.b16 %v2219
  %v2299 = vunpack.c.l.b16 %v2220
  %v2300 = vunpack.c.h.b16 %v2220
  %v2301 = vunpack.c.l.b16 %v2221
  %v2302 = vunpack.c.l.b16 %v2222
  %v2303 = vunpack.c.h.b16 %v2222
  %v2304 = vunpack.c.l.b16 %v2223
  %v2305 = vunpack.c.l.b16 %v2224
  %v2306 = vunpack.c.h.b16 %v2224
  %v2307 = vunpack.c.l.b16 %v2225
  %v2308 = vunpack.c.l.b16 %v2226
  %v2309 = vunpack.c.h.b16 %v2226
  %v2310 = vunpack.c.l.b16 %v2227
  %v2311 = vunpack.c.l.b16 %v2228
  %v2312 = vunpack.c.h.b16 %v2228
  %v2313 = vunpack.c.l.b16 %v2229
  %v2314 = vunpack.c.l.b16 %v2230
  %v2315 = vunpack.c.h.b16 %v2230
  %v2316 = vunpack.c.l.b16 %v2231
  %v2317 = vunpack.c.l.b16 %v2232
  %v2318 = vunpack.c.h.b16 %v2232
  %v2319 = vunpack.c.l.b16 %v2233
  %v2320 = vunpack.c.l.b16 %v2234
  %v2321 = vunpack.c.h.b16 %v2234
  %v2322 = vunpack.c.l.b16 %v2235
  %v2323 = vunpack.c.l.b16 %v2236
  %v2324 = vunpack.c.h.b16 %v2236
  %v2325 = vunpack.c.l.b16 %v2237
  %v2326 = vunpack.c.l.b16 %v2238
  %v2327 = vunpack.c.h.b16 %v2238
  %v2328 = vunpack.c.l.b16 %v2239
  %v2329 = vpack.c.b16 %v2284, %v2281
  %v2330 = vpack.c.b16 %v2285, %v2282
  %v2331 = vpack.c.b16 %v2286, %v2283
  %v2332 = vpack.c.b16 %v2290, %v2287
  %v2333 = vpack.c.b16 %v2291, %v2288
  %v2334 = vpack.c.b16 %v2292, %v2289
  %v2335 = vpack.c.b16 %v2296, %v2293
  %v2336 = vpack.c.b16 %v2297, %v2294
  %v2337 = vpack.c.b16 %v2298, %v2295
  %v2338 = vpack.c.b16 %v2302, %v2299
  %v2339 = vpack.c.b16 %v2303, %v2300
  %v2340 = vpack.c.b16 %v2304, %v2301
  %v2341 = vpack.c.b16 %v2308, %v2305
  %v2342 = vpack.c.b16 %v2309, %v2306
  %v2343 = vpack.c.b16 %v2310, %v2307
  %v2344 = vpack.c.b16 %v2314, %v2311
  %v2345 = vpack.c.b16 %v2315, %v2312
  %v2346 = vpack.c.b16 %v2316, %v2313
  %v2347 = vpack.c.b16 %v2320, %v2317
  %v2348 = vpack.c.b16 %v2321, %v2318
  %v2349 = vpack.c.b16 %v2322, %v2319
  %v2350 = vpack.c.b16 %v2326, %v2323
  %v2351 = vpack.c.b16 %v2327, %v2324
  %v2352 = vpack.c.b16 %v2328, %v2325
  %2377 = vmatpush.bf16.msra.mxu0 %v2350
  %2378 = vmatpush.bf16.msra.mxu0 %v2347
  %2379 = vmatpush.bf16.msra.mxu0 %v2344
  %2380 = vmatpush.bf16.msra.mxu0 %v2341
  %2381 = vmatpush.bf16.msra.mxu0 %v2338
  %2382 = vmatpush.bf16.msra.mxu0 %v2335
  %2383 = vmatpush.bf16.msra.mxu0 %v2332
  %2384 = vmatpush.bf16.msra.mxu0 %v2329
  %2385 = vmatmul.bf16.gmra.mxu0 %v2205
  %v2386 = vpop.f32.mrf.mxu0
  %v2387 = vadd.f32 %v2243, %v2386
  %v2388 = vpop.f32.mrf.mxu0
  %v2389 = vadd.f32 %v2243, %v2388
  %2390 = vmatmul.bf16.gmra.mxu0 %v2206
  %v2391 = vpop.f32.mrf.mxu0
  %v2392 = vadd.f32 %v2243, %v2391
  %v2393 = vpop.f32.mrf.mxu0
  %v2394 = vadd.f32 %v2243, %v2393
  %2395 = vdwg.mxu0
  %2396 = vmatpush.bf16.msra.mxu0 %v2351
  %2397 = vmatpush.bf16.msra.mxu0 %v2348
  %2398 = vmatpush.bf16.msra.mxu0 %v2345
  %2399 = vmatpush.bf16.msra.mxu0 %v2342
  %2400 = vmatpush.bf16.msra.mxu0 %v2339
  %2401 = vmatpush.bf16.msra.mxu0 %v2336
  %2402 = vmatpush.bf16.msra.mxu0 %v2333
  %2403 = vmatpush.bf16.msra.mxu0 %v2330
  %2404 = vmatmul.bf16.gmra.mxu0 %v2205
  %v2405 = vpop.f32.mrf.mxu0
  %v2406 = vadd.f32 %v2244, %v2405
  %v2407 = vpop.f32.mrf.mxu0
  %v2408 = vadd.f32 %v2244, %v2407
  %2409 = vmatmul.bf16.gmra.mxu0 %v2206
  %v2410 = vpop.f32.mrf.mxu0
  %v2411 = vadd.f32 %v2244, %v2410
  %v2412 = vpop.f32.mrf.mxu0
  %v2413 = vadd.f32 %v2244, %v2412
  %2414 = vdwg.mxu0
  %2415 = vmatpush.bf16.msra.mxu0 %v2352
  %2416 = vmatpush.bf16.msra.mxu0 %v2349
  %2417 = vmatpush.bf16.msra.mxu0 %v2346
  %2418 = vmatpush.bf16.msra.mxu0 %v2343
  %2419 = vmatpush.bf16.msra.mxu0 %v2340
  %2420 = vmatpush.bf16.msra.mxu0 %v2337
  %2421 = vmatpush.bf16.msra.mxu0 %v2334
  %2422 = vmatpush.bf16.msra.mxu0 %v2331
  %2423 = vmatmul.bf16.gmra.mxu0 %v2205
  %v2424 = vpop.f32.mrf.mxu0
  %v2425 = vadd.f32 %v2245, %v2424
  %v2426 = vpop.f32.mrf.mxu0
  %v2427 = vadd.f32 %v2245, %v2426
  %2428 = vmatmul.bf16.gmra.mxu0 %v2206
  %v2429 = vpop.f32.mrf.mxu0
  %v2430 = vadd.f32 %v2245, %v2429
  %v2431 = vpop.f32.mrf.mxu0
  %v2432 = vadd.f32 %v2245, %v2431
  %2433 = vdwg.mxu0
  %v2434 = vpack.c.bf16 %v2406, %v2387
  %v2435 = vpack.c.bf16 %v2425, %v2425
  %v2436 = vpack.c.bf16 %v2408, %v2389
  %v2437 = vpack.c.bf16 %v2427, %v2427
  %v2438 = vpack.c.bf16 %v2411, %v2392
  %v2439 = vpack.c.bf16 %v2430, %v2430
  %v2440 = vpack.c.bf16 %v2413, %v2394
  %v2441 = vpack.c.bf16 %v2432, %v2432
  %v2446 = vunpack.c.l.b16 %v2434
  %v2447 = vunpack.c.l.b16 %v2436
  %v2448 = vunpack.c.l.b16 %v2438
  %v2449 = vunpack.c.l.b16 %v2440
  %v2450 = vpack.c.b16 %v2447, %v2446
  %v2451 = vpack.c.b16 %v2449, %v2448
  %v2452 = vunpack.c.h.b16 %v2434
  %v2453 = vunpack.c.h.b16 %v2436
  %v2454 = vunpack.c.h.b16 %v2438
  %v2455 = vunpack.c.h.b16 %v2440
  %v2456 = vpack.c.b16 %v2453, %v2452
  %v2457 = vpack.c.b16 %v2455, %v2454
  %v2459 = vsel %vm850, %v2450, 0
  %v2462 = vsel %vm850, %v2451, 0
  %v2465 = vsel %vm850, %v2456, 0
  %v2468 = vsel %vm850, %v2457, 0
  %2470 = vmatpush.bf16.xpose.msra.mxu0 0
  %2471 = vmatpush.bf16.xpose.msra.mxu0 0
  %2472 = vmatpush.bf16.xpose.msra.mxu0 0
  %2473 = vmatpush.bf16.xpose.msra.mxu0 0
  %2474 = vmatpush.bf16.xpose.msra.mxu0 0
  %2475 = vmatpush.bf16.xpose.msra.mxu0 0
  %2476 = vmatpush.bf16.xpose.msra.mxu0 %v2468
  %2477 = vmatpush.bf16.xpose.msra.mxu0 %v2465
  %2478 = vmatmul.bf16.gmra.mxu0 %v2459
  %v2479 = vpop.f32.mrf.mxu0
  %v2480 = vadd.f32 0.0, %v2479
  %v2481 = vpop.f32.mrf.mxu0
  %v2482 = vadd.f32 0.0, %v2481
  %2483 = vmatmul.bf16.gmra.mxu0 %v2462
  %v2484 = vpop.f32.mrf.mxu0
  %v2485 = vadd.f32 0.0, %v2484
  %v2486 = vpop.f32.mrf.mxu0
  %v2487 = vadd.f32 0.0, %v2486
  %2488 = vdwg.mxu0
  %v2489 = vmul.f32 %v2480, 0.125
  %v2490 = vmul.f32 %v2482, 0.125
  %v2491 = vmul.f32 %v2485, 0.125
  %v2492 = vmul.f32 %v2487, 0.125
  %v2493 = vadd.f32 %v2489, %v887
  %v2494 = vadd.f32 %v2490, %v887
  %v2495 = vadd.f32 %v2491, %v887
  %v2496 = vadd.f32 %v2492, %v887
  %v2497 = vsel %vm893, %v2493, -inf
  %2498 = vmax.xlane.f32.xlu0 %v2497
  %v2499 = vpop.xlane.xlu0 %2498
  %v2500 = vsel %vm893, %v2494, -inf
  %2501 = vmax.xlane.f32.xlu0 %v2500
  %v2502 = vpop.xlane.xlu0 %2501
  %v2503 = vsel %vm893, %v2495, -inf
  %2504 = vmax.xlane.f32.xlu0 %v2503
  %v2505 = vpop.xlane.xlu0 %2504
  %v2506 = vsel %vm893, %v2496, -inf
  %2507 = vmax.xlane.f32.xlu0 %v2506
  %v2508 = vpop.xlane.xlu0 %2507
  %v2509 = vsub.f32 %v2493, %v2499
  %v2510 = vsub.f32 %v2494, %v2502
  %v2511 = vsub.f32 %v2495, %v2505
  %v2512 = vsub.f32 %v2496, %v2508
  %v2513 = vmul.f32 %v2509, 1.442695
  %v2514 = vpow.pop %v2513
  %v2515 = vmul.f32 %v2510, 1.442695
  %v2516 = vpow.pop %v2515
  %v2517 = vmul.f32 %v2511, 1.442695
  %v2518 = vpow.pop %v2517
  %v2519 = vmul.f32 %v2512, 1.442695
  %v2520 = vpow.pop %v2519
  %v2521 = vsel %vm893, %v2514, 0.0
  %2522 = vadd.xlane.f32.xlu0 %v2521
  %v2523 = vpop.xlane.xlu0 %2522
  %v2524 = vsel %vm893, %v2516, 0.0
  %2525 = vadd.xlane.f32.xlu0 %v2524
  %v2526 = vpop.xlane.xlu0 %2525
  %v2527 = vsel %vm893, %v2518, 0.0
  %2528 = vadd.xlane.f32.xlu0 %v2527
  %v2529 = vpop.xlane.xlu0 %2528
  %v2530 = vsel %vm893, %v2520, 0.0
  %2531 = vadd.xlane.f32.xlu0 %v2530
  %v2532 = vpop.xlane.xlu0 %2531
  %v2533 = vrcp.pop %v2523
  %v2534 = vrcp.pop %v2526
  %v2535 = vrcp.pop %v2529
  %v2536 = vrcp.pop %v2532
  %v2537 = vmul.f32 %v2514, %v2533
  %v2538 = vmul.f32 %v2516, %v2534
  %v2539 = vmul.f32 %v2518, %v2535
  %v2540 = vmul.f32 %v2520, %v2536
  %v2541 = vpack.c.bf16 %v2538, %v2537
  %v2542 = vpack.c.bf16 %v2540, %v2539
  %v2547 = vunpack.c.l.b16 %v2435
  %v2548 = vunpack.c.l.b16 %v2437
  %v2549 = vunpack.c.l.b16 %v2439
  %v2550 = vunpack.c.l.b16 %v2441
  %v2551 = vpack.c.b16 %v2548, %v2547
  %v2552 = vpack.c.b16 %v2550, %v2549
  %v2556 = vsel %vm893, %v2541, 0
  %v2559 = vsel %vm893, %v2542, 0
  %2561 = vmatpush.bf16.msra.mxu0 0
  %2562 = vmatpush.bf16.msra.mxu0 0
  %2563 = vmatpush.bf16.msra.mxu0 0
  %2564 = vmatpush.bf16.msra.mxu0 0
  %2565 = vmatpush.bf16.msra.mxu0 0
  %2566 = vmatpush.bf16.msra.mxu0 0
  %2567 = vmatpush.bf16.msra.mxu0 %v2552
  %2568 = vmatpush.bf16.msra.mxu0 %v2551
  %2569 = vmatmul.bf16.gmra.mxu0 %v2556
  %v2570 = vpop.f32.mrf.mxu0
  %v2571 = vadd.f32 0.0, %v2570
  %v2572 = vpop.f32.mrf.mxu0
  %v2573 = vadd.f32 0.0, %v2572
  %2574 = vmatmul.bf16.gmra.mxu0 %v2559
  %v2575 = vpop.f32.mrf.mxu0
  %v2576 = vadd.f32 0.0, %v2575
  %v2577 = vpop.f32.mrf.mxu0
  %v2578 = vadd.f32 0.0, %v2577
  %2579 = vdwg.mxu0
  %2580 = vst.msk [vmem:[#allocation2] sm:$0xff] %vm850, %v2571
  %2581 = vst.msk [vmem:[#allocation2 + $0x8] sm:$0xff] %vm850, %v2573
  %2582 = vst.msk [vmem:[#allocation2 + $0x10] sm:$0xff] %vm850, %v2576
  %2583 = vst.msk [vmem:[#allocation2 + $0x18] sm:$0xff] %vm850, %v2578
  %2584 = vrot.lane.b32.xlu0 %v2450, 64
  %v2585 = vpop.permute.xlu0 %2584
  %2586 = vrot.lane.b32.xlu0 %v2451, 64
  %v2587 = vpop.permute.xlu0 %2586
  %2588 = vrot.lane.b32.xlu0 %v2456, 64
  %v2589 = vpop.permute.xlu0 %2588
  %2590 = vrot.lane.b32.xlu0 %v2457, 64
  %v2591 = vpop.permute.xlu0 %2590
  %v2593 = vsel %vm850, %v2585, 0
  %v2596 = vsel %vm850, %v2587, 0
  %v2599 = vsel %vm850, %v2589, 0
  %v2602 = vsel %vm850, %v2591, 0
  %2604 = vmatpush.bf16.xpose.msra.mxu0 0
  %2605 = vmatpush.bf16.xpose.msra.mxu0 0
  %2606 = vmatpush.bf16.xpose.msra.mxu0 0
  %2607 = vmatpush.bf16.xpose.msra.mxu0 0
  %2608 = vmatpush.bf16.xpose.msra.mxu0 0
  %2609 = vmatpush.bf16.xpose.msra.mxu0 0
  %2610 = vmatpush.bf16.xpose.msra.mxu0 %v2602
  %2611 = vmatpush.bf16.xpose.msra.mxu0 %v2599
  %2612 = vmatmul.bf16.gmra.mxu0 %v2593
  %v2613 = vpop.f32.mrf.mxu0
  %v2614 = vadd.f32 0.0, %v2613
  %v2615 = vpop.f32.mrf.mxu0
  %v2616 = vadd.f32 0.0, %v2615
  %2617 = vmatmul.bf16.gmra.mxu0 %v2596
  %v2618 = vpop.f32.mrf.mxu0
  %v2619 = vadd.f32 0.0, %v2618
  %v2620 = vpop.f32.mrf.mxu0
  %v2621 = vadd.f32 0.0, %v2620
  %2622 = vdwg.mxu0
  %v2623 = vmul.f32 %v2614, 0.125
  %v2624 = vmul.f32 %v2616, 0.125
  %v2625 = vmul.f32 %v2619, 0.125
  %v2626 = vmul.f32 %v2621, 0.125
  %v2627 = vadd.f32 %v2623, %v887
  %v2628 = vadd.f32 %v2624, %v887
  %v2629 = vadd.f32 %v2625, %v887
  %v2630 = vadd.f32 %v2626, %v887
  %v2631 = vsel %vm893, %v2627, -inf
  %2632 = vmax.xlane.f32.xlu0 %v2631
  %v2633 = vpop.xlane.xlu0 %2632
  %v2634 = vsel %vm893, %v2628, -inf
  %2635 = vmax.xlane.f32.xlu0 %v2634
  %v2636 = vpop.xlane.xlu0 %2635
  %v2637 = vsel %vm893, %v2629, -inf
  %2638 = vmax.xlane.f32.xlu0 %v2637
  %v2639 = vpop.xlane.xlu0 %2638
  %v2640 = vsel %vm893, %v2630, -inf
  %2641 = vmax.xlane.f32.xlu0 %v2640
  %v2642 = vpop.xlane.xlu0 %2641
  %v2643 = vsub.f32 %v2627, %v2633
  %v2644 = vsub.f32 %v2628, %v2636
  %v2645 = vsub.f32 %v2629, %v2639
  %v2646 = vsub.f32 %v2630, %v2642
  %v2647 = vmul.f32 %v2643, 1.442695
  %v2648 = vpow.pop %v2647
  %v2649 = vmul.f32 %v2644, 1.442695
  %v2650 = vpow.pop %v2649
  %v2651 = vmul.f32 %v2645, 1.442695
  %v2652 = vpow.pop %v2651
  %v2653 = vmul.f32 %v2646, 1.442695
  %v2654 = vpow.pop %v2653
  %v2655 = vsel %vm893, %v2648, 0.0
  %2656 = vadd.xlane.f32.xlu0 %v2655
  %v2657 = vpop.xlane.xlu0 %2656
  %v2658 = vsel %vm893, %v2650, 0.0
  %2659 = vadd.xlane.f32.xlu0 %v2658
  %v2660 = vpop.xlane.xlu0 %2659
  %v2661 = vsel %vm893, %v2652, 0.0
  %2662 = vadd.xlane.f32.xlu0 %v2661
  %v2663 = vpop.xlane.xlu0 %2662
  %v2664 = vsel %vm893, %v2654, 0.0
  %2665 = vadd.xlane.f32.xlu0 %v2664
  %v2666 = vpop.xlane.xlu0 %2665
  %v2667 = vrcp.pop %v2657
  %v2668 = vrcp.pop %v2660
  %v2669 = vrcp.pop %v2663
  %v2670 = vrcp.pop %v2666
  %v2671 = vmul.f32 %v2648, %v2667
  %v2672 = vmul.f32 %v2650, %v2668
  %v2673 = vmul.f32 %v2652, %v2669
  %v2674 = vmul.f32 %v2654, %v2670
  %v2675 = vpack.c.bf16 %v2672, %v2671
  %v2676 = vpack.c.bf16 %v2674, %v2673
  %2677 = vrot.lane.b32.xlu0 %v2551, 64
  %v2678 = vpop.permute.xlu0 %2677
  %2679 = vrot.lane.b32.xlu0 %v2552, 64
  %v2680 = vpop.permute.xlu0 %2679
  %v2684 = vsel %vm893, %v2675, 0
  %v2687 = vsel %vm893, %v2676, 0
  %2689 = vmatpush.bf16.msra.mxu0 0
  %2690 = vmatpush.bf16.msra.mxu0 0
  %2691 = vmatpush.bf16.msra.mxu0 0
  %2692 = vmatpush.bf16.msra.mxu0 0
  %2693 = vmatpush.bf16.msra.mxu0 0
  %2694 = vmatpush.bf16.msra.mxu0 0
  %2695 = vmatpush.bf16.msra.mxu0 %v2680
  %2696 = vmatpush.bf16.msra.mxu0 %v2678
  %2697 = vmatmul.bf16.gmra.mxu0 %v2684
  %v2698 = vpop.f32.mrf.mxu0
  %v2699 = vadd.f32 0.0, %v2698
  %v2700 = vpop.f32.mrf.mxu0
  %v2701 = vadd.f32 0.0, %v2700
  %2702 = vmatmul.bf16.gmra.mxu0 %v2687
  %v2703 = vpop.f32.mrf.mxu0
  %v2704 = vadd.f32 0.0, %v2703
  %v2705 = vpop.f32.mrf.mxu0
  %v2706 = vadd.f32 0.0, %v2705
  %2707 = vdwg.mxu0
  %2712 = vrot.lane.b32.xlu0 %v2699, 64
  %v2713 = vpop.permute.xlu0 %2712
  %2714 = vrot.lane.b32.xlu0 %v2701, 64
  %v2715 = vpop.permute.xlu0 %2714
  %2716 = vrot.lane.b32.xlu0 %v2704, 64
  %v2717 = vpop.permute.xlu0 %2716
  %2718 = vrot.lane.b32.xlu0 %v2706, 64
  %v2719 = vpop.permute.xlu0 %2718
  %2724 = vst.msk [vmem:[#allocation2] sm:$0xff] %vm1121, %v2713
  %2725 = vst.msk [vmem:[#allocation2 + $0x8] sm:$0xff] %vm1121, %v2715
  %2726 = vst.msk [vmem:[#allocation2 + $0x10] sm:$0xff] %vm1121, %v2717
  %2727 = vst.msk [vmem:[#allocation2 + $0x18] sm:$0xff] %vm1121, %v2719
  %v2728 = vld [vmem:[#allocation2] sm:$0xff]
  %v2729 = vld [vmem:[#allocation2 + $0x8] sm:$0xff]
  %v2730 = vld [vmem:[#allocation2 + $0x10] sm:$0xff]
  %v2731 = vld [vmem:[#allocation2 + $0x18] sm:$0xff]
  %v2732 = vpack.c.bf16 %v2729, %v2728
  %v2733 = vpack.c.bf16 %v2731, %v2730
  %s2734 = scalar_lea.vmem %s9, 64
  %v2735 = vld [vmem:[%s2734] sm:$0xf]
  %v2736 = vld [vmem:[%s2734 + $0x4] sm:$0xf]
  %v2737 = vld [vmem:[%s2734 + $0x8] sm:$0xf]
  %v2738 = vld [vmem:[%s2734 + $0xc] sm:$0xf]
  %v2739 = vld [vmem:[%s2734 + $0x10] sm:$0xf]
  %v2740 = vld [vmem:[%s2734 + $0x14] sm:$0xf]
  %v2741 = vld [vmem:[%s2734 + $0x18] sm:$0xf]
  %v2742 = vld [vmem:[%s2734 + $0x1c] sm:$0xf]
  %v2743 = vld [vmem:[%s2734 + $0x20] sm:$0xf]
  %v2744 = vld [vmem:[%s2734 + $0x24] sm:$0xf]
  %v2745 = vld [vmem:[%s2734 + $0x28] sm:$0xf]
  %v2746 = vld [vmem:[%s2734 + $0x2c] sm:$0xf]
  %v2747 = vld [vmem:[%s2734 + $0x30] sm:$0xf]
  %v2748 = vld [vmem:[%s2734 + $0x34] sm:$0xf]
  %v2749 = vld [vmem:[%s2734 + $0x38] sm:$0xf]
  %v2750 = vld [vmem:[%s2734 + $0x3c] sm:$0xf]
  %s2751 = scalar_lea.vmem %s10, 1
  %v2752 = vld [vmem:[%s2751] sm:$0x1]
  %v2754 = vperm.slane %v2752, 0
  %v2772 = vunpack.c.l.b16 %v2735
  %v2773 = vunpack.c.l.b16 %v2736
  %v2774 = vunpack.c.l.b16 %v2737
  %v2775 = vunpack.c.l.b16 %v2738
  %v2776 = vunpack.c.l.b16 %v2739
  %v2777 = vunpack.c.l.b16 %v2740
  %v2778 = vunpack.c.l.b16 %v2741
  %v2779 = vunpack.c.l.b16 %v2742
  %v2780 = vunpack.c.l.b16 %v2743
  %v2781 = vunpack.c.l.b16 %v2744
  %v2782 = vunpack.c.l.b16 %v2745
  %v2783 = vunpack.c.l.b16 %v2746
  %v2784 = vunpack.c.l.b16 %v2747
  %v2785 = vunpack.c.l.b16 %v2748
  %v2786 = vunpack.c.l.b16 %v2749
  %v2787 = vunpack.c.l.b16 %v2750
  %v2788 = vpack.c.b16 %v2773, %v2772
  %v2789 = vpack.c.b16 %v2775, %v2774
  %v2790 = vpack.c.b16 %v2777, %v2776
  %v2791 = vpack.c.b16 %v2779, %v2778
  %v2792 = vpack.c.b16 %v2781, %v2780
  %v2793 = vpack.c.b16 %v2783, %v2782
  %v2794 = vpack.c.b16 %v2785, %v2784
  %v2795 = vpack.c.b16 %v2787, %v2786
  %2804 = vmatpush.bf16.msra.mxu0 %v2795
  %2805 = vmatpush.bf16.msra.mxu0 %v2794
  %2806 = vmatpush.bf16.msra.mxu0 %v2793
  %2807 = vmatpush.bf16.msra.mxu0 %v2792
  %2808 = vmatpush.bf16.msra.mxu0 %v2791
  %2809 = vmatpush.bf16.msra.mxu0 %v2790
  %2810 = vmatpush.bf16.msra.mxu0 %v2789
  %2811 = vmatpush.bf16.msra.mxu0 %v2788
  %2812 = vmatmul.bf16.gmra.mxu0 %v2732
  %v2813 = vpop.f32.mrf.mxu0
  %v2814 = vadd.f32 %v2754, %v2813
  %v2815 = vpop.f32.mrf.mxu0
  %v2816 = vadd.f32 %v2754, %v2815
  %2817 = vmatmul.bf16.gmra.mxu0 %v2733
  %v2818 = vpop.f32.mrf.mxu0
  %v2819 = vadd.f32 %v2754, %v2818
  %v2820 = vpop.f32.mrf.mxu0
  %v2821 = vadd.f32 %v2754, %v2820
  %2822 = vdwg.mxu0
  %s2823 = scalar_lea.vmem %s11, 1
  %v2824 = vld [vmem:[%s2823] sm:$0x1]
  %v2826 = vperm.slane %v2824, 0
  %v2828 = vmul.f32 %v2826, %v2814
  %v2829 = vmul.f32 %v2826, %v2816
  %v2830 = vmul.f32 %v2826, %v2819
  %v2831 = vmul.f32 %v2826, %v2821
  %v2832 = vadd.f32 %v2103, %v2828
  %v2833 = vadd.f32 %v2104, %v2829
  %v2834 = vadd.f32 %v2105, %v2830
  %v2835 = vadd.f32 %v2106, %v2831
  %s2836 = scalar_lea.vmem %s12, 1
  %v2837 = vld [vmem:[%s2836] sm:$0x1]
  %s2838 = scalar_lea.vmem %s13, 1
  %v2839 = vld [vmem:[%s2838] sm:$0x1]
  %2840 = vadd.xlane.f32.xlu0 %v2832
  %v2841 = vpop.xlane.xlu0 %2840
  %2842 = vadd.xlane.f32.xlu0 %v2833
  %v2843 = vpop.xlane.xlu0 %2842
  %2844 = vadd.xlane.f32.xlu0 %v2834
  %v2845 = vpop.xlane.xlu0 %2844
  %2846 = vadd.xlane.f32.xlu0 %v2835
  %v2847 = vpop.xlane.xlu0 %2846
  %v2848 = vmul.f32 %v2841, %v512
  %v2849 = vmul.f32 %v2843, %v512
  %v2850 = vmul.f32 %v2845, %v512
  %v2851 = vmul.f32 %v2847, %v512
  %v2852 = vsub.f32 %v2832, %v2848
  %v2853 = vsub.f32 %v2833, %v2849
  %v2854 = vsub.f32 %v2834, %v2850
  %v2855 = vsub.f32 %v2835, %v2851
  %v2856 = vmul.f32 %v2852, %v2852
  %v2857 = vmul.f32 %v2853, %v2853
  %v2858 = vmul.f32 %v2854, %v2854
  %v2859 = vmul.f32 %v2855, %v2855
  %2860 = vadd.xlane.f32.xlu0 %v2856
  %v2861 = vpop.xlane.xlu0 %2860
  %2862 = vadd.xlane.f32.xlu0 %v2857
  %v2863 = vpop.xlane.xlu0 %2862
  %2864 = vadd.xlane.f32.xlu0 %v2858
  %v2865 = vpop.xlane.xlu0 %2864
  %2866 = vadd.xlane.f32.xlu0 %v2859
  %v2867 = vpop.xlane.xlu0 %2866
  %v2868 = vmul.f32 %v2861, %v512
  %v2869 = vmul.f32 %v2863, %v512
  %v2870 = vmul.f32 %v2865, %v512
  %v2871 = vmul.f32 %v2867, %v512
  %v2872 = vadd.f32 %v2868, 1e-06
  %v2873 = vadd.f32 %v2869, 1e-06
  %v2874 = vadd.f32 %v2870, 1e-06
  %v2875 = vadd.f32 %v2871, 1e-06
  %v2876 = vrsqrt.pop %v2872
  %v2877 = vmul.f32 %v2876, %v2872
  %v2878 = vmul.f32 %v2877, %v2876
  %v2879 = vmul.f32 0.5, %v2878
  %v2880 = vsub.f32 1.5, %v2879
  %v2881 = vmul.f32 %v2876, %v2880
  %vm2882 = vweird.f32 %v2872
  %vm2883 = vweird.f32 %v2876
  %vm2884 = vmor %vm2882, %vm2883
  %v2885 = vsel %vm2884, %v2876, %v2881
  %v2886 = vrsqrt.pop %v2873
  %v2887 = vmul.f32 %v2886, %v2873
  %v2888 = vmul.f32 %v2887, %v2886
  %v2889 = vmul.f32 0.5, %v2888
  %v2890 = vsub.f32 1.5, %v2889
  %v2891 = vmul.f32 %v2886, %v2890
  %vm2892 = vweird.f32 %v2873
  %vm2893 = vweird.f32 %v2886
  %vm2894 = vmor %vm2892, %vm2893
  %v2895 = vsel %vm2894, %v2886, %v2891
  %v2896 = vrsqrt.pop %v2874
  %v2897 = vmul.f32 %v2896, %v2874
  %v2898 = vmul.f32 %v2897, %v2896
  %v2899 = vmul.f32 0.5, %v2898
  %v2900 = vsub.f32 1.5, %v2899
  %v2901 = vmul.f32 %v2896, %v2900
  %vm2902 = vweird.f32 %v2874
  %vm2903 = vweird.f32 %v2896
  %vm2904 = vmor %vm2902, %vm2903
  %v2905 = vsel %vm2904, %v2896, %v2901
  %v2906 = vrsqrt.pop %v2875
  %v2907 = vmul.f32 %v2906, %v2875
  %v2908 = vmul.f32 %v2907, %v2906
  %v2909 = vmul.f32 0.5, %v2908
  %v2910 = vsub.f32 1.5, %v2909
  %v2911 = vmul.f32 %v2906, %v2910
  %vm2912 = vweird.f32 %v2875
  %vm2913 = vweird.f32 %v2906
  %vm2914 = vmor %vm2912, %vm2913
  %v2915 = vsel %vm2914, %v2906, %v2911
  %v2916 = vmul.f32 %v2852, %v2885
  %v2917 = vmul.f32 %v2853, %v2895
  %v2918 = vmul.f32 %v2854, %v2905
  %v2919 = vmul.f32 %v2855, %v2915
  %v2921 = vperm.slane %v2837, 0
  %v2923 = vmul.f32 %v2916, %v2921
  %v2924 = vmul.f32 %v2917, %v2921
  %v2925 = vmul.f32 %v2918, %v2921
  %v2926 = vmul.f32 %v2919, %v2921
  %v2928 = vperm.slane %v2839, 0
  %v2930 = vadd.f32 %v2923, %v2928
  %v2931 = vadd.f32 %v2924, %v2928
  %v2932 = vadd.f32 %v2925, %v2928
  %v2933 = vadd.f32 %v2926, %v2928
  %v2934 = vpack.c.bf16 %v2931, %v2930
  %v2935 = vpack.c.bf16 %v2933, %v2932
  %s2936 = scalar_lea.vmem %s14, 256
  %v2937 = vld [vmem:[%s2936] sm:$0xff]
  %v2938 = vld [vmem:[%s2936 + $0x8] sm:$0xff]
  %v2939 = vld [vmem:[%s2936 + $0x10] sm:$0xff]
  %v2940 = vld [vmem:[%s2936 + $0x18] sm:$0xff]
  %v2941 = vld [vmem:[%s2936 + $0x20] sm:$0xff]
  %v2942 = vld [vmem:[%s2936 + $0x28] sm:$0xff]
  %v2943 = vld [vmem:[%s2936 + $0x30] sm:$0xff]
  %v2944 = vld [vmem:[%s2936 + $0x38] sm:$0xff]
  %v2945 = vld [vmem:[%s2936 + $0x40] sm:$0xff]
  %v2946 = vld [vmem:[%s2936 + $0x48] sm:$0xff]
  %v2947 = vld [vmem:[%s2936 + $0x50] sm:$0xff]
  %v2948 = vld [vmem:[%s2936 + $0x58] sm:$0xff]
  %v2949 = vld [vmem:[%s2936 + $0x60] sm:$0xff]
  %v2950 = vld [vmem:[%s2936 + $0x68] sm:$0xff]
  %v2951 = vld [vmem:[%s2936 + $0x70] sm:$0xff]
  %v2952 = vld [vmem:[%s2936 + $0x78] sm:$0xff]
  %v2953 = vld [vmem:[%s2936 + $0x80] sm:$0xff]
  %v2954 = vld [vmem:[%s2936 + $0x88] sm:$0xff]
  %v2955 = vld [vmem:[%s2936 + $0x90] sm:$0xff]
  %v2956 = vld [vmem:[%s2936 + $0x98] sm:$0xff]
  %v2957 = vld [vmem:[%s2936 + $0xa0] sm:$0xff]
  %v2958 = vld [vmem:[%s2936 + $0xa8] sm:$0xff]
  %v2959 = vld [vmem:[%s2936 + $0xb0] sm:$0xff]
  %v2960 = vld [vmem:[%s2936 + $0xb8] sm:$0xff]
  %v2961 = vld [vmem:[%s2936 + $0xc0] sm:$0xff]
  %v2962 = vld [vmem:[%s2936 + $0xc8] sm:$0xff]
  %v2963 = vld [vmem:[%s2936 + $0xd0] sm:$0xff]
  %v2964 = vld [vmem:[%s2936 + $0xd8] sm:$0xff]
  %v2965 = vld [vmem:[%s2936 + $0xe0] sm:$0xff]
  %v2966 = vld [vmem:[%s2936 + $0xe8] sm:$0xff]
  %v2967 = vld [vmem:[%s2936 + $0xf0] sm:$0xff]
  %v2968 = vld [vmem:[%s2936 + $0xf8] sm:$0xff]
  %s2969 = scalar_lea.vmem %s15, 4
  %v2970 = vld [vmem:[%s2969] sm:$0xf]
  %v2972 = vperm.slane %v2970, 0
  %v2973 = vperm.slane %v2970, 1
  %v2974 = vperm.slane %v2970, 2
  %v2975 = vperm.slane %v2970, 3
  %v3012 = vunpack.c.l.b16 %v2937
  %v3013 = vunpack.c.h.b16 %v2937
  %v3014 = vunpack.c.l.b16 %v2938
  %v3015 = vunpack.c.h.b16 %v2938
  %v3016 = vunpack.c.l.b16 %v2939
  %v3017 = vunpack.c.h.b16 %v2939
  %v3018 = vunpack.c.l.b16 %v2940
  %v3019 = vunpack.c.h.b16 %v2940
  %v3020 = vunpack.c.l.b16 %v2941
  %v3021 = vunpack.c.h.b16 %v2941
  %v3022 = vunpack.c.l.b16 %v2942
  %v3023 = vunpack.c.h.b16 %v2942
  %v3024 = vunpack.c.l.b16 %v2943
  %v3025 = vunpack.c.h.b16 %v2943
  %v3026 = vunpack.c.l.b16 %v2944
  %v3027 = vunpack.c.h.b16 %v2944
  %v3028 = vunpack.c.l.b16 %v2945
  %v3029 = vunpack.c.h.b16 %v2945
  %v3030 = vunpack.c.l.b16 %v2946
  %v3031 = vunpack.c.h.b16 %v2946
  %v3032 = vunpack.c.l.b16 %v2947
  %v3033 = vunpack.c.h.b16 %v2947
  %v3034 = vunpack.c.l.b16 %v2948
  %v3035 = vunpack.c.h.b16 %v2948
  %v3036 = vunpack.c.l.b16 %v2949
  %v3037 = vunpack.c.h.b16 %v2949
  %v3038 = vunpack.c.l.b16 %v2950
  %v3039 = vunpack.c.h.b16 %v2950
  %v3040 = vunpack.c.l.b16 %v2951
  %v3041 = vunpack.c.h.b16 %v2951
  %v3042 = vunpack.c.l.b16 %v2952
  %v3043 = vunpack.c.h.b16 %v2952
  %v3044 = vunpack.c.l.b16 %v2953
  %v3045 = vunpack.c.h.b16 %v2953
  %v3046 = vunpack.c.l.b16 %v2954
  %v3047 = vunpack.c.h.b16 %v2954
  %v3048 = vunpack.c.l.b16 %v2955
  %v3049 = vunpack.c.h.b16 %v2955
  %v3050 = vunpack.c.l.b16 %v2956
  %v3051 = vunpack.c.h.b16 %v2956
  %v3052 = vunpack.c.l.b16 %v2957
  %v3053 = vunpack.c.h.b16 %v2957
  %v3054 = vunpack.c.l.b16 %v2958
  %v3055 = vunpack.c.h.b16 %v2958
  %v3056 = vunpack.c.l.b16 %v2959
  %v3057 = vunpack.c.h.b16 %v2959
  %v3058 = vunpack.c.l.b16 %v2960
  %v3059 = vunpack.c.h.b16 %v2960
  %v3060 = vunpack.c.l.b16 %v2961
  %v3061 = vunpack.c.h.b16 %v2961
  %v3062 = vunpack.c.l.b16 %v2962
  %v3063 = vunpack.c.h.b16 %v2962
  %v3064 = vunpack.c.l.b16 %v2963
  %v3065 = vunpack.c.h.b16 %v2963
  %v3066 = vunpack.c.l.b16 %v2964
  %v3067 = vunpack.c.h.b16 %v2964
  %v3068 = vunpack.c.l.b16 %v2965
  %v3069 = vunpack.c.h.b16 %v2965
  %v3070 = vunpack.c.l.b16 %v2966
  %v3071 = vunpack.c.h.b16 %v2966
  %v3072 = vunpack.c.l.b16 %v2967
  %v3073 = vunpack.c.h.b16 %v2967
  %v3074 = vunpack.c.l.b16 %v2968
  %v3075 = vunpack.c.h.b16 %v2968
  %v3076 = vpack.c.b16 %v3016, %v3012
  %v3077 = vpack.c.b16 %v3017, %v3013
  %v3078 = vpack.c.b16 %v3018, %v3014
  %v3079 = vpack.c.b16 %v3019, %v3015
  %v3080 = vpack.c.b16 %v3024, %v3020
  %v3081 = vpack.c.b16 %v3025, %v3021
  %v3082 = vpack.c.b16 %v3026, %v3022
  %v3083 = vpack.c.b16 %v3027, %v3023
  %v3084 = vpack.c.b16 %v3032, %v3028
  %v3085 = vpack.c.b16 %v3033, %v3029
  %v3086 = vpack.c.b16 %v3034, %v3030
  %v3087 = vpack.c.b16 %v3035, %v3031
  %v3088 = vpack.c.b16 %v3040, %v3036
  %v3089 = vpack.c.b16 %v3041, %v3037
  %v3090 = vpack.c.b16 %v3042, %v3038
  %v3091 = vpack.c.b16 %v3043, %v3039
  %v3092 = vpack.c.b16 %v3048, %v3044
  %v3093 = vpack.c.b16 %v3049, %v3045
  %v3094 = vpack.c.b16 %v3050, %v3046
  %v3095 = vpack.c.b16 %v3051, %v3047
  %v3096 = vpack.c.b16 %v3056, %v3052
  %v3097 = vpack.c.b16 %v3057, %v3053
  %v3098 = vpack.c.b16 %v3058, %v3054
  %v3099 = vpack.c.b16 %v3059, %v3055
  %v3100 = vpack.c.b16 %v3064, %v3060
  %v3101 = vpack.c.b16 %v3065, %v3061
  %v3102 = vpack.c.b16 %v3066, %v3062
  %v3103 = vpack.c.b16 %v3067, %v3063
  %v3104 = vpack.c.b16 %v3072, %v3068
  %v3105 = vpack.c.b16 %v3073, %v3069
  %v3106 = vpack.c.b16 %v3074, %v3070
  %v3107 = vpack.c.b16 %v3075, %v3071
  %3140 = vmatpush.bf16.msra.mxu0 %v3104
  %3141 = vmatpush.bf16.msra.mxu0 %v3100
  %3142 = vmatpush.bf16.msra.mxu0 %v3096
  %3143 = vmatpush.bf16.msra.mxu0 %v3092
  %3144 = vmatpush.bf16.msra.mxu0 %v3088
  %3145 = vmatpush.bf16.msra.mxu0 %v3084
  %3146 = vmatpush.bf16.msra.mxu0 %v3080
  %3147 = vmatpush.bf16.msra.mxu0 %v3076
  %3148 = vmatmul.bf16.gmra.mxu0 %v2934
  %v3149 = vpop.f32.mrf.mxu0
  %v3150 = vadd.f32 %v2972, %v3149
  %v3151 = vpop.f32.mrf.mxu0
  %v3152 = vadd.f32 %v2972, %v3151
  %3153 = vmatmul.bf16.gmra.mxu0 %v2935
  %v3154 = vpop.f32.mrf.mxu0
  %v3155 = vadd.f32 %v2972, %v3154
  %v3156 = vpop.f32.mrf.mxu0
  %v3157 = vadd.f32 %v2972, %v3156
  %3158 = vdwg.mxu0
  %3159 = vmatpush.bf16.msra.mxu0 %v3105
  %3160 = vmatpush.bf16.msra.mxu0 %v3101
  %3161 = vmatpush.bf16.msra.mxu0 %v3097
  %3162 = vmatpush.bf16.msra.mxu0 %v3093
  %3163 = vmatpush.bf16.msra.mxu0 %v3089
  %3164 = vmatpush.bf16.msra.mxu0 %v3085
  %3165 = vmatpush.bf16.msra.mxu0 %v3081
  %3166 = vmatpush.bf16.msra.mxu0 %v3077
  %3167 = vmatmul.bf16.gmra.mxu0 %v2934
  %v3168 = vpop.f32.mrf.mxu0
  %v3169 = vadd.f32 %v2973, %v3168
  %v3170 = vpop.f32.mrf.mxu0
  %v3171 = vadd.f32 %v2973, %v3170
  %3172 = vmatmul.bf16.gmra.mxu0 %v2935
  %v3173 = vpop.f32.mrf.mxu0
  %v3174 = vadd.f32 %v2973, %v3173
  %v3175 = vpop.f32.mrf.mxu0
  %v3176 = vadd.f32 %v2973, %v3175
  %3177 = vdwg.mxu0
  %3178 = vmatpush.bf16.msra.mxu0 %v3106
  %3179 = vmatpush.bf16.msra.mxu0 %v3102
  %3180 = vmatpush.bf16.msra.mxu0 %v3098
  %3181 = vmatpush.bf16.msra.mxu0 %v3094
  %3182 = vmatpush.bf16.msra.mxu0 %v3090
  %3183 = vmatpush.bf16.msra.mxu0 %v3086
  %3184 = vmatpush.bf16.msra.mxu0 %v3082
  %3185 = vmatpush.bf16.msra.mxu0 %v3078
  %3186 = vmatmul.bf16.gmra.mxu0 %v2934
  %v3187 = vpop.f32.mrf.mxu0
  %v3188 = vadd.f32 %v2974, %v3187
  %v3189 = vpop.f32.mrf.mxu0
  %v3190 = vadd.f32 %v2974, %v3189
  %3191 = vmatmul.bf16.gmra.mxu0 %v2935
  %v3192 = vpop.f32.mrf.mxu0
  %v3193 = vadd.f32 %v2974, %v3192
  %v3194 = vpop.f32.mrf.mxu0
  %v3195 = vadd.f32 %v2974, %v3194
  %3196 = vdwg.mxu0
  %3197 = vmatpush.bf16.msra.mxu0 %v3107
  %3198 = vmatpush.bf16.msra.mxu0 %v3103
  %3199 = vmatpush.bf16.msra.mxu0 %v3099
  %3200 = vmatpush.bf16.msra.mxu0 %v3095
  %3201 = vmatpush.bf16.msra.mxu0 %v3091
  %3202 = vmatpush.bf16.msra.mxu0 %v3087
  %3203 = vmatpush.bf16.msra.mxu0 %v3083
  %3204 = vmatpush.bf16.msra.mxu0 %v3079
  %3205 = vmatmul.bf16.gmra.mxu0 %v2934
  %v3206 = vpop.f32.mrf.mxu0
  %v3207 = vadd.f32 %v2975, %v3206
  %v3208 = vpop.f32.mrf.mxu0
  %v3209 = vadd.f32 %v2975, %v3208
  %3210 = vmatmul.bf16.gmra.mxu0 %v2935
  %v3211 = vpop.f32.mrf.mxu0
  %v3212 = vadd.f32 %v2975, %v3211
  %v3213 = vpop.f32.mrf.mxu0
  %v3214 = vadd.f32 %v2975, %v3213
  %3215 = vdwg.mxu0
  %v3216 = vmul.f32 %v3150, %v3150
  %v3217 = vmul.f32 %v3169, %v3169
  %v3218 = vmul.f32 %v3188, %v3188
  %v3219 = vmul.f32 %v3207, %v3207
  %v3220 = vmul.f32 %v3152, %v3152
  %v3221 = vmul.f32 %v3171, %v3171
  %v3222 = vmul.f32 %v3190, %v3190
  %v3223 = vmul.f32 %v3209, %v3209
  %v3224 = vmul.f32 %v3155, %v3155
  %v3225 = vmul.f32 %v3174, %v3174
  %v3226 = vmul.f32 %v3193, %v3193
  %v3227 = vmul.f32 %v3212, %v3212
  %v3228 = vmul.f32 %v3157, %v3157
  %v3229 = vmul.f32 %v3176, %v3176
  %v3230 = vmul.f32 %v3195, %v3195
  %v3231 = vmul.f32 %v3214, %v3214
  %v3232 = vmul.f32 %v3150, %v3216
  %v3233 = vmul.f32 %v3169, %v3217
  %v3234 = vmul.f32 %v3188, %v3218
  %v3235 = vmul.f32 %v3207, %v3219
  %v3236 = vmul.f32 %v3152, %v3220
  %v3237 = vmul.f32 %v3171, %v3221
  %v3238 = vmul.f32 %v3190, %v3222
  %v3239 = vmul.f32 %v3209, %v3223
  %v3240 = vmul.f32 %v3155, %v3224
  %v3241 = vmul.f32 %v3174, %v3225
  %v3242 = vmul.f32 %v3193, %v3226
  %v3243 = vmul.f32 %v3212, %v3227
  %v3244 = vmul.f32 %v3157, %v3228
  %v3245 = vmul.f32 %v3176, %v3229
  %v3246 = vmul.f32 %v3195, %v3230
  %v3247 = vmul.f32 %v3214, %v3231
  %v3248 = vmul.f32 %v3232, 0.044715
  %v3249 = vmul.f32 %v3233, 0.044715
  %v3250 = vmul.f32 %v3234, 0.044715
  %v3251 = vmul.f32 %v3235, 0.044715
  %v3252 = vmul.f32 %v3236, 0.044715
  %v3253 = vmul.f32 %v3237, 0.044715
  %v3254 = vmul.f32 %v3238, 0.044715
  %v3255 = vmul.f32 %v3239, 0.044715
  %v3256 = vmul.f32 %v3240, 0.044715
  %v3257 = vmul.f32 %v3241, 0.044715
  %v3258 = vmul.f32 %v3242, 0.044715
  %v3259 = vmul.f32 %v3243, 0.044715
  %v3260 = vmul.f32 %v3244, 0.044715
  %v3261 = vmul.f32 %v3245, 0.044715
  %v3262 = vmul.f32 %v3246, 0.044715
  %v3263 = vmul.f32 %v3247, 0.044715
  %v3264 = vadd.f32 %v3150, %v3248
  %v3265 = vadd.f32 %v3169, %v3249
  %v3266 = vadd.f32 %v3188, %v3250
  %v3267 = vadd.f32 %v3207, %v3251
  %v3268 = vadd.f32 %v3152, %v3252
  %v3269 = vadd.f32 %v3171, %v3253
  %v3270 = vadd.f32 %v3190, %v3254
  %v3271 = vadd.f32 %v3209, %v3255
  %v3272 = vadd.f32 %v3155, %v3256
  %v3273 = vadd.f32 %v3174, %v3257
  %v3274 = vadd.f32 %v3193, %v3258
  %v3275 = vadd.f32 %v3212, %v3259
  %v3276 = vadd.f32 %v3157, %v3260
  %v3277 = vadd.f32 %v3176, %v3261
  %v3278 = vadd.f32 %v3195, %v3262
  %v3279 = vadd.f32 %v3214, %v3263
  %v3280 = vmul.f32 %v3264, 0.7978846
  %v3281 = vmul.f32 %v3265, 0.7978846
  %v3282 = vmul.f32 %v3266, 0.7978846
  %v3283 = vmul.f32 %v3267, 0.7978846
  %v3284 = vmul.f32 %v3268, 0.7978846
  %v3285 = vmul.f32 %v3269, 0.7978846
  %v3286 = vmul.f32 %v3270, 0.7978846
  %v3287 = vmul.f32 %v3271, 0.7978846
  %v3288 = vmul.f32 %v3272, 0.7978846
  %v3289 = vmul.f32 %v3273, 0.7978846
  %v3290 = vmul.f32 %v3274, 0.7978846
  %v3291 = vmul.f32 %v3275, 0.7978846
  %v3292 = vmul.f32 %v3276, 0.7978846
  %v3293 = vmul.f32 %v3277, 0.7978846
  %v3294 = vmul.f32 %v3278, 0.7978846
  %v3295 = vmul.f32 %v3279, 0.7978846
  %v3296 = vtanh.pop %v3280
  %v3297 = vtanh.pop %v3281
  %v3298 = vtanh.pop %v3282
  %v3299 = vtanh.pop %v3283
  %v3300 = vtanh.pop %v3284
  %v3301 = vtanh.pop %v3285
  %v3302 = vtanh.pop %v3286
  %v3303 = vtanh.pop %v3287
  %v3304 = vtanh.pop %v3288
  %v3305 = vtanh.pop %v3289
  %v3306 = vtanh.pop %v3290
  %v3307 = vtanh.pop %v3291
  %v3308 = vtanh.pop %v3292
  %v3309 = vtanh.pop %v3293
  %v3310 = vtanh.pop %v3294
  %v3311 = vtanh.pop %v3295
  %v3312 = vadd.f32 %v3296, 1.0
  %v3313 = vadd.f32 %v3297, 1.0
  %v3314 = vadd.f32 %v3298, 1.0
  %v3315 = vadd.f32 %v3299, 1.0
  %v3316 = vadd.f32 %v3300, 1.0
  %v3317 = vadd.f32 %v3301, 1.0
  %v3318 = vadd.f32 %v3302, 1.0
  %v3319 = vadd.f32 %v3303, 1.0
  %v3320 = vadd.f32 %v3304, 1.0
  %v3321 = vadd.f32 %v3305, 1.0
  %v3322 = vadd.f32 %v3306, 1.0
  %v3323 = vadd.f32 %v3307, 1.0
  %v3324 = vadd.f32 %v3308, 1.0
  %v3325 = vadd.f32 %v3309, 1.0
  %v3326 = vadd.f32 %v3310, 1.0
  %v3327 = vadd.f32 %v3311, 1.0
  %v3328 = vmul.f32 %v3312, 0.5
  %v3329 = vmul.f32 %v3313, 0.5
  %v3330 = vmul.f32 %v3314, 0.5
  %v3331 = vmul.f32 %v3315, 0.5
  %v3332 = vmul.f32 %v3316, 0.5
  %v3333 = vmul.f32 %v3317, 0.5
  %v3334 = vmul.f32 %v3318, 0.5
  %v3335 = vmul.f32 %v3319, 0.5
  %v3336 = vmul.f32 %v3320, 0.5
  %v3337 = vmul.f32 %v3321, 0.5
  %v3338 = vmul.f32 %v3322, 0.5
  %v3339 = vmul.f32 %v3323, 0.5
  %v3340 = vmul.f32 %v3324, 0.5
  %v3341 = vmul.f32 %v3325, 0.5
  %v3342 = vmul.f32 %v3326, 0.5
  %v3343 = vmul.f32 %v3327, 0.5
  %v3344 = vmul.f32 %v3150, %v3328
  %v3345 = vmul.f32 %v3169, %v3329
  %v3346 = vmul.f32 %v3188, %v3330
  %v3347 = vmul.f32 %v3207, %v3331
  %v3348 = vmul.f32 %v3152, %v3332
  %v3349 = vmul.f32 %v3171, %v3333
  %v3350 = vmul.f32 %v3190, %v3334
  %v3351 = vmul.f32 %v3209, %v3335
  %v3352 = vmul.f32 %v3155, %v3336
  %v3353 = vmul.f32 %v3174, %v3337
  %v3354 = vmul.f32 %v3193, %v3338
  %v3355 = vmul.f32 %v3212, %v3339
  %v3356 = vmul.f32 %v3157, %v3340
  %v3357 = vmul.f32 %v3176, %v3341
  %v3358 = vmul.f32 %v3195, %v3342
  %v3359 = vmul.f32 %v3214, %v3343
  %v3360 = vpack.c.bf16 %v3348, %v3344
  %v3361 = vpack.c.bf16 %v3349, %v3345
  %v3362 = vpack.c.bf16 %v3350, %v3346
  %v3363 = vpack.c.bf16 %v3351, %v3347
  %v3364 = vpack.c.bf16 %v3356, %v3352
  %v3365 = vpack.c.bf16 %v3357, %v3353
  %v3366 = vpack.c.bf16 %v3358, %v3354
  %v3367 = vpack.c.bf16 %v3359, %v3355
  %s3368 = scalar_lea.vmem %s16, 256
  %v3369 = vld [vmem:[%s3368] sm:$0xf]
  %v3370 = vld [vmem:[%s3368 + $0x4] sm:$0xf]
  %v3371 = vld [vmem:[%s3368 + $0x8] sm:$0xf]
  %v3372 = vld [vmem:[%s3368 + $0xc] sm:$0xf]
  %v3373 = vld [vmem:[%s3368 + $0x10] sm:$0xf]
  %v3374 = vld [vmem:[%s3368 + $0x14] sm:$0xf]
  %v3375 = vld [vmem:[%s3368 + $0x18] sm:$0xf]
  %v3376 = vld [vmem:[%s3368 + $0x1c] sm:$0xf]
  %v3377 = vld [vmem:[%s3368 + $0x20] sm:$0xf]
  %v3378 = vld [vmem:[%s3368 + $0x24] sm:$0xf]
  %v3379 = vld [vmem:[%s3368 + $0x28] sm:$0xf]
  %v3380 = vld [vmem:[%s3368 + $0x2c] sm:$0xf]
  %v3381 = vld [vmem:[%s3368 + $0x30] sm:$0xf]
  %v3382 = vld [vmem:[%s3368 + $0x34] sm:$0xf]
  %v3383 = vld [vmem:[%s3368 + $0x38] sm:$0xf]
  %v3384 = vld [vmem:[%s3368 + $0x3c] sm:$0xf]
  %v3385 = vld [vmem:[%s3368 + $0x40] sm:$0xf]
  %v3386 = vld [vmem:[%s3368 + $0x44] sm:$0xf]
  %v3387 = vld [vmem:[%s3368 + $0x48] sm:$0xf]
  %v3388 = vld [vmem:[%s3368 + $0x4c] sm:$0xf]
  %v3389 = vld [vmem:[%s3368 + $0x50] sm:$0xf]
  %v3390 = vld [vmem:[%s3368 + $0x54] sm:$0xf]
  %v3391 = vld [vmem:[%s3368 + $0x58] sm:$0xf]
  %v3392 = vld [vmem:[%s3368 + $0x5c] sm:$0xf]
  %v3393 = vld [vmem:[%s3368 + $0x60] sm:$0xf]
  %v3394 = vld [vmem:[%s3368 + $0x64] sm:$0xf]
  %v3395 = vld [vmem:[%s3368 + $0x68] sm:$0xf]
  %v3396 = vld [vmem:[%s3368 + $0x6c] sm:$0xf]
  %v3397 = vld [vmem:[%s3368 + $0x70] sm:$0xf]
  %v3398 = vld [vmem:[%s3368 + $0x74] sm:$0xf]
  %v3399 = vld [vmem:[%s3368 + $0x78] sm:$0xf]
  %v3400 = vld [vmem:[%s3368 + $0x7c] sm:$0xf]
  %v3401 = vld [vmem:[%s3368 + $0x80] sm:$0xf]
  %v3402 = vld [vmem:[%s3368 + $0x84] sm:$0xf]
  %v3403 = vld [vmem:[%s3368 + $0x88] sm:$0xf]
  %v3404 = vld [vmem:[%s3368 + $0x8c] sm:$0xf]
  %v3405 = vld [vmem:[%s3368 + $0x90] sm:$0xf]
  %v3406 = vld [vmem:[%s3368 + $0x94] sm:$0xf]
  %v3407 = vld [vmem:[%s3368 + $0x98] sm:$0xf]
  %v3408 = vld [vmem:[%s3368 + $0x9c] sm:$0xf]
  %v3409 = vld [vmem:[%s3368 + $0xa0] sm:$0xf]
  %v3410 = vld [vmem:[%s3368 + $0xa4] sm:$0xf]
  %v3411 = vld [vmem:[%s3368 + $0xa8] sm:$0xf]
  %v3412 = vld [vmem:[%s3368 + $0xac] sm:$0xf]
  %v3413 = vld [vmem:[%s3368 + $0xb0] sm:$0xf]
  %v3414 = vld [vmem:[%s3368 + $0xb4] sm:$0xf]
  %v3415 = vld [vmem:[%s3368 + $0xb8] sm:$0xf]
  %v3416 = vld [vmem:[%s3368 + $0xbc] sm:$0xf]
  %v3417 = vld [vmem:[%s3368 + $0xc0] sm:$0xf]
  %v3418 = vld [vmem:[%s3368 + $0xc4] sm:$0xf]
  %v3419 = vld [vmem:[%s3368 + $0xc8] sm:$0xf]
  %v3420 = vld [vmem:[%s3368 + $0xcc] sm:$0xf]
  %v3421 = vld [vmem:[%s3368 + $0xd0] sm:$0xf]
  %v3422 = vld [vmem:[%s3368 + $0xd4] sm:$0xf]
  %v3423 = vld [vmem:[%s3368 + $0xd8] sm:$0xf]
  %v3424 = vld [vmem:[%s3368 + $0xdc] sm:$0xf]
  %v3425 = vld [vmem:[%s3368 + $0xe0] sm:$0xf]
  %v3426 = vld [vmem:[%s3368 + $0xe4] sm:$0xf]
  %v3427 = vld [vmem:[%s3368 + $0xe8] sm:$0xf]
  %v3428 = vld [vmem:[%s3368 + $0xec] sm:$0xf]
  %v3429 = vld [vmem:[%s3368 + $0xf0] sm:$0xf]
  %v3430 = vld [vmem:[%s3368 + $0xf4] sm:$0xf]
  %v3431 = vld [vmem:[%s3368 + $0xf8] sm:$0xf]
  %v3432 = vld [vmem:[%s3368 + $0xfc] sm:$0xf]
  %s3433 = scalar_lea.vmem %s17, 1
  %v3434 = vld [vmem:[%s3433] sm:$0x1]
  %v3436 = vperm.slane %v3434, 0
  %v3502 = vunpack.c.l.b16 %v3369
  %v3503 = vunpack.c.l.b16 %v3370
  %v3504 = vunpack.c.l.b16 %v3371
  %v3505 = vunpack.c.l.b16 %v3372
  %v3506 = vunpack.c.l.b16 %v3373
  %v3507 = vunpack.c.l.b16 %v3374
  %v3508 = vunpack.c.l.b16 %v3375
  %v3509 = vunpack.c.l.b16 %v3376
  %v3510 = vunpack.c.l.b16 %v3377
  %v3511 = vunpack.c.l.b16 %v3378
  %v3512 = vunpack.c.l.b16 %v3379
  %v3513 = vunpack.c.l.b16 %v3380
  %v3514 = vunpack.c.l.b16 %v3381
  %v3515 = vunpack.c.l.b16 %v3382
  %v3516 = vunpack.c.l.b16 %v3383
  %v3517 = vunpack.c.l.b16 %v3384
  %v3518 = vunpack.c.l.b16 %v3385
  %v3519 = vunpack.c.l.b16 %v3386
  %v3520 = vunpack.c.l.b16 %v3387
  %v3521 = vunpack.c.l.b16 %v3388
  %v3522 = vunpack.c.l.b16 %v3389
  %v3523 = vunpack.c.l.b16 %v3390
  %v3524 = vunpack.c.l.b16 %v3391
  %v3525 = vunpack.c.l.b16 %v3392
  %v3526 = vunpack.c.l.b16 %v3393
  %v3527 = vunpack.c.l.b16 %v3394
  %v3528 = vunpack.c.l.b16 %v3395
  %v3529 = vunpack.c.l.b16 %v3396
  %v3530 = vunpack.c.l.b16 %v3397
  %v3531 = vunpack.c.l.b16 %v3398
  %v3532 = vunpack.c.l.b16 %v3399
  %v3533 = vunpack.c.l.b16 %v3400
  %v3534 = vunpack.c.l.b16 %v3401
  %v3535 = vunpack.c.l.b16 %v3402
  %v3536 = vunpack.c.l.b16 %v3403
  %v3537 = vunpack.c.l.b16 %v3404
  %v3538 = vunpack.c.l.b16 %v3405
  %v3539 = vunpack.c.l.b16 %v3406
  %v3540 = vunpack.c.l.b16 %v3407
  %v3541 = vunpack.c.l.b16 %v3408
  %v3542 = vunpack.c.l.b16 %v3409
  %v3543 = vunpack.c.l.b16 %v3410
  %v3544 = vunpack.c.l.b16 %v3411
  %v3545 = vunpack.c.l.b16 %v3412
  %v3546 = vunpack.c.l.b16 %v3413
  %v3547 = vunpack.c.l.b16 %v3414
  %v3548 = vunpack.c.l.b16 %v3415
  %v3549 = vunpack.c.l.b16 %v3416
  %v3550 = vunpack.c.l.b16 %v3417
  %v3551 = vunpack.c.l.b16 %v3418
  %v3552 = vunpack.c.l.b16 %v3419
  %v3553 = vunpack.c.l.b16 %v3420
  %v3554 = vunpack.c.l.b16 %v3421
  %v3555 = vunpack.c.l.b16 %v3422
  %v3556 = vunpack.c.l.b16 %v3423
  %v3557 = vunpack.c.l.b16 %v3424
  %v3558 = vunpack.c.l.b16 %v3425
  %v3559 = vunpack.c.l.b16 %v3426
  %v3560 = vunpack.c.l.b16 %v3427
  %v3561 = vunpack.c.l.b16 %v3428
  %v3562 = vunpack.c.l.b16 %v3429
  %v3563 = vunpack.c.l.b16 %v3430
  %v3564 = vunpack.c.l.b16 %v3431
  %v3565 = vunpack.c.l.b16 %v3432
  %v3566 = vpack.c.b16 %v3503, %v3502
  %v3567 = vpack.c.b16 %v3505, %v3504
  %v3568 = vpack.c.b16 %v3507, %v3506
  %v3569 = vpack.c.b16 %v3509, %v3508
  %v3570 = vpack.c.b16 %v3511, %v3510
  %v3571 = vpack.c.b16 %v3513, %v3512
  %v3572 = vpack.c.b16 %v3515, %v3514
  %v3573 = vpack.c.b16 %v3517, %v3516
  %v3574 = vpack.c.b16 %v3519, %v3518
  %v3575 = vpack.c.b16 %v3521, %v3520
  %v3576 = vpack.c.b16 %v3523, %v3522
  %v3577 = vpack.c.b16 %v3525, %v3524
  %v3578 = vpack.c.b16 %v3527, %v3526
  %v3579 = vpack.c.b16 %v3529, %v3528
  %v3580 = vpack.c.b16 %v3531, %v3530
  %v3581 = vpack.c.b16 %v3533, %v3532
  %v3582 = vpack.c.b16 %v3535, %v3534
  %v3583 = vpack.c.b16 %v3537, %v3536
  %v3584 = vpack.c.b16 %v3539, %v3538
  %v3585 = vpack.c.b16 %v3541, %v3540
  %v3586 = vpack.c.b16 %v3543, %v3542
  %v3587 = vpack.c.b16 %v3545, %v3544
  %v3588 = vpack.c.b16 %v3547, %v3546
  %v3589 = vpack.c.b16 %v3549, %v3548
  %v3590 = vpack.c.b16 %v3551, %v3550
  %v3591 = vpack.c.b16 %v3553, %v3552
  %v3592 = vpack.c.b16 %v3555, %v3554
  %v3593 = vpack.c.b16 %v3557, %v3556
  %v3594 = vpack.c.b16 %v3559, %v3558
  %v3595 = vpack.c.b16 %v3561, %v3560
  %v3596 = vpack.c.b16 %v3563, %v3562
  %v3597 = vpack.c.b16 %v3565, %v3564
  %3630 = vmatpush.bf16.msra.mxu0 %v3573
  %3631 = vmatpush.bf16.msra.mxu0 %v3572
  %3632 = vmatpush.bf16.msra.mxu0 %v3571
  %3633 = vmatpush.bf16.msra.mxu0 %v3570
  %3634 = vmatpush.bf16.msra.mxu0 %v3569
  %3635 = vmatpush.bf16.msra.mxu0 %v3568
  %3636 = vmatpush.bf16.msra.mxu0 %v3567
  %3637 = vmatpush.bf16.msra.mxu0 %v3566
  %3638 = vmatmul.bf16.gmra.mxu0 %v3360
  %v3639 = vpop.f32.mrf.mxu0
  %v3640 = vadd.f32 %v3436, %v3639
  %v3641 = vpop.f32.mrf.mxu0
  %v3642 = vadd.f32 %v3436, %v3641
  %3643 = vmatmul.bf16.gmra.mxu0 %v3364
  %v3644 = vpop.f32.mrf.mxu0
  %v3645 = vadd.f32 %v3436, %v3644
  %v3646 = vpop.f32.mrf.mxu0
  %v3647 = vadd.f32 %v3436, %v3646
  %3648 = vdwg.mxu0
  %3649 = vmatpush.bf16.msra.mxu0 %v3581
  %3650 = vmatpush.bf16.msra.mxu0 %v3580
  %3651 = vmatpush.bf16.msra.mxu0 %v3579
  %3652 = vmatpush.bf16.msra.mxu0 %v3578
  %3653 = vmatpush.bf16.msra.mxu0 %v3577
  %3654 = vmatpush.bf16.msra.mxu0 %v3576
  %3655 = vmatpush.bf16.msra.mxu0 %v3575
  %3656 = vmatpush.bf16.msra.mxu0 %v3574
  %3657 = vmatmul.bf16.gmra.mxu0 %v3361
  %v3658 = vpop.f32.mrf.mxu0
  %v3659 = vadd.f32 %v3640, %v3658
  %v3660 = vpop.f32.mrf.mxu0
  %v3661 = vadd.f32 %v3642, %v3660
  %3662 = vmatmul.bf16.gmra.mxu0 %v3365
  %v3663 = vpop.f32.mrf.mxu0
  %v3664 = vadd.f32 %v3645, %v3663
  %v3665 = vpop.f32.mrf.mxu0
  %v3666 = vadd.f32 %v3647, %v3665
  %3667 = vdwg.mxu0
  %3668 = vmatpush.bf16.msra.mxu0 %v3589
  %3669 = vmatpush.bf16.msra.mxu0 %v3588
  %3670 = vmatpush.bf16.msra.mxu0 %v3587
  %3671 = vmatpush.bf16.msra.mxu0 %v3586
  %3672 = vmatpush.bf16.msra.mxu0 %v3585
  %3673 = vmatpush.bf16.msra.mxu0 %v3584
  %3674 = vmatpush.bf16.msra.mxu0 %v3583
  %3675 = vmatpush.bf16.msra.mxu0 %v3582
  %3676 = vmatmul.bf16.gmra.mxu0 %v3362
  %v3677 = vpop.f32.mrf.mxu0
  %v3678 = vadd.f32 %v3659, %v3677
  %v3679 = vpop.f32.mrf.mxu0
  %v3680 = vadd.f32 %v3661, %v3679
  %3681 = vmatmul.bf16.gmra.mxu0 %v3366
  %v3682 = vpop.f32.mrf.mxu0
  %v3683 = vadd.f32 %v3664, %v3682
  %v3684 = vpop.f32.mrf.mxu0
  %v3685 = vadd.f32 %v3666, %v3684
  %3686 = vdwg.mxu0
  %3687 = vmatpush.bf16.msra.mxu0 %v3597
  %3688 = vmatpush.bf16.msra.mxu0 %v3596
  %3689 = vmatpush.bf16.msra.mxu0 %v3595
  %3690 = vmatpush.bf16.msra.mxu0 %v3594
  %3691 = vmatpush.bf16.msra.mxu0 %v3593
  %3692 = vmatpush.bf16.msra.mxu0 %v3592
  %3693 = vmatpush.bf16.msra.mxu0 %v3591
  %3694 = vmatpush.bf16.msra.mxu0 %v3590
  %3695 = vmatmul.bf16.gmra.mxu0 %v3363
  %v3696 = vpop.f32.mrf.mxu0
  %v3697 = vadd.f32 %v3678, %v3696
  %v3698 = vpop.f32.mrf.mxu0
  %v3699 = vadd.f32 %v3680, %v3698
  %3700 = vmatmul.bf16.gmra.mxu0 %v3367
  %v3701 = vpop.f32.mrf.mxu0
  %v3702 = vadd.f32 %v3683, %v3701
  %v3703 = vpop.f32.mrf.mxu0
  %v3704 = vadd.f32 %v3685, %v3703
  %3705 = vdwg.mxu0
  %s3706 = scalar_lea.vmem %s18, 1
  %v3707 = vld [vmem:[%s3706] sm:$0x1]
  %v3709 = vperm.slane %v3707, 0
  %v3711 = vmul.f32 %v3709, %v3697
  %v3712 = vmul.f32 %v3709, %v3699
  %v3713 = vmul.f32 %v3709, %v3702
  %v3714 = vmul.f32 %v3709, %v3704
  %v3715 = vadd.f32 %v2832, %v3711
  %v3716 = vadd.f32 %v2833, %v3712
  %v3717 = vadd.f32 %v2834, %v3713
  %v3718 = vadd.f32 %v2835, %v3714
  %v3719 = vld [vmem:[%s19] sm:$0x1]
  %v3720 = vld [vmem:[%s20] sm:$0x1]
  %3721 = vadd.xlane.f32.xlu0 %v3715
  %v3722 = vpop.xlane.xlu0 %3721
  %3723 = vadd.xlane.f32.xlu0 %v3716
  %v3724 = vpop.xlane.xlu0 %3723
  %3725 = vadd.xlane.f32.xlu0 %v3717
  %v3726 = vpop.xlane.xlu0 %3725
  %3727 = vadd.xlane.f32.xlu0 %v3718
  %v3728 = vpop.xlane.xlu0 %3727
  %v3729 = vmul.f32 %v3722, %v512
  %v3730 = vmul.f32 %v3724, %v512
  %v3731 = vmul.f32 %v3726, %v512
  %v3732 = vmul.f32 %v3728, %v512
  %v3733 = vsub.f32 %v3715, %v3729
  %v3734 = vsub.f32 %v3716, %v3730
  %v3735 = vsub.f32 %v3717, %v3731
  %v3736 = vsub.f32 %v3718, %v3732
  %v3737 = vmul.f32 %v3733, %v3733
  %v3738 = vmul.f32 %v3734, %v3734
  %v3739 = vmul.f32 %v3735, %v3735
  %v3740 = vmul.f32 %v3736, %v3736
  %3741 = vadd.xlane.f32.xlu0 %v3737
  %v3742 = vpop.xlane.xlu0 %3741
  %3743 = vadd.xlane.f32.xlu0 %v3738
  %v3744 = vpop.xlane.xlu0 %3743
  %3745 = vadd.xlane.f32.xlu0 %v3739
  %v3746 = vpop.xlane.xlu0 %3745
  %3747 = vadd.xlane.f32.xlu0 %v3740
  %v3748 = vpop.xlane.xlu0 %3747
  %v3749 = vmul.f32 %v3742, %v512
  %v3750 = vmul.f32 %v3744, %v512
  %v3751 = vmul.f32 %v3746, %v512
  %v3752 = vmul.f32 %v3748, %v512
  %v3753 = vadd.f32 %v3749, 1e-06
  %v3754 = vadd.f32 %v3750, 1e-06
  %v3755 = vadd.f32 %v3751, 1e-06
  %v3756 = vadd.f32 %v3752, 1e-06
  %v3757 = vrsqrt.pop %v3753
  %v3758 = vmul.f32 %v3757, %v3753
  %v3759 = vmul.f32 %v3758, %v3757
  %v3760 = vmul.f32 0.5, %v3759
  %v3761 = vsub.f32 1.5, %v3760
  %v3762 = vmul.f32 %v3757, %v3761
  %vm3763 = vweird.f32 %v3753
  %vm3764 = vweird.f32 %v3757
  %vm3765 = vmor %vm3763, %vm3764
  %v3766 = vsel %vm3765, %v3757, %v3762
  %v3767 = vrsqrt.pop %v3754
  %v3768 = vmul.f32 %v3767, %v3754
  %v3769 = vmul.f32 %v3768, %v3767
  %v3770 = vmul.f32 0.5, %v3769
  %v3771 = vsub.f32 1.5, %v3770
  %v3772 = vmul.f32 %v3767, %v3771
  %vm3773 = vweird.f32 %v3754
  %vm3774 = vweird.f32 %v3767
  %vm3775 = vmor %vm3773, %vm3774
  %v3776 = vsel %vm3775, %v3767, %v3772
  %v3777 = vrsqrt.pop %v3755
  %v3778 = vmul.f32 %v3777, %v3755
  %v3779 = vmul.f32 %v3778, %v3777
  %v3780 = vmul.f32 0.5, %v3779
  %v3781 = vsub.f32 1.5, %v3780
  %v3782 = vmul.f32 %v3777, %v3781
  %vm3783 = vweird.f32 %v3755
  %vm3784 = vweird.f32 %v3777
  %vm3785 = vmor %vm3783, %vm3784
  %v3786 = vsel %vm3785, %v3777, %v3782
  %v3787 = vrsqrt.pop %v3756
  %v3788 = vmul.f32 %v3787, %v3756
  %v3789 = vmul.f32 %v3788, %v3787
  %v3790 = vmul.f32 0.5, %v3789
  %v3791 = vsub.f32 1.5, %v3790
  %v3792 = vmul.f32 %v3787, %v3791
  %vm3793 = vweird.f32 %v3756
  %vm3794 = vweird.f32 %v3787
  %vm3795 = vmor %vm3793, %vm3794
  %v3796 = vsel %vm3795, %v3787, %v3792
  %v3797 = vmul.f32 %v3733, %v3766
  %v3798 = vmul.f32 %v3734, %v3776
  %v3799 = vmul.f32 %v3735, %v3786
  %v3800 = vmul.f32 %v3736, %v3796
  %v3802 = vperm.slane %v3719, 0
  %v3804 = vmul.f32 %v3797, %v3802
  %v3805 = vmul.f32 %v3798, %v3802
  %v3806 = vmul.f32 %v3799, %v3802
  %v3807 = vmul.f32 %v3800, %v3802
  %v3809 = vperm.slane %v3720, 0
  %v3811 = vadd.f32 %v3804, %v3809
  %v3812 = vadd.f32 %v3805, %v3809
  %v3813 = vadd.f32 %v3806, %v3809
  %v3814 = vadd.f32 %v3807, %v3809
  %3815 = vst [vmem:[%s21] sm:$0xff] %v3811
  %3816 = vst [vmem:[%s21 + $0x8] sm:$0xff] %v3812
  %3817 = vst [vmem:[%s21 + $0x10] sm:$0xff] %v3813
  %3818 = vst [vmem:[%s21 + $0x18] sm:$0xff] %v3814
  // Predicated region
  $region86: #{dino_feature_extractor.1} parent=0 // pred_check
    _
  $region87: #{dino_feature_extractor.1} parent=0 // pred_check_branch
    %3820 = sbr.rel (0) target = $region89
  $region88: #{dino_feature_extractor.1} parent=0 // pred_region
    _
  $region89: #{dino_feature_extractor.1} parent=0 // pred_fallthru
    _
  // Predicated region
  $region90: #{dino_feature_extractor.1} parent=0 // pred_check
    _
  $region91: #{dino_feature_extractor.1} parent=0 // pred_check_branch
    %3822 = sbr.rel (0) target = $region93
  $region92: #{dino_feature_extractor.1} parent=0 // pred_region
    _
  $region93: #{dino_feature_extractor.1} parent=0 // pred_fallthru
    _

</llo_original>
